<compile_context>
chip_gen: v7x
topology: tpu7x:2x2x1
jax: 0.10.0
libtpu: 0.0.40
codegen_flags: <defaults>
</compile_context>

<pallas_src>
import jax
import jax.numpy as jnp
from jax import lax
from jax.experimental import pallas as pl
from jax.experimental.pallas import tpu as pltpu

NEG_BIG = -1e30


def lstm_pool_fc_kernel(tok_ref, lens_ref, emb_ref, w_ih_ref, w_hh_ref, b_ref,
                        fc_w_ref, fc_b_ref, out_ref):
    """Fused: one-hot embedding gather -> hoisted input projection -> unrolled LSTM ->
    masked max-pool over time -> Linear -> sigmoid.

    tok_ref:  (B, T)      int32  token ids (batch-major, as given to forward())
    lens_ref: (B, 1)      int32  sequence lengths
    emb_ref:  (V, E)      bf16   embedding table
    w_ih_ref: (E, 4*HP)   bf16   input weights, gate g occupies lanes [g*HP, g*HP+H)
    w_hh_ref: (HP, 4*HP)  bf16   recurrent weights (rows >= H are zero)
    b_ref:    (1, 4*HP)   f32    b_ih + b_hh (zero outside the real gate lanes)
    fc_w_ref: (HP, C)     f32    (rows >= H are zero)
    fc_b_ref: (1, C)      f32
    out_ref:  (B, C)      f32
    """
    B, T = tok_ref.shape
    V, E = emb_ref.shape
    HP = w_hh_ref.shape[0]          # per-gate padded width (one 128-lane tile per gate)

    tok = tok_ref[...]              # (B, T) int32
    lens = lens_ref[...]            # (B, 1) int32

    # --- Embedding gather as one-hot @ table (all off the serial h->h chain) -------------
    # Per-step (B, V) one-hots from static lane slices of tok, stacked time-major
    # (row n = t*B + b, B is a multiple of 8 so each block is sublane-aligned).
    iota_v = lax.broadcasted_iota(jnp.int32, (B, V), 1)
    onehot_tm = jnp.concatenate(
        [(tok[:, t:t + 1] == iota_v).astype(jnp.float32) for t in range(T)],
        axis=0).astype(jnp.bfloat16)                                      # (T*B, V)
    embedded = jnp.dot(onehot_tm, emb_ref[...],
                       preferred_element_type=jnp.float32)                # (T*B, E)

    # --- Hoisted input projection for all T steps (bias folded in) ------------------------
    xw_all = jnp.dot(embedded.astype(jnp.bfloat16), w_ih_ref[...],
                     preferred_element_type=jnp.float32) + b_ref[...]     # (T*B, 4*HP)

    # --- Hoisted additive pooling masks: h_t + 0 if t < len[b] else h_t - 1e30 ------------
    pads = [jnp.broadcast_to(
        jnp.where(lens > t, 0.0, NEG_BIG).astype(jnp.float32), (B, HP))
        for t in range(T)]

    w_hh = w_hh_ref[...]

    h = jnp.zeros((B, HP), jnp.float32)
    c = jnp.zeros((B, HP), jnp.float32)
    m = jnp.full((B, HP), NEG_BIG, jnp.float32)

    # --- Fully unrolled recurrence: serial chain per step = (h @ w_hh) + nonlinearities ---
    # Gate slices land on 128-lane vreg boundaries; padded lanes stay exactly 0 and are
    # killed by the zero rows of fc_w.
    # TODO(synk): if the bundle dump shows w_hh re-pushed to the MXU every step, latch it
    # with pltpu.matmul_push_rhs / matmul_acc_lhs / matmul_pop.
    for t in range(T):
        gates = xw_all[t * B:(t + 1) * B, :] + jnp.dot(
            h.astype(jnp.bfloat16), w_hh, preferred_element_type=jnp.float32)  # (B, 4*HP)
        i_g = jax.nn.sigmoid(gates[:, 0 * HP:1 * HP])
        f_g = jax.nn.sigmoid(gates[:, 1 * HP:2 * HP])
        g_g = jnp.tanh(gates[:, 2 * HP:3 * HP])
        o_g = jax.nn.sigmoid(gates[:, 3 * HP:4 * HP])
        c = f_g * c + i_g * g_g
        h = o_g * jnp.tanh(c)
        m = jnp.maximum(m, h + pads[t])

    # pad_packed_sequence zero rows (lengths[b] < max(lengths)) also take part in the max.
    max_len = jnp.max(lens, axis=0, keepdims=True)                        # (1, 1)
    zfloor = jnp.broadcast_to(
        jnp.where(lens < max_len, 0.0, NEG_BIG).astype(jnp.float32), (B, HP))
    pooled = jnp.maximum(m, zfloor)                                       # (B, HP)
    logits = jnp.dot(pooled, fc_w_ref[...],
                     preferred_element_type=jnp.float32) + fc_b_ref[...]
    out_ref[...] = jax.nn.sigmoid(logits)


def _full_spec(shape):
    nd = len(shape)
    return pl.BlockSpec(shape, lambda i, _nd=nd: (0,) * _nd)


def rnn_forward(x_tokens, lengths, kp):
    """Pallas-backed RNN.forward (lstm, unidirectional, batch_first) — single fused kernel."""
    B, T = x_tokens.shape
    C = kp["fc_w"].shape[1]
    assert B % 8 == 0, "pad the batch to a multiple of 8 (f32 sublane) before calling"
    lens2d = lengths.reshape(B, 1).astype(jnp.int32)
    args = (x_tokens.astype(jnp.int32), lens2d, kp["emb"], kp["w_ih"], kp["w_hh"],
            kp["b"], kp["fc_w"], kp["fc_b"])
    return pl.pallas_call(
        lstm_pool_fc_kernel,
        out_shape=jax.ShapeDtypeStruct((B, C), jnp.float32),
        grid=(1,),
        in_specs=[_full_spec(a.shape) for a in args],
        out_specs=_full_spec((B, C)),
        compiler_params=pltpu.CompilerParams(dimension_semantics=("arbitrary",)),
        # TODO(synk): at larger B, add a "parallel" batch grid axis so v7x's two TensorCores
        # split the batch; at B=8 a single program is fastest.
    )(*args)


def prepare_kernel_params(params):
    """One-time re-layout of the PyTorch-style parameters for the kernel: each LSTM gate gets
    its own 128-lane tile, recurrent/FC weights are zero-padded to HP = ceil(H/128)*128 rows,
    and MXU operands are pre-cast to bf16 (f32 accumulation stays inside the kernel)."""
    H = params["w_hh"].shape[0]
    C = params["fc_w"].shape[1]
    HP = ((H + 127) // 128) * 128

    def pad_gate_lanes(w):           # (rows, 4H) -> (rows, 4*HP), gate g at lanes [g*HP, g*HP+H)
        out = jnp.zeros((w.shape[0], 4 * HP), jnp.float32)
        for g in range(4):
            out = out.at[:, g * HP:g * HP + H].set(w[:, g * H:(g + 1) * H])
        return out

    w_ih_p = pad_gate_lanes(params["w_ih"])                               # (E, 4*HP)
    w_hh_p = jnp.zeros((HP, 4 * HP), jnp.float32).at[:H].set(
        pad_gate_lanes(params["w_hh"]))                                   # (HP, 4*HP)
    b_p = pad_gate_lanes(params["b"])                                     # (1, 4*HP)
    fc_w_p = jnp.zeros((HP, C), jnp.float32).at[:H].set(params["fc_w"])   # (HP, C)
    return {
        "emb": params["embedding"].astype(jnp.bfloat16),
        "w_ih": w_ih_p.astype(jnp.bfloat16),
        "w_hh": w_hh_p.astype(jnp.bfloat16),
        "b": b_p,
        "fc_w": fc_w_p,
        "fc_b": params["fc_b"].astype(jnp.float32),
    }


def rnn_forward_reference(x_tokens, lengths, params):
    """Pure-JAX f32 reference mirroring the PyTorch semantics (for a correctness check)."""
    emb_table = params["embedding"]
    w_ih, w_hh, b = params["w_ih"], params["w_hh"], params["b"]
    fc_w, fc_b = params["fc_w"], params["fc_b"]
    B, T = x_tokens.shape
    H = w_hh.shape[0]

    embedded = jnp.take(emb_table, x_tokens, axis=0)                 # (B, T, E)
    xs = jnp.transpose(embedded, (1, 0, 2))                          # (T, B, E)

    def cell(carry, inp):
        h, c = carry
        x_t, = inp
        gates = x_t @ w_ih + h @ w_hh + b
        i_g = jax.nn.sigmoid(gates[:, 0 * H:1 * H])
        f_g = jax.nn.sigmoid(gates[:, 1 * H:2 * H])
        g_g = jnp.tanh(gates[:, 2 * H:3 * H])
        o_g = jax.nn.sigmoid(gates[:, 3 * H:4 * H])
        c = f_g * c + i_g * g_g
        h = o_g * jnp.tanh(c)
        return (h, c), h

    init = (jnp.zeros((B, H), jnp.float32), jnp.zeros((B, H), jnp.float32))
    _, hs = lax.scan(cell, init, (xs,))                              # (T, B, H)
    hs = jnp.transpose(hs, (1, 0, 2))                                # (B, T, H)

    max_len = jnp.max(lengths)
    valid = (jnp.arange(T)[None, :] < lengths[:, None])              # (B, T)
    in_pad_window = (jnp.arange(T)[None, :] < max_len)               # pad_packed window
    hs_unpacked = jnp.where(valid[:, :, None], hs, 0.0)              # zeros beyond length
    hs_for_max = jnp.where(in_pad_window[:, :, None], hs_unpacked, NEG_BIG)
    pooled = jnp.max(hs_for_max, axis=1)                             # (B, H)
    return jax.nn.sigmoid(pooled @ fc_w + fc_b)


def make_params(key, vocab_size, emb_dim, hidden, num_classes):
    ks = jax.random.split(key, 8)
    scale = 0.1
    emb = jax.random.normal(ks[0], (vocab_size, emb_dim), jnp.float32) * scale
    # PyTorch layouts: weight_ih (4H, E), weight_hh (4H, H) -> transpose for x @ W
    w_ih_t = jax.random.normal(ks[1], (4 * hidden, emb_dim), jnp.float32) * scale
    w_hh_t = jax.random.normal(ks[2], (4 * hidden, hidden), jnp.float32) * scale
    b_ih = jax.random.normal(ks[3], (4 * hidden,), jnp.float32) * scale
    b_hh = jax.random.normal(ks[4], (4 * hidden,), jnp.float32) * scale
    fc_w_t = jax.random.normal(ks[5], (num_classes, hidden), jnp.float32) * scale
    fc_b = jax.random.normal(ks[6], (num_classes,), jnp.float32) * scale
    return {
        "embedding": emb,
        "w_ih": w_ih_t.T,                       # (E, 4H)
        "w_hh": w_hh_t.T,                       # (H, 4H)
        "b": (b_ih + b_hh)[None, :],            # (1, 4H)
        "fc_w": fc_w_t.T,                       # (H, C)
        "fc_b": fc_b[None, :],                  # (1, C)
    }


if __name__ == "__main__":
    VOCAB, EMB, HIDDEN, NUM_CLASSES = 50, 32, 32, 4
    B, T = 8, 12

    key = jax.random.PRNGKey(0)
    k_par, k_tok = jax.random.split(key)
    params = make_params(k_par, VOCAB, EMB, HIDDEN, NUM_CLASSES)
    kparams = prepare_kernel_params(params)

    x_tokens = jax.random.randint(k_tok, (B, T), 0, VOCAB, dtype=jnp.int32)
    # pack_padded_sequence(enforce_sorted=True): lengths sorted descending, max == T
    lengths = jnp.array([12, 11, 9, 8, 7, 5, 4, 3], dtype=jnp.int32)

    fwd = jax.jit(rnn_forward)
    out = jax.block_until_ready(fwd(x_tokens, lengths, kparams))

    ref = jax.block_until_ready(rnn_forward_reference(x_tokens, lengths, params))
    assert out.shape == (B, NUM_CLASSES)
    # bf16 MXU operands vs f32 reference -> loosened tolerance (per perf review).
    assert bool(jnp.allclose(out, ref, atol=2e-2, rtol=2e-2)), \
        f"max abs diff = {float(jnp.max(jnp.abs(out - ref)))}"

    print("KERNEL_OK")
</pallas_src>

<mosaic_0001>
module attributes {stable_mosaic.version = 11 : i64} {
  func.func @lstm_pool_fc_kernel(%arg0: i32, %arg1: memref<8x12xi32, #tpu.memory_space<vmem>>, %arg2: memref<8x1xi32, #tpu.memory_space<vmem>>, %arg3: memref<50x32xbf16, #tpu.memory_space<vmem>>, %arg4: memref<32x512xbf16, #tpu.memory_space<vmem>>, %arg5: memref<128x512xbf16, #tpu.memory_space<vmem>>, %arg6: memref<1x512xf32, #tpu.memory_space<vmem>>, %arg7: memref<128x4xf32, #tpu.memory_space<vmem>>, %arg8: memref<1x4xf32, #tpu.memory_space<vmem>>, %arg9: memref<8x4xf32, #tpu.memory_space<vmem>>) attributes {dimension_semantics = [#tpu.dimension_semantics<arbitrary>], iteration_bounds = array<i64: 1>, scalar_prefetch = 0 : i64, scratch_operands = 0 : i64, tpu.core_type = #tpu.core_type<tc>, window_params = [{pipeline_mode = #tpu.pipeline_mode<synchronous>, transform_indices = @transform_0, window_bounds = array<i64: 8, 12>}, {pipeline_mode = #tpu.pipeline_mode<synchronous>, transform_indices = @transform_1, window_bounds = array<i64: 8, 1>}, {pipeline_mode = #tpu.pipeline_mode<synchronous>, transform_indices = @transform_2, window_bounds = array<i64: 50, 32>}, {pipeline_mode = #tpu.pipeline_mode<synchronous>, transform_indices = @transform_3, window_bounds = array<i64: 32, 512>}, {pipeline_mode = #tpu.pipeline_mode<synchronous>, transform_indices = @transform_4, window_bounds = array<i64: 128, 512>}, {pipeline_mode = #tpu.pipeline_mode<synchronous>, transform_indices = @transform_5, window_bounds = array<i64: 1, 512>}, {pipeline_mode = #tpu.pipeline_mode<synchronous>, transform_indices = @transform_6, window_bounds = array<i64: 128, 4>}, {pipeline_mode = #tpu.pipeline_mode<synchronous>, transform_indices = @transform_7, window_bounds = array<i64: 1, 4>}, {pipeline_mode = #tpu.pipeline_mode<synchronous>, transform_indices = @transform_8, window_bounds = array<i64: 8, 4>}]} {
    %c0 = arith.constant 0 : index
    %c0_0 = arith.constant 0 : index
    %0 = vector.load %arg1[%c0, %c0_0] : memref<8x12xi32, #tpu.memory_space<vmem>>, vector<8x12xi32>
    %c0_1 = arith.constant 0 : index
    %c0_2 = arith.constant 0 : index
    %1 = vector.load %arg2[%c0_1, %c0_2] : memref<8x1xi32, #tpu.memory_space<vmem>>, vector<8x1xi32>
    %2 = tpu.iota {dimensions = array<i32: 1>} : vector<8x50xi32>
    %3 = vector.extract_strided_slice %0 {offsets = [0, 0], sizes = [8, 1], strides = [1, 1]} : vector<8x12xi32> to vector<8x1xi32>
    %4 = vector.broadcast %3 : vector<8x1xi32> to vector<8x50xi32>
    %5 = arith.cmpi eq, %4, %2 : vector<8x50xi32>
    %6 = arith.extui %5 : vector<8x50xi1> to vector<8x50xi32>
    %7 = arith.sitofp %6 : vector<8x50xi32> to vector<8x50xf32>
    %8 = vector.extract_strided_slice %0 {offsets = [0, 1], sizes = [8, 1], strides = [1, 1]} : vector<8x12xi32> to vector<8x1xi32>
    %9 = vector.broadcast %8 : vector<8x1xi32> to vector<8x50xi32>
    %10 = arith.cmpi eq, %9, %2 : vector<8x50xi32>
    %11 = arith.extui %10 : vector<8x50xi1> to vector<8x50xi32>
    %12 = arith.sitofp %11 : vector<8x50xi32> to vector<8x50xf32>
    %13 = vector.extract_strided_slice %0 {offsets = [0, 2], sizes = [8, 1], strides = [1, 1]} : vector<8x12xi32> to vector<8x1xi32>
    %14 = vector.broadcast %13 : vector<8x1xi32> to vector<8x50xi32>
    %15 = arith.cmpi eq, %14, %2 : vector<8x50xi32>
    %16 = arith.extui %15 : vector<8x50xi1> to vector<8x50xi32>
    %17 = arith.sitofp %16 : vector<8x50xi32> to vector<8x50xf32>
    %18 = vector.extract_strided_slice %0 {offsets = [0, 3], sizes = [8, 1], strides = [1, 1]} : vector<8x12xi32> to vector<8x1xi32>
    %19 = vector.broadcast %18 : vector<8x1xi32> to vector<8x50xi32>
    %20 = arith.cmpi eq, %19, %2 : vector<8x50xi32>
    %21 = arith.extui %20 : vector<8x50xi1> to vector<8x50xi32>
    %22 = arith.sitofp %21 : vector<8x50xi32> to vector<8x50xf32>
    %23 = vector.extract_strided_slice %0 {offsets = [0, 4], sizes = [8, 1], strides = [1, 1]} : vector<8x12xi32> to vector<8x1xi32>
    %24 = vector.broadcast %23 : vector<8x1xi32> to vector<8x50xi32>
    %25 = arith.cmpi eq, %24, %2 : vector<8x50xi32>
    %26 = arith.extui %25 : vector<8x50xi1> to vector<8x50xi32>
    %27 = arith.sitofp %26 : vector<8x50xi32> to vector<8x50xf32>
    %28 = vector.extract_strided_slice %0 {offsets = [0, 5], sizes = [8, 1], strides = [1, 1]} : vector<8x12xi32> to vector<8x1xi32>
    %29 = vector.broadcast %28 : vector<8x1xi32> to vector<8x50xi32>
    %30 = arith.cmpi eq, %29, %2 : vector<8x50xi32>
    %31 = arith.extui %30 : vector<8x50xi1> to vector<8x50xi32>
    %32 = arith.sitofp %31 : vector<8x50xi32> to vector<8x50xf32>
    %33 = vector.extract_strided_slice %0 {offsets = [0, 6], sizes = [8, 1], strides = [1, 1]} : vector<8x12xi32> to vector<8x1xi32>
    %34 = vector.broadcast %33 : vector<8x1xi32> to vector<8x50xi32>
    %35 = arith.cmpi eq, %34, %2 : vector<8x50xi32>
    %36 = arith.extui %35 : vector<8x50xi1> to vector<8x50xi32>
    %37 = arith.sitofp %36 : vector<8x50xi32> to vector<8x50xf32>
    %38 = vector.extract_strided_slice %0 {offsets = [0, 7], sizes = [8, 1], strides = [1, 1]} : vector<8x12xi32> to vector<8x1xi32>
    %39 = vector.broadcast %38 : vector<8x1xi32> to vector<8x50xi32>
    %40 = arith.cmpi eq, %39, %2 : vector<8x50xi32>
    %41 = arith.extui %40 : vector<8x50xi1> to vector<8x50xi32>
    %42 = arith.sitofp %41 : vector<8x50xi32> to vector<8x50xf32>
    %43 = vector.extract_strided_slice %0 {offsets = [0, 8], sizes = [8, 1], strides = [1, 1]} : vector<8x12xi32> to vector<8x1xi32>
    %44 = vector.broadcast %43 : vector<8x1xi32> to vector<8x50xi32>
    %45 = arith.cmpi eq, %44, %2 : vector<8x50xi32>
    %46 = arith.extui %45 : vector<8x50xi1> to vector<8x50xi32>
    %47 = arith.sitofp %46 : vector<8x50xi32> to vector<8x50xf32>
    %48 = vector.extract_strided_slice %0 {offsets = [0, 9], sizes = [8, 1], strides = [1, 1]} : vector<8x12xi32> to vector<8x1xi32>
    %49 = vector.broadcast %48 : vector<8x1xi32> to vector<8x50xi32>
    %50 = arith.cmpi eq, %49, %2 : vector<8x50xi32>
    %51 = arith.extui %50 : vector<8x50xi1> to vector<8x50xi32>
    %52 = arith.sitofp %51 : vector<8x50xi32> to vector<8x50xf32>
    %53 = vector.extract_strided_slice %0 {offsets = [0, 10], sizes = [8, 1], strides = [1, 1]} : vector<8x12xi32> to vector<8x1xi32>
    %54 = vector.broadcast %53 : vector<8x1xi32> to vector<8x50xi32>
    %55 = arith.cmpi eq, %54, %2 : vector<8x50xi32>
    %56 = arith.extui %55 : vector<8x50xi1> to vector<8x50xi32>
    %57 = arith.sitofp %56 : vector<8x50xi32> to vector<8x50xf32>
    %58 = vector.extract_strided_slice %0 {offsets = [0, 11], sizes = [8, 1], strides = [1, 1]} : vector<8x12xi32> to vector<8x1xi32>
    %59 = vector.broadcast %58 : vector<8x1xi32> to vector<8x50xi32>
    %60 = arith.cmpi eq, %59, %2 : vector<8x50xi32>
    %61 = arith.extui %60 : vector<8x50xi1> to vector<8x50xi32>
    %62 = arith.sitofp %61 : vector<8x50xi32> to vector<8x50xf32>
    %63 = tpu.concatenate %7, %12, %17, %22, %27, %32, %37, %42, %47, %52, %57, %62 in 0 : vector<8x50xf32>, vector<8x50xf32>, vector<8x50xf32>, vector<8x50xf32>, vector<8x50xf32>, vector<8x50xf32>, vector<8x50xf32>, vector<8x50xf32>, vector<8x50xf32>, vector<8x50xf32>, vector<8x50xf32>, vector<8x50xf32> -> vector<96x50xf32>
    %64 = arith.truncf %63 : vector<96x50xf32> to vector<96x50xbf16>
    %c0_3 = arith.constant 0 : index
    %c0_4 = arith.constant 0 : index
    %65 = vector.load %arg3[%c0_3, %c0_4] : memref<50x32xbf16, #tpu.memory_space<vmem>>, vector<50x32xbf16>
    %cst = arith.constant dense<0.000000e+00> : vector<96x32xf32>
    %66 = tpu.matmul %64, %65, %cst {dimension_numbers = #tpu.dot_dimension_numbers<[1], [0], [0], [1], [0, 0, 1, 1], [], []>} : vector<96x50xbf16>, vector<50x32xbf16>, vector<96x32xf32> -> vector<96x32xf32>
    %67 = arith.truncf %66 : vector<96x32xf32> to vector<96x32xbf16>
    %c0_5 = arith.constant 0 : index
    %c0_6 = arith.constant 0 : index
    %68 = vector.load %arg4[%c0_5, %c0_6] : memref<32x512xbf16, #tpu.memory_space<vmem>>, vector<32x512xbf16>
    %cst_7 = arith.constant dense<0.000000e+00> : vector<96x512xf32>
    %69 = tpu.matmul %67, %68, %cst_7 {dimension_numbers = #tpu.dot_dimension_numbers<[1], [0], [0], [1], [0, 0, 1, 1], [], []>} : vector<96x32xbf16>, vector<32x512xbf16>, vector<96x512xf32> -> vector<96x512xf32>
    %c0_8 = arith.constant 0 : index
    %c0_9 = arith.constant 0 : index
    %70 = vector.load %arg6[%c0_8, %c0_9] : memref<1x512xf32, #tpu.memory_space<vmem>>, vector<1x512xf32>
    %71 = vector.broadcast %70 : vector<1x512xf32> to vector<96x512xf32>
    %72 = arith.addf %69, %71 : vector<96x512xf32>
    %c0_i32 = arith.constant 0 : i32
    %73 = vector.broadcast %c0_i32 : i32 to vector<8x1xi32>
    %74 = arith.cmpi sgt, %1, %73 : vector<8x1xi32>
    %cst_10 = arith.constant 0.000000e+00 : f32
    %cst_11 = arith.constant -1.000000e+30 : f32
    %75 = vector.broadcast %cst_10 : f32 to vector<8x1xf32>
    %76 = vector.broadcast %cst_11 : f32 to vector<8x1xf32>
    %77 = arith.select %74, %75, %76 : vector<8x1xi1>, vector<8x1xf32>
    %78 = vector.shape_cast %77 : vector<8x1xf32> to vector<8x1xf32>
    %79 = vector.broadcast %78 : vector<8x1xf32> to vector<8x128xf32>
    %c1_i32 = arith.constant 1 : i32
    %80 = vector.broadcast %c1_i32 : i32 to vector<8x1xi32>
    %81 = arith.cmpi sgt, %1, %80 : vector<8x1xi32>
    %cst_12 = arith.constant 0.000000e+00 : f32
    %cst_13 = arith.constant -1.000000e+30 : f32
    %82 = vector.broadcast %cst_12 : f32 to vector<8x1xf32>
    %83 = vector.broadcast %cst_13 : f32 to vector<8x1xf32>
    %84 = arith.select %81, %82, %83 : vector<8x1xi1>, vector<8x1xf32>
    %85 = vector.shape_cast %84 : vector<8x1xf32> to vector<8x1xf32>
    %86 = vector.broadcast %85 : vector<8x1xf32> to vector<8x128xf32>
    %c2_i32 = arith.constant 2 : i32
    %87 = vector.broadcast %c2_i32 : i32 to vector<8x1xi32>
    %88 = arith.cmpi sgt, %1, %87 : vector<8x1xi32>
    %cst_14 = arith.constant 0.000000e+00 : f32
    %cst_15 = arith.constant -1.000000e+30 : f32
    %89 = vector.broadcast %cst_14 : f32 to vector<8x1xf32>
    %90 = vector.broadcast %cst_15 : f32 to vector<8x1xf32>
    %91 = arith.select %88, %89, %90 : vector<8x1xi1>, vector<8x1xf32>
    %92 = vector.shape_cast %91 : vector<8x1xf32> to vector<8x1xf32>
    %93 = vector.broadcast %92 : vector<8x1xf32> to vector<8x128xf32>
    %c3_i32 = arith.constant 3 : i32
    %94 = vector.broadcast %c3_i32 : i32 to vector<8x1xi32>
    %95 = arith.cmpi sgt, %1, %94 : vector<8x1xi32>
    %cst_16 = arith.constant 0.000000e+00 : f32
    %cst_17 = arith.constant -1.000000e+30 : f32
    %96 = vector.broadcast %cst_16 : f32 to vector<8x1xf32>
    %97 = vector.broadcast %cst_17 : f32 to vector<8x1xf32>
    %98 = arith.select %95, %96, %97 : vector<8x1xi1>, vector<8x1xf32>
    %99 = vector.shape_cast %98 : vector<8x1xf32> to vector<8x1xf32>
    %100 = vector.broadcast %99 : vector<8x1xf32> to vector<8x128xf32>
    %c4_i32 = arith.constant 4 : i32
    %101 = vector.broadcast %c4_i32 : i32 to vector<8x1xi32>
    %102 = arith.cmpi sgt, %1, %101 : vector<8x1xi32>
    %cst_18 = arith.constant 0.000000e+00 : f32
    %cst_19 = arith.constant -1.000000e+30 : f32
    %103 = vector.broadcast %cst_18 : f32 to vector<8x1xf32>
    %104 = vector.broadcast %cst_19 : f32 to vector<8x1xf32>
    %105 = arith.select %102, %103, %104 : vector<8x1xi1>, vector<8x1xf32>
    %106 = vector.shape_cast %105 : vector<8x1xf32> to vector<8x1xf32>
    %107 = vector.broadcast %106 : vector<8x1xf32> to vector<8x128xf32>
    %c5_i32 = arith.constant 5 : i32
    %108 = vector.broadcast %c5_i32 : i32 to vector<8x1xi32>
    %109 = arith.cmpi sgt, %1, %108 : vector<8x1xi32>
    %cst_20 = arith.constant 0.000000e+00 : f32
    %cst_21 = arith.constant -1.000000e+30 : f32
    %110 = vector.broadcast %cst_20 : f32 to vector<8x1xf32>
    %111 = vector.broadcast %cst_21 : f32 to vector<8x1xf32>
    %112 = arith.select %109, %110, %111 : vector<8x1xi1>, vector<8x1xf32>
    %113 = vector.shape_cast %112 : vector<8x1xf32> to vector<8x1xf32>
    %114 = vector.broadcast %113 : vector<8x1xf32> to vector<8x128xf32>
    %c6_i32 = arith.constant 6 : i32
    %115 = vector.broadcast %c6_i32 : i32 to vector<8x1xi32>
    %116 = arith.cmpi sgt, %1, %115 : vector<8x1xi32>
    %cst_22 = arith.constant 0.000000e+00 : f32
    %cst_23 = arith.constant -1.000000e+30 : f32
    %117 = vector.broadcast %cst_22 : f32 to vector<8x1xf32>
    %118 = vector.broadcast %cst_23 : f32 to vector<8x1xf32>
    %119 = arith.select %116, %117, %118 : vector<8x1xi1>, vector<8x1xf32>
    %120 = vector.shape_cast %119 : vector<8x1xf32> to vector<8x1xf32>
    %121 = vector.broadcast %120 : vector<8x1xf32> to vector<8x128xf32>
    %c7_i32 = arith.constant 7 : i32
    %122 = vector.broadcast %c7_i32 : i32 to vector<8x1xi32>
    %123 = arith.cmpi sgt, %1, %122 : vector<8x1xi32>
    %cst_24 = arith.constant 0.000000e+00 : f32
    %cst_25 = arith.constant -1.000000e+30 : f32
    %124 = vector.broadcast %cst_24 : f32 to vector<8x1xf32>
    %125 = vector.broadcast %cst_25 : f32 to vector<8x1xf32>
    %126 = arith.select %123, %124, %125 : vector<8x1xi1>, vector<8x1xf32>
    %127 = vector.shape_cast %126 : vector<8x1xf32> to vector<8x1xf32>
    %128 = vector.broadcast %127 : vector<8x1xf32> to vector<8x128xf32>
    %c8_i32 = arith.constant 8 : i32
    %129 = vector.broadcast %c8_i32 : i32 to vector<8x1xi32>
    %130 = arith.cmpi sgt, %1, %129 : vector<8x1xi32>
    %cst_26 = arith.constant 0.000000e+00 : f32
    %cst_27 = arith.constant -1.000000e+30 : f32
    %131 = vector.broadcast %cst_26 : f32 to vector<8x1xf32>
    %132 = vector.broadcast %cst_27 : f32 to vector<8x1xf32>
    %133 = arith.select %130, %131, %132 : vector<8x1xi1>, vector<8x1xf32>
    %134 = vector.shape_cast %133 : vector<8x1xf32> to vector<8x1xf32>
    %135 = vector.broadcast %134 : vector<8x1xf32> to vector<8x128xf32>
    %c9_i32 = arith.constant 9 : i32
    %136 = vector.broadcast %c9_i32 : i32 to vector<8x1xi32>
    %137 = arith.cmpi sgt, %1, %136 : vector<8x1xi32>
    %cst_28 = arith.constant 0.000000e+00 : f32
    %cst_29 = arith.constant -1.000000e+30 : f32
    %138 = vector.broadcast %cst_28 : f32 to vector<8x1xf32>
    %139 = vector.broadcast %cst_29 : f32 to vector<8x1xf32>
    %140 = arith.select %137, %138, %139 : vector<8x1xi1>, vector<8x1xf32>
    %141 = vector.shape_cast %140 : vector<8x1xf32> to vector<8x1xf32>
    %142 = vector.broadcast %141 : vector<8x1xf32> to vector<8x128xf32>
    %c10_i32 = arith.constant 10 : i32
    %143 = vector.broadcast %c10_i32 : i32 to vector<8x1xi32>
    %144 = arith.cmpi sgt, %1, %143 : vector<8x1xi32>
    %cst_30 = arith.constant 0.000000e+00 : f32
    %cst_31 = arith.constant -1.000000e+30 : f32
    %145 = vector.broadcast %cst_30 : f32 to vector<8x1xf32>
    %146 = vector.broadcast %cst_31 : f32 to vector<8x1xf32>
    %147 = arith.select %144, %145, %146 : vector<8x1xi1>, vector<8x1xf32>
    %148 = vector.shape_cast %147 : vector<8x1xf32> to vector<8x1xf32>
    %149 = vector.broadcast %148 : vector<8x1xf32> to vector<8x128xf32>
    %c11_i32 = arith.constant 11 : i32
    %150 = vector.broadcast %c11_i32 : i32 to vector<8x1xi32>
    %151 = arith.cmpi sgt, %1, %150 : vector<8x1xi32>
    %cst_32 = arith.constant 0.000000e+00 : f32
    %cst_33 = arith.constant -1.000000e+30 : f32
    %152 = vector.broadcast %cst_32 : f32 to vector<8x1xf32>
    %153 = vector.broadcast %cst_33 : f32 to vector<8x1xf32>
    %154 = arith.select %151, %152, %153 : vector<8x1xi1>, vector<8x1xf32>
    %155 = vector.shape_cast %154 : vector<8x1xf32> to vector<8x1xf32>
    %156 = vector.broadcast %155 : vector<8x1xf32> to vector<8x128xf32>
    %c0_34 = arith.constant 0 : index
    %c0_35 = arith.constant 0 : index
    %157 = vector.load %arg5[%c0_34, %c0_35] : memref<128x512xbf16, #tpu.memory_space<vmem>>, vector<128x512xbf16>
    %cst_36 = arith.constant 0.000000e+00 : f32
    %158 = vector.broadcast %cst_36 : f32 to vector<8x128xf32>
    %cst_37 = arith.constant 0.000000e+00 : f32
    %159 = vector.broadcast %cst_37 : f32 to vector<8x128xf32>
    %cst_38 = arith.constant -1.000000e+30 : f32
    %160 = vector.broadcast %cst_38 : f32 to vector<8x128xf32>
    %161 = vector.extract_strided_slice %72 {offsets = [0, 0], sizes = [8, 512], strides = [1, 1]} : vector<96x512xf32> to vector<8x512xf32>
    %162 = arith.truncf %158 : vector<8x128xf32> to vector<8x128xbf16>
    %cst_39 = arith.constant dense<0.000000e+00> : vector<8x512xf32>
    %163 = tpu.matmul %162, %157, %cst_39 {dimension_numbers = #tpu.dot_dimension_numbers<[1], [0], [0], [1], [0, 0, 1, 1], [], []>} : vector<8x128xbf16>, vector<128x512xbf16>, vector<8x512xf32> -> vector<8x512xf32>
    %164 = arith.addf %161, %163 : vector<8x512xf32>
    %165 = vector.extract_strided_slice %164 {offsets = [0, 0], sizes = [8, 128], strides = [1, 1]} : vector<8x512xf32> to vector<8x128xf32>
    %166 = arith.negf %165 : vector<8x128xf32>
    %167 = math.exp %166 : vector<8x128xf32>
    %cst_40 = arith.constant 1.000000e+00 : f32
    %168 = vector.broadcast %cst_40 : f32 to vector<8x128xf32>
    %169 = arith.addf %168, %167 : vector<8x128xf32>
    %170 = arith.divf %168, %169 : vector<8x128xf32>
    %171 = vector.extract_strided_slice %164 {offsets = [0, 128], sizes = [8, 128], strides = [1, 1]} : vector<8x512xf32> to vector<8x128xf32>
    %172 = arith.negf %171 : vector<8x128xf32>
    %173 = math.exp %172 : vector<8x128xf32>
    %cst_41 = arith.constant 1.000000e+00 : f32
    %174 = vector.broadcast %cst_41 : f32 to vector<8x128xf32>
    %175 = arith.addf %174, %173 : vector<8x128xf32>
    %176 = arith.divf %174, %175 : vector<8x128xf32>
    %177 = vector.extract_strided_slice %164 {offsets = [0, 256], sizes = [8, 128], strides = [1, 1]} : vector<8x512xf32> to vector<8x128xf32>
    %178 = math.tanh %177 : vector<8x128xf32>
    %179 = vector.extract_strided_slice %164 {offsets = [0, 384], sizes = [8, 128], strides = [1, 1]} : vector<8x512xf32> to vector<8x128xf32>
    %180 = arith.negf %179 : vector<8x128xf32>
    %181 = math.exp %180 : vector<8x128xf32>
    %cst_42 = arith.constant 1.000000e+00 : f32
    %182 = vector.broadcast %cst_42 : f32 to vector<8x128xf32>
    %183 = arith.addf %182, %181 : vector<8x128xf32>
    %184 = arith.divf %182, %183 : vector<8x128xf32>
    %185 = arith.mulf %176, %159 : vector<8x128xf32>
    %186 = arith.mulf %170, %178 : vector<8x128xf32>
    %187 = arith.addf %185, %186 : vector<8x128xf32>
    %188 = math.tanh %187 : vector<8x128xf32>
    %189 = arith.mulf %184, %188 : vector<8x128xf32>
    %190 = arith.addf %189, %79 : vector<8x128xf32>
    %191 = arith.maximumf %160, %190 : vector<8x128xf32>
    %192 = vector.extract_strided_slice %72 {offsets = [8, 0], sizes = [8, 512], strides = [1, 1]} : vector<96x512xf32> to vector<8x512xf32>
    %193 = arith.truncf %189 : vector<8x128xf32> to vector<8x128xbf16>
    %cst_43 = arith.constant dense<0.000000e+00> : vector<8x512xf32>
    %194 = tpu.matmul %193, %157, %cst_43 {dimension_numbers = #tpu.dot_dimension_numbers<[1], [0], [0], [1], [0, 0, 1, 1], [], []>} : vector<8x128xbf16>, vector<128x512xbf16>, vector<8x512xf32> -> vector<8x512xf32>
    %195 = arith.addf %192, %194 : vector<8x512xf32>
    %196 = vector.extract_strided_slice %195 {offsets = [0, 0], sizes = [8, 128], strides = [1, 1]} : vector<8x512xf32> to vector<8x128xf32>
    %197 = arith.negf %196 : vector<8x128xf32>
    %198 = math.exp %197 : vector<8x128xf32>
    %cst_44 = arith.constant 1.000000e+00 : f32
    %199 = vector.broadcast %cst_44 : f32 to vector<8x128xf32>
    %200 = arith.addf %199, %198 : vector<8x128xf32>
    %201 = arith.divf %199, %200 : vector<8x128xf32>
    %202 = vector.extract_strided_slice %195 {offsets = [0, 128], sizes = [8, 128], strides = [1, 1]} : vector<8x512xf32> to vector<8x128xf32>
    %203 = arith.negf %202 : vector<8x128xf32>
    %204 = math.exp %203 : vector<8x128xf32>
    %cst_45 = arith.constant 1.000000e+00 : f32
    %205 = vector.broadcast %cst_45 : f32 to vector<8x128xf32>
    %206 = arith.addf %205, %204 : vector<8x128xf32>
    %207 = arith.divf %205, %206 : vector<8x128xf32>
    %208 = vector.extract_strided_slice %195 {offsets = [0, 256], sizes = [8, 128], strides = [1, 1]} : vector<8x512xf32> to vector<8x128xf32>
    %209 = math.tanh %208 : vector<8x128xf32>
    %210 = vector.extract_strided_slice %195 {offsets = [0, 384], sizes = [8, 128], strides = [1, 1]} : vector<8x512xf32> to vector<8x128xf32>
    %211 = arith.negf %210 : vector<8x128xf32>
    %212 = math.exp %211 : vector<8x128xf32>
    %cst_46 = arith.constant 1.000000e+00 : f32
    %213 = vector.broadcast %cst_46 : f32 to vector<8x128xf32>
    %214 = arith.addf %213, %212 : vector<8x128xf32>
    %215 = arith.divf %213, %214 : vector<8x128xf32>
    %216 = arith.mulf %207, %187 : vector<8x128xf32>
    %217 = arith.mulf %201, %209 : vector<8x128xf32>
    %218 = arith.addf %216, %217 : vector<8x128xf32>
    %219 = math.tanh %218 : vector<8x128xf32>
    %220 = arith.mulf %215, %219 : vector<8x128xf32>
    %221 = arith.addf %220, %86 : vector<8x128xf32>
    %222 = arith.maximumf %191, %221 : vector<8x128xf32>
    %223 = vector.extract_strided_slice %72 {offsets = [16, 0], sizes = [8, 512], strides = [1, 1]} : vector<96x512xf32> to vector<8x512xf32>
    %224 = arith.truncf %220 : vector<8x128xf32> to vector<8x128xbf16>
    %cst_47 = arith.constant dense<0.000000e+00> : vector<8x512xf32>
    %225 = tpu.matmul %224, %157, %cst_47 {dimension_numbers = #tpu.dot_dimension_numbers<[1], [0], [0], [1], [0, 0, 1, 1], [], []>} : vector<8x128xbf16>, vector<128x512xbf16>, vector<8x512xf32> -> vector<8x512xf32>
    %226 = arith.addf %223, %225 : vector<8x512xf32>
    %227 = vector.extract_strided_slice %226 {offsets = [0, 0], sizes = [8, 128], strides = [1, 1]} : vector<8x512xf32> to vector<8x128xf32>
    %228 = arith.negf %227 : vector<8x128xf32>
    %229 = math.exp %228 : vector<8x128xf32>
    %cst_48 = arith.constant 1.000000e+00 : f32
    %230 = vector.broadcast %cst_48 : f32 to vector<8x128xf32>
    %231 = arith.addf %230, %229 : vector<8x128xf32>
    %232 = arith.divf %230, %231 : vector<8x128xf32>
    %233 = vector.extract_strided_slice %226 {offsets = [0, 128], sizes = [8, 128], strides = [1, 1]} : vector<8x512xf32> to vector<8x128xf32>
    %234 = arith.negf %233 : vector<8x128xf32>
    %235 = math.exp %234 : vector<8x128xf32>
    %cst_49 = arith.constant 1.000000e+00 : f32
    %236 = vector.broadcast %cst_49 : f32 to vector<8x128xf32>
    %237 = arith.addf %236, %235 : vector<8x128xf32>
    %238 = arith.divf %236, %237 : vector<8x128xf32>
    %239 = vector.extract_strided_slice %226 {offsets = [0, 256], sizes = [8, 128], strides = [1, 1]} : vector<8x512xf32> to vector<8x128xf32>
    %240 = math.tanh %239 : vector<8x128xf32>
    %241 = vector.extract_strided_slice %226 {offsets = [0, 384], sizes = [8, 128], strides = [1, 1]} : vector<8x512xf32> to vector<8x128xf32>
    %242 = arith.negf %241 : vector<8x128xf32>
    %243 = math.exp %242 : vector<8x128xf32>
    %cst_50 = arith.constant 1.000000e+00 : f32
    %244 = vector.broadcast %cst_50 : f32 to vector<8x128xf32>
    %245 = arith.addf %244, %243 : vector<8x128xf32>
    %246 = arith.divf %244, %245 : vector<8x128xf32>
    %247 = arith.mulf %238, %218 : vector<8x128xf32>
    %248 = arith.mulf %232, %240 : vector<8x128xf32>
    %249 = arith.addf %247, %248 : vector<8x128xf32>
    %250 = math.tanh %249 : vector<8x128xf32>
    %251 = arith.mulf %246, %250 : vector<8x128xf32>
    %252 = arith.addf %251, %93 : vector<8x128xf32>
    %253 = arith.maximumf %222, %252 : vector<8x128xf32>
    %254 = vector.extract_strided_slice %72 {offsets = [24, 0], sizes = [8, 512], strides = [1, 1]} : vector<96x512xf32> to vector<8x512xf32>
    %255 = arith.truncf %251 : vector<8x128xf32> to vector<8x128xbf16>
    %cst_51 = arith.constant dense<0.000000e+00> : vector<8x512xf32>
    %256 = tpu.matmul %255, %157, %cst_51 {dimension_numbers = #tpu.dot_dimension_numbers<[1], [0], [0], [1], [0, 0, 1, 1], [], []>} : vector<8x128xbf16>, vector<128x512xbf16>, vector<8x512xf32> -> vector<8x512xf32>
    %257 = arith.addf %254, %256 : vector<8x512xf32>
    %258 = vector.extract_strided_slice %257 {offsets = [0, 0], sizes = [8, 128], strides = [1, 1]} : vector<8x512xf32> to vector<8x128xf32>
    %259 = arith.negf %258 : vector<8x128xf32>
    %260 = math.exp %259 : vector<8x128xf32>
    %cst_52 = arith.constant 1.000000e+00 : f32
    %261 = vector.broadcast %cst_52 : f32 to vector<8x128xf32>
    %262 = arith.addf %261, %260 : vector<8x128xf32>
    %263 = arith.divf %261, %262 : vector<8x128xf32>
    %264 = vector.extract_strided_slice %257 {offsets = [0, 128], sizes = [8, 128], strides = [1, 1]} : vector<8x512xf32> to vector<8x128xf32>
    %265 = arith.negf %264 : vector<8x128xf32>
    %266 = math.exp %265 : vector<8x128xf32>
    %cst_53 = arith.constant 1.000000e+00 : f32
    %267 = vector.broadcast %cst_53 : f32 to vector<8x128xf32>
    %268 = arith.addf %267, %266 : vector<8x128xf32>
    %269 = arith.divf %267, %268 : vector<8x128xf32>
    %270 = vector.extract_strided_slice %257 {offsets = [0, 256], sizes = [8, 128], strides = [1, 1]} : vector<8x512xf32> to vector<8x128xf32>
    %271 = math.tanh %270 : vector<8x128xf32>
    %272 = vector.extract_strided_slice %257 {offsets = [0, 384], sizes = [8, 128], strides = [1, 1]} : vector<8x512xf32> to vector<8x128xf32>
    %273 = arith.negf %272 : vector<8x128xf32>
    %274 = math.exp %273 : vector<8x128xf32>
    %cst_54 = arith.constant 1.000000e+00 : f32
    %275 = vector.broadcast %cst_54 : f32 to vector<8x128xf32>
    %276 = arith.addf %275, %274 : vector<8x128xf32>
    %277 = arith.divf %275, %276 : vector<8x128xf32>
    %278 = arith.mulf %269, %249 : vector<8x128xf32>
    %279 = arith.mulf %263, %271 : vector<8x128xf32>
    %280 = arith.addf %278, %279 : vector<8x128xf32>
    %281 = math.tanh %280 : vector<8x128xf32>
    %282 = arith.mulf %277, %281 : vector<8x128xf32>
    %283 = arith.addf %282, %100 : vector<8x128xf32>
    %284 = arith.maximumf %253, %283 : vector<8x128xf32>
    %285 = vector.extract_strided_slice %72 {offsets = [32, 0], sizes = [8, 512], strides = [1, 1]} : vector<96x512xf32> to vector<8x512xf32>
    %286 = arith.truncf %282 : vector<8x128xf32> to vector<8x128xbf16>
    %cst_55 = arith.constant dense<0.000000e+00> : vector<8x512xf32>
    %287 = tpu.matmul %286, %157, %cst_55 {dimension_numbers = #tpu.dot_dimension_numbers<[1], [0], [0], [1], [0, 0, 1, 1], [], []>} : vector<8x128xbf16>, vector<128x512xbf16>, vector<8x512xf32> -> vector<8x512xf32>
    %288 = arith.addf %285, %287 : vector<8x512xf32>
    %289 = vector.extract_strided_slice %288 {offsets = [0, 0], sizes = [8, 128], strides = [1, 1]} : vector<8x512xf32> to vector<8x128xf32>
    %290 = arith.negf %289 : vector<8x128xf32>
    %291 = math.exp %290 : vector<8x128xf32>
    %cst_56 = arith.constant 1.000000e+00 : f32
    %292 = vector.broadcast %cst_56 : f32 to vector<8x128xf32>
    %293 = arith.addf %292, %291 : vector<8x128xf32>
    %294 = arith.divf %292, %293 : vector<8x128xf32>
    %295 = vector.extract_strided_slice %288 {offsets = [0, 128], sizes = [8, 128], strides = [1, 1]} : vector<8x512xf32> to vector<8x128xf32>
    %296 = arith.negf %295 : vector<8x128xf32>
    %297 = math.exp %296 : vector<8x128xf32>
    %cst_57 = arith.constant 1.000000e+00 : f32
    %298 = vector.broadcast %cst_57 : f32 to vector<8x128xf32>
    %299 = arith.addf %298, %297 : vector<8x128xf32>
    %300 = arith.divf %298, %299 : vector<8x128xf32>
    %301 = vector.extract_strided_slice %288 {offsets = [0, 256], sizes = [8, 128], strides = [1, 1]} : vector<8x512xf32> to vector<8x128xf32>
    %302 = math.tanh %301 : vector<8x128xf32>
    %303 = vector.extract_strided_slice %288 {offsets = [0, 384], sizes = [8, 128], strides = [1, 1]} : vector<8x512xf32> to vector<8x128xf32>
    %304 = arith.negf %303 : vector<8x128xf32>
    %305 = math.exp %304 : vector<8x128xf32>
    %cst_58 = arith.constant 1.000000e+00 : f32
    %306 = vector.broadcast %cst_58 : f32 to vector<8x128xf32>
    %307 = arith.addf %306, %305 : vector<8x128xf32>
    %308 = arith.divf %306, %307 : vector<8x128xf32>
    %309 = arith.mulf %300, %280 : vector<8x128xf32>
    %310 = arith.mulf %294, %302 : vector<8x128xf32>
    %311 = arith.addf %309, %310 : vector<8x128xf32>
    %312 = math.tanh %311 : vector<8x128xf32>
    %313 = arith.mulf %308, %312 : vector<8x128xf32>
    %314 = arith.addf %313, %107 : vector<8x128xf32>
    %315 = arith.maximumf %284, %314 : vector<8x128xf32>
    %316 = vector.extract_strided_slice %72 {offsets = [40, 0], sizes = [8, 512], strides = [1, 1]} : vector<96x512xf32> to vector<8x512xf32>
    %317 = arith.truncf %313 : vector<8x128xf32> to vector<8x128xbf16>
    %cst_59 = arith.constant dense<0.000000e+00> : vector<8x512xf32>
    %318 = tpu.matmul %317, %157, %cst_59 {dimension_numbers = #tpu.dot_dimension_numbers<[1], [0], [0], [1], [0, 0, 1, 1], [], []>} : vector<8x128xbf16>, vector<128x512xbf16>, vector<8x512xf32> -> vector<8x512xf32>
    %319 = arith.addf %316, %318 : vector<8x512xf32>
    %320 = vector.extract_strided_slice %319 {offsets = [0, 0], sizes = [8, 128], strides = [1, 1]} : vector<8x512xf32> to vector<8x128xf32>
    %321 = arith.negf %320 : vector<8x128xf32>
    %322 = math.exp %321 : vector<8x128xf32>
    %cst_60 = arith.constant 1.000000e+00 : f32
    %323 = vector.broadcast %cst_60 : f32 to vector<8x128xf32>
    %324 = arith.addf %323, %322 : vector<8x128xf32>
    %325 = arith.divf %323, %324 : vector<8x128xf32>
    %326 = vector.extract_strided_slice %319 {offsets = [0, 128], sizes = [8, 128], strides = [1, 1]} : vector<8x512xf32> to vector<8x128xf32>
    %327 = arith.negf %326 : vector<8x128xf32>
    %328 = math.exp %327 : vector<8x128xf32>
    %cst_61 = arith.constant 1.000000e+00 : f32
    %329 = vector.broadcast %cst_61 : f32 to vector<8x128xf32>
    %330 = arith.addf %329, %328 : vector<8x128xf32>
    %331 = arith.divf %329, %330 : vector<8x128xf32>
    %332 = vector.extract_strided_slice %319 {offsets = [0, 256], sizes = [8, 128], strides = [1, 1]} : vector<8x512xf32> to vector<8x128xf32>
    %333 = math.tanh %332 : vector<8x128xf32>
    %334 = vector.extract_strided_slice %319 {offsets = [0, 384], sizes = [8, 128], strides = [1, 1]} : vector<8x512xf32> to vector<8x128xf32>
    %335 = arith.negf %334 : vector<8x128xf32>
    %336 = math.exp %335 : vector<8x128xf32>
    %cst_62 = arith.constant 1.000000e+00 : f32
    %337 = vector.broadcast %cst_62 : f32 to vector<8x128xf32>
    %338 = arith.addf %337, %336 : vector<8x128xf32>
    %339 = arith.divf %337, %338 : vector<8x128xf32>
    %340 = arith.mulf %331, %311 : vector<8x128xf32>
    %341 = arith.mulf %325, %333 : vector<8x128xf32>
    %342 = arith.addf %340, %341 : vector<8x128xf32>
    %343 = math.tanh %342 : vector<8x128xf32>
    %344 = arith.mulf %339, %343 : vector<8x128xf32>
    %345 = arith.addf %344, %114 : vector<8x128xf32>
    %346 = arith.maximumf %315, %345 : vector<8x128xf32>
    %347 = vector.extract_strided_slice %72 {offsets = [48, 0], sizes = [8, 512], strides = [1, 1]} : vector<96x512xf32> to vector<8x512xf32>
    %348 = arith.truncf %344 : vector<8x128xf32> to vector<8x128xbf16>
    %cst_63 = arith.constant dense<0.000000e+00> : vector<8x512xf32>
    %349 = tpu.matmul %348, %157, %cst_63 {dimension_numbers = #tpu.dot_dimension_numbers<[1], [0], [0], [1], [0, 0, 1, 1], [], []>} : vector<8x128xbf16>, vector<128x512xbf16>, vector<8x512xf32> -> vector<8x512xf32>
    %350 = arith.addf %347, %349 : vector<8x512xf32>
    %351 = vector.extract_strided_slice %350 {offsets = [0, 0], sizes = [8, 128], strides = [1, 1]} : vector<8x512xf32> to vector<8x128xf32>
    %352 = arith.negf %351 : vector<8x128xf32>
    %353 = math.exp %352 : vector<8x128xf32>
    %cst_64 = arith.constant 1.000000e+00 : f32
    %354 = vector.broadcast %cst_64 : f32 to vector<8x128xf32>
    %355 = arith.addf %354, %353 : vector<8x128xf32>
    %356 = arith.divf %354, %355 : vector<8x128xf32>
    %357 = vector.extract_strided_slice %350 {offsets = [0, 128], sizes = [8, 128], strides = [1, 1]} : vector<8x512xf32> to vector<8x128xf32>
    %358 = arith.negf %357 : vector<8x128xf32>
    %359 = math.exp %358 : vector<8x128xf32>
    %cst_65 = arith.constant 1.000000e+00 : f32
    %360 = vector.broadcast %cst_65 : f32 to vector<8x128xf32>
    %361 = arith.addf %360, %359 : vector<8x128xf32>
    %362 = arith.divf %360, %361 : vector<8x128xf32>
    %363 = vector.extract_strided_slice %350 {offsets = [0, 256], sizes = [8, 128], strides = [1, 1]} : vector<8x512xf32> to vector<8x128xf32>
    %364 = math.tanh %363 : vector<8x128xf32>
    %365 = vector.extract_strided_slice %350 {offsets = [0, 384], sizes = [8, 128], strides = [1, 1]} : vector<8x512xf32> to vector<8x128xf32>
    %366 = arith.negf %365 : vector<8x128xf32>
    %367 = math.exp %366 : vector<8x128xf32>
    %cst_66 = arith.constant 1.000000e+00 : f32
    %368 = vector.broadcast %cst_66 : f32 to vector<8x128xf32>
    %369 = arith.addf %368, %367 : vector<8x128xf32>
    %370 = arith.divf %368, %369 : vector<8x128xf32>
    %371 = arith.mulf %362, %342 : vector<8x128xf32>
    %372 = arith.mulf %356, %364 : vector<8x128xf32>
    %373 = arith.addf %371, %372 : vector<8x128xf32>
    %374 = math.tanh %373 : vector<8x128xf32>
    %375 = arith.mulf %370, %374 : vector<8x128xf32>
    %376 = arith.addf %375, %121 : vector<8x128xf32>
    %377 = arith.maximumf %346, %376 : vector<8x128xf32>
    %378 = vector.extract_strided_slice %72 {offsets = [56, 0], sizes = [8, 512], strides = [1, 1]} : vector<96x512xf32> to vector<8x512xf32>
    %379 = arith.truncf %375 : vector<8x128xf32> to vector<8x128xbf16>
    %cst_67 = arith.constant dense<0.000000e+00> : vector<8x512xf32>
    %380 = tpu.matmul %379, %157, %cst_67 {dimension_numbers = #tpu.dot_dimension_numbers<[1], [0], [0], [1], [0, 0, 1, 1], [], []>} : vector<8x128xbf16>, vector<128x512xbf16>, vector<8x512xf32> -> vector<8x512xf32>
    %381 = arith.addf %378, %380 : vector<8x512xf32>
    %382 = vector.extract_strided_slice %381 {offsets = [0, 0], sizes = [8, 128], strides = [1, 1]} : vector<8x512xf32> to vector<8x128xf32>
    %383 = arith.negf %382 : vector<8x128xf32>
    %384 = math.exp %383 : vector<8x128xf32>
    %cst_68 = arith.constant 1.000000e+00 : f32
    %385 = vector.broadcast %cst_68 : f32 to vector<8x128xf32>
    %386 = arith.addf %385, %384 : vector<8x128xf32>
    %387 = arith.divf %385, %386 : vector<8x128xf32>
    %388 = vector.extract_strided_slice %381 {offsets = [0, 128], sizes = [8, 128], strides = [1, 1]} : vector<8x512xf32> to vector<8x128xf32>
    %389 = arith.negf %388 : vector<8x128xf32>
    %390 = math.exp %389 : vector<8x128xf32>
    %cst_69 = arith.constant 1.000000e+00 : f32
    %391 = vector.broadcast %cst_69 : f32 to vector<8x128xf32>
    %392 = arith.addf %391, %390 : vector<8x128xf32>
    %393 = arith.divf %391, %392 : vector<8x128xf32>
    %394 = vector.extract_strided_slice %381 {offsets = [0, 256], sizes = [8, 128], strides = [1, 1]} : vector<8x512xf32> to vector<8x128xf32>
    %395 = math.tanh %394 : vector<8x128xf32>
    %396 = vector.extract_strided_slice %381 {offsets = [0, 384], sizes = [8, 128], strides = [1, 1]} : vector<8x512xf32> to vector<8x128xf32>
    %397 = arith.negf %396 : vector<8x128xf32>
    %398 = math.exp %397 : vector<8x128xf32>
    %cst_70 = arith.constant 1.000000e+00 : f32
    %399 = vector.broadcast %cst_70 : f32 to vector<8x128xf32>
    %400 = arith.addf %399, %398 : vector<8x128xf32>
    %401 = arith.divf %399, %400 : vector<8x128xf32>
    %402 = arith.mulf %393, %373 : vector<8x128xf32>
    %403 = arith.mulf %387, %395 : vector<8x128xf32>
    %404 = arith.addf %402, %403 : vector<8x128xf32>
    %405 = math.tanh %404 : vector<8x128xf32>
    %406 = arith.mulf %401, %405 : vector<8x128xf32>
    %407 = arith.addf %406, %128 : vector<8x128xf32>
    %408 = arith.maximumf %377, %407 : vector<8x128xf32>
    %409 = vector.extract_strided_slice %72 {offsets = [64, 0], sizes = [8, 512], strides = [1, 1]} : vector<96x512xf32> to vector<8x512xf32>
    %410 = arith.truncf %406 : vector<8x128xf32> to vector<8x128xbf16>
    %cst_71 = arith.constant dense<0.000000e+00> : vector<8x512xf32>
    %411 = tpu.matmul %410, %157, %cst_71 {dimension_numbers = #tpu.dot_dimension_numbers<[1], [0], [0], [1], [0, 0, 1, 1], [], []>} : vector<8x128xbf16>, vector<128x512xbf16>, vector<8x512xf32> -> vector<8x512xf32>
    %412 = arith.addf %409, %411 : vector<8x512xf32>
    %413 = vector.extract_strided_slice %412 {offsets = [0, 0], sizes = [8, 128], strides = [1, 1]} : vector<8x512xf32> to vector<8x128xf32>
    %414 = arith.negf %413 : vector<8x128xf32>
    %415 = math.exp %414 : vector<8x128xf32>
    %cst_72 = arith.constant 1.000000e+00 : f32
    %416 = vector.broadcast %cst_72 : f32 to vector<8x128xf32>
    %417 = arith.addf %416, %415 : vector<8x128xf32>
    %418 = arith.divf %416, %417 : vector<8x128xf32>
    %419 = vector.extract_strided_slice %412 {offsets = [0, 128], sizes = [8, 128], strides = [1, 1]} : vector<8x512xf32> to vector<8x128xf32>
    %420 = arith.negf %419 : vector<8x128xf32>
    %421 = math.exp %420 : vector<8x128xf32>
    %cst_73 = arith.constant 1.000000e+00 : f32
    %422 = vector.broadcast %cst_73 : f32 to vector<8x128xf32>
    %423 = arith.addf %422, %421 : vector<8x128xf32>
    %424 = arith.divf %422, %423 : vector<8x128xf32>
    %425 = vector.extract_strided_slice %412 {offsets = [0, 256], sizes = [8, 128], strides = [1, 1]} : vector<8x512xf32> to vector<8x128xf32>
    %426 = math.tanh %425 : vector<8x128xf32>
    %427 = vector.extract_strided_slice %412 {offsets = [0, 384], sizes = [8, 128], strides = [1, 1]} : vector<8x512xf32> to vector<8x128xf32>
    %428 = arith.negf %427 : vector<8x128xf32>
    %429 = math.exp %428 : vector<8x128xf32>
    %cst_74 = arith.constant 1.000000e+00 : f32
    %430 = vector.broadcast %cst_74 : f32 to vector<8x128xf32>
    %431 = arith.addf %430, %429 : vector<8x128xf32>
    %432 = arith.divf %430, %431 : vector<8x128xf32>
    %433 = arith.mulf %424, %404 : vector<8x128xf32>
    %434 = arith.mulf %418, %426 : vector<8x128xf32>
    %435 = arith.addf %433, %434 : vector<8x128xf32>
    %436 = math.tanh %435 : vector<8x128xf32>
    %437 = arith.mulf %432, %436 : vector<8x128xf32>
    %438 = arith.addf %437, %135 : vector<8x128xf32>
    %439 = arith.maximumf %408, %438 : vector<8x128xf32>
    %440 = vector.extract_strided_slice %72 {offsets = [72, 0], sizes = [8, 512], strides = [1, 1]} : vector<96x512xf32> to vector<8x512xf32>
    %441 = arith.truncf %437 : vector<8x128xf32> to vector<8x128xbf16>
    %cst_75 = arith.constant dense<0.000000e+00> : vector<8x512xf32>
    %442 = tpu.matmul %441, %157, %cst_75 {dimension_numbers = #tpu.dot_dimension_numbers<[1], [0], [0], [1], [0, 0, 1, 1], [], []>} : vector<8x128xbf16>, vector<128x512xbf16>, vector<8x512xf32> -> vector<8x512xf32>
    %443 = arith.addf %440, %442 : vector<8x512xf32>
    %444 = vector.extract_strided_slice %443 {offsets = [0, 0], sizes = [8, 128], strides = [1, 1]} : vector<8x512xf32> to vector<8x128xf32>
    %445 = arith.negf %444 : vector<8x128xf32>
    %446 = math.exp %445 : vector<8x128xf32>
    %cst_76 = arith.constant 1.000000e+00 : f32
    %447 = vector.broadcast %cst_76 : f32 to vector<8x128xf32>
    %448 = arith.addf %447, %446 : vector<8x128xf32>
    %449 = arith.divf %447, %448 : vector<8x128xf32>
    %450 = vector.extract_strided_slice %443 {offsets = [0, 128], sizes = [8, 128], strides = [1, 1]} : vector<8x512xf32> to vector<8x128xf32>
    %451 = arith.negf %450 : vector<8x128xf32>
    %452 = math.exp %451 : vector<8x128xf32>
    %cst_77 = arith.constant 1.000000e+00 : f32
    %453 = vector.broadcast %cst_77 : f32 to vector<8x128xf32>
    %454 = arith.addf %453, %452 : vector<8x128xf32>
    %455 = arith.divf %453, %454 : vector<8x128xf32>
    %456 = vector.extract_strided_slice %443 {offsets = [0, 256], sizes = [8, 128], strides = [1, 1]} : vector<8x512xf32> to vector<8x128xf32>
    %457 = math.tanh %456 : vector<8x128xf32>
    %458 = vector.extract_strided_slice %443 {offsets = [0, 384], sizes = [8, 128], strides = [1, 1]} : vector<8x512xf32> to vector<8x128xf32>
    %459 = arith.negf %458 : vector<8x128xf32>
    %460 = math.exp %459 : vector<8x128xf32>
    %cst_78 = arith.constant 1.000000e+00 : f32
    %461 = vector.broadcast %cst_78 : f32 to vector<8x128xf32>
    %462 = arith.addf %461, %460 : vector<8x128xf32>
    %463 = arith.divf %461, %462 : vector<8x128xf32>
    %464 = arith.mulf %455, %435 : vector<8x128xf32>
    %465 = arith.mulf %449, %457 : vector<8x128xf32>
    %466 = arith.addf %464, %465 : vector<8x128xf32>
    %467 = math.tanh %466 : vector<8x128xf32>
    %468 = arith.mulf %463, %467 : vector<8x128xf32>
    %469 = arith.addf %468, %142 : vector<8x128xf32>
    %470 = arith.maximumf %439, %469 : vector<8x128xf32>
    %471 = vector.extract_strided_slice %72 {offsets = [80, 0], sizes = [8, 512], strides = [1, 1]} : vector<96x512xf32> to vector<8x512xf32>
    %472 = arith.truncf %468 : vector<8x128xf32> to vector<8x128xbf16>
    %cst_79 = arith.constant dense<0.000000e+00> : vector<8x512xf32>
    %473 = tpu.matmul %472, %157, %cst_79 {dimension_numbers = #tpu.dot_dimension_numbers<[1], [0], [0], [1], [0, 0, 1, 1], [], []>} : vector<8x128xbf16>, vector<128x512xbf16>, vector<8x512xf32> -> vector<8x512xf32>
    %474 = arith.addf %471, %473 : vector<8x512xf32>
    %475 = vector.extract_strided_slice %474 {offsets = [0, 0], sizes = [8, 128], strides = [1, 1]} : vector<8x512xf32> to vector<8x128xf32>
    %476 = arith.negf %475 : vector<8x128xf32>
    %477 = math.exp %476 : vector<8x128xf32>
    %cst_80 = arith.constant 1.000000e+00 : f32
    %478 = vector.broadcast %cst_80 : f32 to vector<8x128xf32>
    %479 = arith.addf %478, %477 : vector<8x128xf32>
    %480 = arith.divf %478, %479 : vector<8x128xf32>
    %481 = vector.extract_strided_slice %474 {offsets = [0, 128], sizes = [8, 128], strides = [1, 1]} : vector<8x512xf32> to vector<8x128xf32>
    %482 = arith.negf %481 : vector<8x128xf32>
    %483 = math.exp %482 : vector<8x128xf32>
    %cst_81 = arith.constant 1.000000e+00 : f32
    %484 = vector.broadcast %cst_81 : f32 to vector<8x128xf32>
    %485 = arith.addf %484, %483 : vector<8x128xf32>
    %486 = arith.divf %484, %485 : vector<8x128xf32>
    %487 = vector.extract_strided_slice %474 {offsets = [0, 256], sizes = [8, 128], strides = [1, 1]} : vector<8x512xf32> to vector<8x128xf32>
    %488 = math.tanh %487 : vector<8x128xf32>
    %489 = vector.extract_strided_slice %474 {offsets = [0, 384], sizes = [8, 128], strides = [1, 1]} : vector<8x512xf32> to vector<8x128xf32>
    %490 = arith.negf %489 : vector<8x128xf32>
    %491 = math.exp %490 : vector<8x128xf32>
    %cst_82 = arith.constant 1.000000e+00 : f32
    %492 = vector.broadcast %cst_82 : f32 to vector<8x128xf32>
    %493 = arith.addf %492, %491 : vector<8x128xf32>
    %494 = arith.divf %492, %493 : vector<8x128xf32>
    %495 = arith.mulf %486, %466 : vector<8x128xf32>
    %496 = arith.mulf %480, %488 : vector<8x128xf32>
    %497 = arith.addf %495, %496 : vector<8x128xf32>
    %498 = math.tanh %497 : vector<8x128xf32>
    %499 = arith.mulf %494, %498 : vector<8x128xf32>
    %500 = arith.addf %499, %149 : vector<8x128xf32>
    %501 = arith.maximumf %470, %500 : vector<8x128xf32>
    %502 = vector.extract_strided_slice %72 {offsets = [88, 0], sizes = [8, 512], strides = [1, 1]} : vector<96x512xf32> to vector<8x512xf32>
    %503 = arith.truncf %499 : vector<8x128xf32> to vector<8x128xbf16>
    %cst_83 = arith.constant dense<0.000000e+00> : vector<8x512xf32>
    %504 = tpu.matmul %503, %157, %cst_83 {dimension_numbers = #tpu.dot_dimension_numbers<[1], [0], [0], [1], [0, 0, 1, 1], [], []>} : vector<8x128xbf16>, vector<128x512xbf16>, vector<8x512xf32> -> vector<8x512xf32>
    %505 = arith.addf %502, %504 : vector<8x512xf32>
    %506 = vector.extract_strided_slice %505 {offsets = [0, 0], sizes = [8, 128], strides = [1, 1]} : vector<8x512xf32> to vector<8x128xf32>
    %507 = arith.negf %506 : vector<8x128xf32>
    %508 = math.exp %507 : vector<8x128xf32>
    %cst_84 = arith.constant 1.000000e+00 : f32
    %509 = vector.broadcast %cst_84 : f32 to vector<8x128xf32>
    %510 = arith.addf %509, %508 : vector<8x128xf32>
    %511 = arith.divf %509, %510 : vector<8x128xf32>
    %512 = vector.extract_strided_slice %505 {offsets = [0, 128], sizes = [8, 128], strides = [1, 1]} : vector<8x512xf32> to vector<8x128xf32>
    %513 = arith.negf %512 : vector<8x128xf32>
    %514 = math.exp %513 : vector<8x128xf32>
    %cst_85 = arith.constant 1.000000e+00 : f32
    %515 = vector.broadcast %cst_85 : f32 to vector<8x128xf32>
    %516 = arith.addf %515, %514 : vector<8x128xf32>
    %517 = arith.divf %515, %516 : vector<8x128xf32>
    %518 = vector.extract_strided_slice %505 {offsets = [0, 256], sizes = [8, 128], strides = [1, 1]} : vector<8x512xf32> to vector<8x128xf32>
    %519 = math.tanh %518 : vector<8x128xf32>
    %520 = vector.extract_strided_slice %505 {offsets = [0, 384], sizes = [8, 128], strides = [1, 1]} : vector<8x512xf32> to vector<8x128xf32>
    %521 = arith.negf %520 : vector<8x128xf32>
    %522 = math.exp %521 : vector<8x128xf32>
    %cst_86 = arith.constant 1.000000e+00 : f32
    %523 = vector.broadcast %cst_86 : f32 to vector<8x128xf32>
    %524 = arith.addf %523, %522 : vector<8x128xf32>
    %525 = arith.divf %523, %524 : vector<8x128xf32>
    %526 = arith.mulf %517, %497 : vector<8x128xf32>
    %527 = arith.mulf %511, %519 : vector<8x128xf32>
    %528 = arith.addf %526, %527 : vector<8x128xf32>
    %529 = math.tanh %528 : vector<8x128xf32>
    %530 = arith.mulf %525, %529 : vector<8x128xf32>
    %531 = arith.addf %530, %156 : vector<8x128xf32>
    %532 = arith.maximumf %501, %531 : vector<8x128xf32>
    %cst_87 = arith.constant dense<-2147483648> : vector<1xi32>
    %533 = vector.multi_reduction <maxsi>, %1, %cst_87 [0] : vector<8x1xi32> to vector<1xi32>
    %534 = vector.shape_cast %533 : vector<1xi32> to vector<1x1xi32>
    %535 = vector.broadcast %534 : vector<1x1xi32> to vector<8x1xi32>
    %536 = arith.cmpi slt, %1, %535 : vector<8x1xi32>
    %cst_88 = arith.constant 0.000000e+00 : f32
    %cst_89 = arith.constant -1.000000e+30 : f32
    %537 = vector.broadcast %cst_88 : f32 to vector<8x1xf32>
    %538 = vector.broadcast %cst_89 : f32 to vector<8x1xf32>
    %539 = arith.select %536, %537, %538 : vector<8x1xi1>, vector<8x1xf32>
    %540 = vector.shape_cast %539 : vector<8x1xf32> to vector<8x1xf32>
    %541 = vector.broadcast %540 : vector<8x1xf32> to vector<8x128xf32>
    %542 = arith.maximumf %532, %541 : vector<8x128xf32>
    %c0_90 = arith.constant 0 : index
    %c0_91 = arith.constant 0 : index
    %543 = vector.load %arg7[%c0_90, %c0_91] : memref<128x4xf32, #tpu.memory_space<vmem>>, vector<128x4xf32>
    %cst_92 = arith.constant dense<0.000000e+00> : vector<8x4xf32>
    %544 = tpu.matmul %542, %543, %cst_92 {dimension_numbers = #tpu.dot_dimension_numbers<[1], [0], [0], [1], [0, 0, 1, 1], [], []>} : vector<8x128xf32>, vector<128x4xf32>, vector<8x4xf32> -> vector<8x4xf32>
    %c0_93 = arith.constant 0 : index
    %c0_94 = arith.constant 0 : index
    %545 = vector.load %arg8[%c0_93, %c0_94] : memref<1x4xf32, #tpu.memory_space<vmem>>, vector<1x4xf32>
    %546 = vector.broadcast %545 : vector<1x4xf32> to vector<8x4xf32>
    %547 = arith.addf %544, %546 : vector<8x4xf32>
    %548 = arith.negf %547 : vector<8x4xf32>
    %549 = math.exp %548 : vector<8x4xf32>
    %cst_95 = arith.constant 1.000000e+00 : f32
    %550 = vector.broadcast %cst_95 : f32 to vector<8x4xf32>
    %551 = arith.addf %550, %549 : vector<8x4xf32>
    %552 = arith.divf %550, %551 : vector<8x4xf32>
    %c0_96 = arith.constant 0 : index
    %c0_97 = arith.constant 0 : index
    %553 = vector.load %arg9[%c0_96, %c0_97] : memref<8x4xf32, #tpu.memory_space<vmem>>, vector<8x4xf32>
    tpu.vector_store %arg9[%c0_96, %c0_97], %552 {strides = array<i32>} : memref<8x4xf32, #tpu.memory_space<vmem>>, vector<8x4xf32>,
    return
  }
  func.func @transform_0(%arg0: i32) -> (i32, i32) {
    %c0_i32 = arith.constant 0 : i32
    %c0_i32_0 = arith.constant 0 : i32
    %c0_i32_1 = arith.constant 0 : i32
    return %c0_i32, %c0_i32_0 : i32, i32
  }
  func.func @transform_1(%arg0: i32) -> (i32, i32) {
    %c0_i32 = arith.constant 0 : i32
    %c0_i32_0 = arith.constant 0 : i32
    %c0_i32_1 = arith.constant 0 : i32
    return %c0_i32, %c0_i32_0 : i32, i32
  }
  func.func @transform_2(%arg0: i32) -> (i32, i32) {
    %c0_i32 = arith.constant 0 : i32
    %c0_i32_0 = arith.constant 0 : i32
    %c0_i32_1 = arith.constant 0 : i32
    return %c0_i32, %c0_i32_0 : i32, i32
  }
  func.func @transform_3(%arg0: i32) -> (i32, i32) {
    %c0_i32 = arith.constant 0 : i32
    %c0_i32_0 = arith.constant 0 : i32
    %c0_i32_1 = arith.constant 0 : i32
    return %c0_i32, %c0_i32_0 : i32, i32
  }
  func.func @transform_4(%arg0: i32) -> (i32, i32) {
    %c0_i32 = arith.constant 0 : i32
    %c0_i32_0 = arith.constant 0 : i32
    %c0_i32_1 = arith.constant 0 : i32
    return %c0_i32, %c0_i32_0 : i32, i32
  }
  func.func @transform_5(%arg0: i32) -> (i32, i32) {
    %c0_i32 = arith.constant 0 : i32
    %c0_i32_0 = arith.constant 0 : i32
    %c0_i32_1 = arith.constant 0 : i32
    return %c0_i32, %c0_i32_0 : i32, i32
  }
  func.func @transform_6(%arg0: i32) -> (i32, i32) {
    %c0_i32 = arith.constant 0 : i32
    %c0_i32_0 = arith.constant 0 : i32
    %c0_i32_1 = arith.constant 0 : i32
    return %c0_i32, %c0_i32_0 : i32, i32
  }
  func.func @transform_7(%arg0: i32) -> (i32, i32) {
    %c0_i32 = arith.constant 0 : i32
    %c0_i32_0 = arith.constant 0 : i32
    %c0_i32_1 = arith.constant 0 : i32
    return %c0_i32, %c0_i32_0 : i32, i32
  }
  func.func @transform_8(%arg0: i32) -> (i32, i32) {
    %c0_i32 = arith.constant 0 : i32
    %c0_i32_0 = arith.constant 0 : i32
    %c0_i32_1 = arith.constant 0 : i32
    return %c0_i32, %c0_i32_0 : i32, i32
  }
}

</mosaic_0001>

<llo_original>
// kernel: rnn_forward.1
$region0: #{rnn_forward.1}
  #allocation0 [shape = 'u32[]', space=smem, size = 0x4, offset = 0x4, fixed_abs, tag = 'smem constant byte address 0x4 - core index']
  #allocation1 [shape = 'u32[144,128]{1,0:T(1,128)}', space=vmem, size = 0x12000, scoped, tag = 'internal scratch']
  %s0 = inlined_call_operand.vmem [shape: s32[8,12], index: 0, kind: input, shape index: {}]
  %s1 = inlined_call_operand.vmem [shape: s32[8,1], index: 1, kind: input, shape index: {}]
  %s2 = inlined_call_operand.vmem [shape: bf16[50,32], index: 2, kind: input, shape index: {}]
  %s3 = inlined_call_operand.vmem [shape: bf16[32,512], index: 3, kind: input, shape index: {}]
  %s4 = inlined_call_operand.hbm [shape: bf16[128,512], index: 4, kind: input, shape index: {}]
  %s5 = inlined_call_operand.vmem [shape: f32[1,512], index: 5, kind: input, shape index: {}]
  %s6 = inlined_call_operand.vmem [shape: f32[128,4], index: 6, kind: input, shape index: {}]
  %s7 = inlined_call_operand.vmem [shape: f32[1,4], index: 7, kind: input, shape index: {}]
  %s8 = inlined_call_operand.vmem [shape: f32[8,4], index: 8, kind: output, shape index: {}]
  %s9 = sld [smem:[#allocation0]]
  $region46: #{rnn_forward.1} parent=0
    _
  %s11 = ssub.s32 1, %s9
  %s12 = scalar_select 0, %s11, %s9
  $region1: #{rnn_forward.1} parent=0
    #allocation2 [shape = 'u8[131072]{0}', space=vmem, size = 0x20000, scoped, tag = 'input window, operand 4, single buffered']
    #allocation3 [shape = 's32[1]{0}', space=sflag, size = 0x4, scoped, tag = 'scoped memory for rnn_forward.1']
    %13 = vsyncpa [#allocation3], 0
    // Predicated region
    $region2: #{rnn_forward.1} parent=1 // pred_check
      _
    $region3: #{rnn_forward.1} parent=1 // pred_check_branch
      %15 = sbr.rel (0) target = $region5
    $region4: #{rnn_forward.1} parent=1 // pred_region
      _
    $region5: #{rnn_forward.1} parent=1 // pred_fallthru
      _
    // Predicated region
    $region6: #{rnn_forward.1} parent=1 // pred_check
      _
    $region7: #{rnn_forward.1} parent=1 // pred_check_branch
      %17 = sbr.rel (0) target = $region9
    $region8: #{rnn_forward.1} parent=1 // pred_region
      _
    $region9: #{rnn_forward.1} parent=1 // pred_fallthru
      _
    // Predicated region
    $region10: #{rnn_forward.1} parent=1 // pred_check
      _
    $region11: #{rnn_forward.1} parent=1 // pred_check_branch
      %19 = sbr.rel (0) target = $region13
    $region12: #{rnn_forward.1} parent=1 // pred_region
      _
    $region13: #{rnn_forward.1} parent=1 // pred_fallthru
      _
    // Predicated region
    $region14: #{rnn_forward.1} parent=1 // pred_check
      _
    $region15: #{rnn_forward.1} parent=1 // pred_check_branch
      %21 = sbr.rel (0) target = $region17
    $region16: #{rnn_forward.1} parent=1 // pred_region
      _
    $region17: #{rnn_forward.1} parent=1 // pred_fallthru
      _
    // Predicated region
    $region18: #{rnn_forward.1} parent=1 // pred_check
      _
    $region19: #{rnn_forward.1} parent=1 // pred_check_branch
      %23 = sbr.rel (0) target = $region21
    $region20: #{rnn_forward.1} parent=1 // pred_region
      %s25 = ssub.s32 4096, 4096
      %26 = vsyncadd [#allocation3], %s25
      %s27 = sshll.u32 [#allocation2], 4
      %s28 = int_to_ptr.vmem [resolvable:$true] %s27
      %33 = dma.hbm_to_vmem [thread:$0]  %s4, 4096, %s28, [#allocation3], 256, 256, 16
    $region21: #{rnn_forward.1} parent=1 // pred_fallthru
      _
    // Predicated region
    $region22: #{rnn_forward.1} parent=1 // pred_check
      _
    $region23: #{rnn_forward.1} parent=1 // pred_check_branch
      %35 = sbr.rel (0) target = $region25
    $region24: #{rnn_forward.1} parent=1 // pred_region
      _
    $region25: #{rnn_forward.1} parent=1 // pred_fallthru
      _
    // Predicated region
    $region26: #{rnn_forward.1} parent=1 // pred_check
      _
    $region27: #{rnn_forward.1} parent=1 // pred_check_branch
      %37 = sbr.rel (0) target = $region29
    $region28: #{rnn_forward.1} parent=1 // pred_region
      _
    $region29: #{rnn_forward.1} parent=1 // pred_fallthru
      _
    // Predicated region
    $region30: #{rnn_forward.1} parent=1 // pred_check
      _
    $region31: #{rnn_forward.1} parent=1 // pred_check_branch
      %39 = sbr.rel (0) target = $region33
    $region32: #{rnn_forward.1} parent=1 // pred_region
      _
    $region33: #{rnn_forward.1} parent=1 // pred_fallthru
      _
    // Predicated region
    $region34: #{rnn_forward.1} parent=1 // pred_check
      _
    $region35: #{rnn_forward.1} parent=1 // pred_check_branch
      %41 = sbr.rel (0) target = $region37
    $region36: #{rnn_forward.1} parent=1 // pred_region
      %42 = dma.done [#allocation3], 4096
    $region37: #{rnn_forward.1} parent=1 // pred_fallthru
      _
    %v44 = vld [vmem:[%s0] sm:$0xff]
    %v45 = vld [vmem:[%s1] sm:$0xff]
    %v46 = vlaneseq
    %v47 = vand.u32 %v46, 127
    %48 = vset.pattern.permute.xlu0 0
    %49 = vperm.xlu0 %48, %v44
    %v50 = vpop.permute.xlu0 %49
    %vm51 = vcmp.eq.s32.totalorder %v50, %v47
    %v52 = vsel %vm51, 1, 0
    %v53 = vcvt.s32.f32 %v52
    %54 = vset.pattern.permute.xlu0 1
    %55 = vperm.xlu0 %54, %v44
    %v56 = vpop.permute.xlu0 %55
    %vm57 = vcmp.eq.s32.totalorder %v56, %v47
    %v58 = vsel %vm57, 1, 0
    %v59 = vcvt.s32.f32 %v58
    %60 = vset.pattern.permute.xlu0 2
    %61 = vperm.xlu0 %60, %v44
    %v62 = vpop.permute.xlu0 %61
    %vm63 = vcmp.eq.s32.totalorder %v62, %v47
    %v64 = vsel %vm63, 1, 0
    %v65 = vcvt.s32.f32 %v64
    %66 = vset.pattern.permute.xlu0 3
    %67 = vperm.xlu0 %66, %v44
    %v68 = vpop.permute.xlu0 %67
    %vm69 = vcmp.eq.s32.totalorder %v68, %v47
    %v70 = vsel %vm69, 1, 0
    %v71 = vcvt.s32.f32 %v70
    %72 = vset.pattern.permute.xlu0 4
    %73 = vperm.xlu0 %72, %v44
    %v74 = vpop.permute.xlu0 %73
    %vm75 = vcmp.eq.s32.totalorder %v74, %v47
    %v76 = vsel %vm75, 1, 0
    %v77 = vcvt.s32.f32 %v76
    %78 = vset.pattern.permute.xlu0 5
    %79 = vperm.xlu0 %78, %v44
    %v80 = vpop.permute.xlu0 %79
    %vm81 = vcmp.eq.s32.totalorder %v80, %v47
    %v82 = vsel %vm81, 1, 0
    %v83 = vcvt.s32.f32 %v82
    %84 = vset.pattern.permute.xlu0 6
    %85 = vperm.xlu0 %84, %v44
    %v86 = vpop.permute.xlu0 %85
    %vm87 = vcmp.eq.s32.totalorder %v86, %v47
    %v88 = vsel %vm87, 1, 0
    %v89 = vcvt.s32.f32 %v88
    %90 = vset.pattern.permute.xlu0 7
    %91 = vperm.xlu0 %90, %v44
    %v92 = vpop.permute.xlu0 %91
    %vm93 = vcmp.eq.s32.totalorder %v92, %v47
    %v94 = vsel %vm93, 1, 0
    %v95 = vcvt.s32.f32 %v94
    %96 = vset.pattern.permute.xlu0 8
    %97 = vperm.xlu0 %96, %v44
    %v98 = vpop.permute.xlu0 %97
    %vm99 = vcmp.eq.s32.totalorder %v98, %v47
    %v100 = vsel %vm99, 1, 0
    %v101 = vcvt.s32.f32 %v100
    %102 = vset.pattern.permute.xlu0 9
    %103 = vperm.xlu0 %102, %v44
    %v104 = vpop.permute.xlu0 %103
    %vm105 = vcmp.eq.s32.totalorder %v104, %v47
    %v106 = vsel %vm105, 1, 0
    %v107 = vcvt.s32.f32 %v106
    %108 = vset.pattern.permute.xlu0 10
    %109 = vperm.xlu0 %108, %v44
    %v110 = vpop.permute.xlu0 %109
    %vm111 = vcmp.eq.s32.totalorder %v110, %v47
    %v112 = vsel %vm111, 1, 0
    %v113 = vcvt.s32.f32 %v112
    %114 = vset.pattern.permute.xlu0 11
    %115 = vperm.xlu0 %114, %v44
    %v116 = vpop.permute.xlu0 %115
    %vm117 = vcmp.eq.s32.totalorder %v116, %v47
    %v118 = vsel %vm117, 1, 0
    %v119 = vcvt.s32.f32 %v118
    %v120 = vpack.c.bf16 %v59, %v53
    %v121 = vpack.c.bf16 %v71, %v65
    %v122 = vpack.c.bf16 %v83, %v77
    %v123 = vpack.c.bf16 %v95, %v89
    %v124 = vpack.c.bf16 %v107, %v101
    %v125 = vpack.c.bf16 %v119, %v113
    %v126 = vld [vmem:[%s2] sm:$0xf]
    %v127 = vld [vmem:[%s2 + $0x4] sm:$0xf]
    %v128 = vld [vmem:[%s2 + $0x8] sm:$0xf]
    %v129 = vld [vmem:[%s2 + $0xc] sm:$0xf]
    %v130 = vld [vmem:[%s2 + $0x10] sm:$0xf]
    %v131 = vld [vmem:[%s2 + $0x14] sm:$0xf]
    %v132 = vld [vmem:[%s2 + $0x18] sm:$0x1]
    %v140 = vunpack.c.l.b16 %v126
    %v141 = vunpack.c.l.b16 %v127
    %v142 = vunpack.c.l.b16 %v128
    %v143 = vunpack.c.l.b16 %v129
    %v144 = vunpack.c.l.b16 %v130
    %v145 = vunpack.c.l.b16 %v131
    %v146 = vunpack.c.l.b16 %v132
    %v147 = vpack.c.b16 %v141, %v140
    %v148 = vpack.c.b16 %v143, %v142
    %v149 = vpack.c.b16 %v145, %v144
    %v150 = vpack.c.b16 %v146, %v146
    %vm154 = vcmask 408576
    %v156 = vsel %vm154, %v120, 0
    %v159 = vsel %vm154, %v121, 0
    %v162 = vsel %vm154, %v122, 0
    %v165 = vsel %vm154, %v123, 0
    %v168 = vsel %vm154, %v124, 0
    %v171 = vsel %vm154, %v125, 0
    %vm173 = vcmask 1040384
    %v175 = vsel %vm173, %v150, 0
    %177 = vmatprep.subr.bf16.mxu0 0
    %178 = vmatpush1.bf16.msra.mxu0 %v147
    %179 = vmatprep.subr.bf16.mxu0 0
    %180 = vmatpush1.bf16.msra.mxu0 %v148
    %181 = vmatprep.subr.bf16.mxu0 0
    %182 = vmatpush1.bf16.msra.mxu0 %v149
    %183 = vmatprep.subr.bf16.mxu0 0
    %184 = vmatpush1.bf16.msra.mxu0 %v175
    %185 = vmatprep.subr.bf16.mxu0 0
    %186 = vmatpush1.bf16.msra.mxu0 0
    %187 = vmatprep.subr.bf16.mxu0 0
    %188 = vmatpush1.bf16.msra.mxu0 0
    %189 = vmatprep.subr.bf16.mxu0 0
    %190 = vmatpush1.bf16.msra.mxu0 0
    %191 = vmatprep.subr.bf16.mxu0 0
    %192 = vmatpush1.bf16.msra.mxu0 0
    %193 = vmatprep.subr.bf16.mxu0 0
    %194 = vmatpush1.bf16.msra.mxu0 0
    %195 = vmatprep.subr.bf16.mxu0 0
    %196 = vmatpush1.bf16.msra.mxu0 0
    %197 = vmatprep.subr.bf16.mxu0 0
    %198 = vmatpush1.bf16.msra.mxu0 0
    %199 = vmatprep.subr.bf16.mxu0 0
    %200 = vmatpush1.bf16.msra.mxu0 0
    %201 = vmatprep.subr.bf16.mxu0 0
    %202 = vmatpush1.bf16.msra.mxu0 0
    %203 = vmatprep.subr.bf16.mxu0 0
    %204 = vmatpush1.bf16.msra.mxu0 0
    %205 = vmatprep.subr.bf16.mxu0 0
    %206 = vmatpush1.bf16.msra.mxu0 0
    %207 = vmatprep.subr.bf16.mxu0 0
    %208 = vmatpush1.bf16.msra.mxu0 0
    %209 = vmatprep.mubr.bf16.mxu0 0
    %210 = vmatmul.mubr.bf16.gmra.mrb[0].mxu0 %v156
    %v211 = vpop.f32.mrb[0].mxu0
    %v212 = vadd.f32 0.0, %v211
    %v213 = vpop.f32.mrb[0].mxu0
    %v214 = vpop.f32.mrb[0].mxu0
    %v215 = vadd.f32 0.0, %v214
    %v216 = vpop.f32.mrb[0].mxu0
    %217 = vmatprep.mubr.bf16.mxu0 0
    %218 = vmatmul.mubr.bf16.gmra.mrb[0].mxu0 %v159
    %v219 = vpop.f32.mrb[0].mxu0
    %v220 = vadd.f32 0.0, %v219
    %v221 = vpop.f32.mrb[0].mxu0
    %v222 = vpop.f32.mrb[0].mxu0
    %v223 = vadd.f32 0.0, %v222
    %v224 = vpop.f32.mrb[0].mxu0
    %225 = vmatprep.mubr.bf16.mxu0 0
    %226 = vmatmul.mubr.bf16.gmra.mrb[0].mxu0 %v162
    %v227 = vpop.f32.mrb[0].mxu0
    %v228 = vadd.f32 0.0, %v227
    %v229 = vpop.f32.mrb[0].mxu0
    %v230 = vpop.f32.mrb[0].mxu0
    %v231 = vadd.f32 0.0, %v230
    %v232 = vpop.f32.mrb[0].mxu0
    %233 = vmatprep.mubr.bf16.mxu0 0
    %234 = vmatmul.mubr.bf16.gmra.mrb[0].mxu0 %v165
    %v235 = vpop.f32.mrb[0].mxu0
    %v236 = vadd.f32 0.0, %v235
    %v237 = vpop.f32.mrb[0].mxu0
    %v238 = vpop.f32.mrb[0].mxu0
    %v239 = vadd.f32 0.0, %v238
    %v240 = vpop.f32.mrb[0].mxu0
    %241 = vmatprep.mubr.bf16.mxu0 0
    %242 = vmatmul.mubr.bf16.gmra.mrb[0].mxu0 %v168
    %v243 = vpop.f32.mrb[0].mxu0
    %v244 = vadd.f32 0.0, %v243
    %v245 = vpop.f32.mrb[0].mxu0
    %v246 = vpop.f32.mrb[0].mxu0
    %v247 = vadd.f32 0.0, %v246
    %v248 = vpop.f32.mrb[0].mxu0
    %249 = vmatprep.mubr.bf16.mxu0 0
    %250 = vmatmul.mubr.bf16.gmra.mrb[0].mxu0 %v171
    %v251 = vpop.f32.mrb[0].mxu0
    %v252 = vadd.f32 0.0, %v251
    %v253 = vpop.f32.mrb[0].mxu0
    %v254 = vpop.f32.mrb[0].mxu0
    %v255 = vadd.f32 0.0, %v254
    %v256 = vpop.f32.mrb[0].mxu0
    %257 = vdwg.mxu0
    %v258 = vpack.c.bf16 %v215, %v212
    %v259 = vpack.c.bf16 %v223, %v220
    %v260 = vpack.c.bf16 %v231, %v228
    %v261 = vpack.c.bf16 %v239, %v236
    %v262 = vpack.c.bf16 %v247, %v244
    %v263 = vpack.c.bf16 %v255, %v252
    %v264 = vld [vmem:[%s3] sm:$0xff]
    %v265 = vld [vmem:[%s3 + $0x8] sm:$0xff]
    %v266 = vld [vmem:[%s3 + $0x10] sm:$0xff]
    %v267 = vld [vmem:[%s3 + $0x18] sm:$0xff]
    %v268 = vld [vmem:[%s3 + $0x20] sm:$0xff]
    %v269 = vld [vmem:[%s3 + $0x28] sm:$0xff]
    %v270 = vld [vmem:[%s3 + $0x30] sm:$0xff]
    %v271 = vld [vmem:[%s3 + $0x38] sm:$0xff]
    %v272 = vld [vmem:[%s5] sm:$0xf]
    %v274 = vlaneseq
    %v275 = vshrl.u32 %v274, 7
    %v276 = vsub.s32 0, %v275
    %v277 = vrot.slane %v272, %v276
    %v278 = vlaneseq
    %v279 = vshrl.u32 %v278, 7
    %v280 = vsub.s32 1, %v279
    %v281 = vrot.slane %v272, %v280
    %v282 = vlaneseq
    %v283 = vshrl.u32 %v282, 7
    %v284 = vsub.s32 2, %v283
    %v285 = vrot.slane %v272, %v284
    %v286 = vlaneseq
    %v287 = vshrl.u32 %v286, 7
    %v288 = vsub.s32 3, %v287
    %v289 = vrot.slane %v272, %v288
    %v302 = vunpack.c.l.b16 %v264
    %v303 = vunpack.c.h.b16 %v264
    %v304 = vunpack.c.l.b16 %v265
    %v305 = vunpack.c.h.b16 %v265
    %v306 = vunpack.c.l.b16 %v266
    %v307 = vunpack.c.h.b16 %v266
    %v308 = vunpack.c.l.b16 %v267
    %v309 = vunpack.c.h.b16 %v267
    %v310 = vunpack.c.l.b16 %v268
    %v311 = vunpack.c.h.b16 %v268
    %v312 = vunpack.c.l.b16 %v269
    %v313 = vunpack.c.h.b16 %v269
    %v314 = vunpack.c.l.b16 %v270
    %v315 = vunpack.c.h.b16 %v270
    %v316 = vunpack.c.l.b16 %v271
    %v317 = vunpack.c.h.b16 %v271
    %v318 = vpack.c.b16 %v306, %v302
    %v319 = vpack.c.b16 %v307, %v303
    %v320 = vpack.c.b16 %v308, %v304
    %v321 = vpack.c.b16 %v309, %v305
    %v322 = vpack.c.b16 %v314, %v310
    %v323 = vpack.c.b16 %v315, %v311
    %v324 = vpack.c.b16 %v316, %v312
    %v325 = vpack.c.b16 %v317, %v313
    %vm334 = vcmask 261120
    %v336 = vsel %vm334, %v258, 0
    %v339 = vsel %vm334, %v259, 0
    %v342 = vsel %vm334, %v260, 0
    %v345 = vsel %vm334, %v261, 0
    %v348 = vsel %vm334, %v262, 0
    %v351 = vsel %vm334, %v263, 0
    %353 = vmatprep.subr.bf16.mxu0 %v319
    %354 = vmatpush1.bf16.msra.mxu0 %v318
    %355 = vmatprep.subr.bf16.mxu0 %v323
    %356 = vmatpush1.bf16.msra.mxu0 %v322
    %357 = vmatprep.subr.bf16.mxu0 0
    %358 = vmatpush1.bf16.msra.mxu0 0
    %359 = vmatprep.subr.bf16.mxu0 0
    %360 = vmatpush1.bf16.msra.mxu0 0
    %361 = vmatprep.subr.bf16.mxu0 0
    %362 = vmatpush1.bf16.msra.mxu0 0
    %363 = vmatprep.subr.bf16.mxu0 0
    %364 = vmatpush1.bf16.msra.mxu0 0
    %365 = vmatprep.subr.bf16.mxu0 0
    %366 = vmatpush1.bf16.msra.mxu0 0
    %367 = vmatprep.subr.bf16.mxu0 0
    %368 = vmatpush1.bf16.msra.mxu0 0
    %369 = vmatprep.subr.bf16.mxu0 0
    %370 = vmatpush1.bf16.msra.mxu0 0
    %371 = vmatprep.subr.bf16.mxu0 0
    %372 = vmatpush1.bf16.msra.mxu0 0
    %373 = vmatprep.subr.bf16.mxu0 0
    %374 = vmatpush1.bf16.msra.mxu0 0
    %375 = vmatprep.subr.bf16.mxu0 0
    %376 = vmatpush1.bf16.msra.mxu0 0
    %377 = vmatprep.subr.bf16.mxu0 0
    %378 = vmatpush1.bf16.msra.mxu0 0
    %379 = vmatprep.subr.bf16.mxu0 0
    %380 = vmatpush1.bf16.msra.mxu0 0
    %381 = vmatprep.subr.bf16.mxu0 0
    %382 = vmatpush1.bf16.msra.mxu0 0
    %383 = vmatprep.subr.bf16.mxu0 0
    %384 = vmatpush1.bf16.msra.mxu0 0
    %385 = vmatprep.mubr.bf16.mxu0 0
    %386 = vmatmul.mubr.bf16.gmra.mrb[0].mxu0 %v336
    %v387 = vpop.f32.mrb[0].mxu0
    %v388 = vadd.f32 %v277, %v387
    %v389 = vpop.f32.mrb[0].mxu0
    %v390 = vadd.f32 %v281, %v389
    %v391 = vpop.f32.mrb[0].mxu0
    %v392 = vadd.f32 %v277, %v391
    %v393 = vpop.f32.mrb[0].mxu0
    %v394 = vadd.f32 %v281, %v393
    %395 = vmatprep.mubr.bf16.mxu0 0
    %396 = vmatmul.mubr.bf16.gmra.mrb[0].mxu0 %v339
    %v397 = vpop.f32.mrb[0].mxu0
    %v398 = vadd.f32 %v277, %v397
    %v399 = vpop.f32.mrb[0].mxu0
    %v400 = vadd.f32 %v281, %v399
    %v401 = vpop.f32.mrb[0].mxu0
    %v402 = vadd.f32 %v277, %v401
    %v403 = vpop.f32.mrb[0].mxu0
    %v404 = vadd.f32 %v281, %v403
    %405 = vmatprep.mubr.bf16.mxu0 0
    %406 = vmatmul.mubr.bf16.gmra.mrb[0].mxu0 %v342
    %v407 = vpop.f32.mrb[0].mxu0
    %v408 = vadd.f32 %v277, %v407
    %v409 = vpop.f32.mrb[0].mxu0
    %v410 = vadd.f32 %v281, %v409
    %v411 = vpop.f32.mrb[0].mxu0
    %v412 = vadd.f32 %v277, %v411
    %v413 = vpop.f32.mrb[0].mxu0
    %v414 = vadd.f32 %v281, %v413
    %415 = vmatprep.mubr.bf16.mxu0 0
    %416 = vmatmul.mubr.bf16.gmra.mrb[0].mxu0 %v345
    %v417 = vpop.f32.mrb[0].mxu0
    %v418 = vadd.f32 %v277, %v417
    %v419 = vpop.f32.mrb[0].mxu0
    %v420 = vadd.f32 %v281, %v419
    %v421 = vpop.f32.mrb[0].mxu0
    %v422 = vadd.f32 %v277, %v421
    %v423 = vpop.f32.mrb[0].mxu0
    %v424 = vadd.f32 %v281, %v423
    %425 = vmatprep.mubr.bf16.mxu0 0
    %426 = vmatmul.mubr.bf16.gmra.mrb[0].mxu0 %v348
    %v427 = vpop.f32.mrb[0].mxu0
    %v428 = vadd.f32 %v277, %v427
    %v429 = vpop.f32.mrb[0].mxu0
    %v430 = vadd.f32 %v281, %v429
    %v431 = vpop.f32.mrb[0].mxu0
    %v432 = vadd.f32 %v277, %v431
    %v433 = vpop.f32.mrb[0].mxu0
    %v434 = vadd.f32 %v281, %v433
    %435 = vmatprep.mubr.bf16.mxu0 0
    %436 = vmatmul.mubr.bf16.gmra.mrb[0].mxu0 %v351
    %v437 = vpop.f32.mrb[0].mxu0
    %v438 = vadd.f32 %v277, %v437
    %v439 = vpop.f32.mrb[0].mxu0
    %v440 = vadd.f32 %v281, %v439
    %v441 = vpop.f32.mrb[0].mxu0
    %v442 = vadd.f32 %v277, %v441
    %v443 = vpop.f32.mrb[0].mxu0
    %v444 = vadd.f32 %v281, %v443
    %445 = vdwg.mxu0
    %446 = vmatprep.subr.bf16.mxu0 %v321
    %447 = vmatpush1.bf16.msra.mxu0 %v320
    %448 = vmatprep.subr.bf16.mxu0 %v325
    %449 = vmatpush1.bf16.msra.mxu0 %v324
    %450 = vmatprep.subr.bf16.mxu0 0
    %451 = vmatpush1.bf16.msra.mxu0 0
    %452 = vmatprep.subr.bf16.mxu0 0
    %453 = vmatpush1.bf16.msra.mxu0 0
    %454 = vmatprep.subr.bf16.mxu0 0
    %455 = vmatpush1.bf16.msra.mxu0 0
    %456 = vmatprep.subr.bf16.mxu0 0
    %457 = vmatpush1.bf16.msra.mxu0 0
    %458 = vmatprep.subr.bf16.mxu0 0
    %459 = vmatpush1.bf16.msra.mxu0 0
    %460 = vmatprep.subr.bf16.mxu0 0
    %461 = vmatpush1.bf16.msra.mxu0 0
    %462 = vmatprep.subr.bf16.mxu0 0
    %463 = vmatpush1.bf16.msra.mxu0 0
    %464 = vmatprep.subr.bf16.mxu0 0
    %465 = vmatpush1.bf16.msra.mxu0 0
    %466 = vmatprep.subr.bf16.mxu0 0
    %467 = vmatpush1.bf16.msra.mxu0 0
    %468 = vmatprep.subr.bf16.mxu0 0
    %469 = vmatpush1.bf16.msra.mxu0 0
    %470 = vmatprep.subr.bf16.mxu0 0
    %471 = vmatpush1.bf16.msra.mxu0 0
    %472 = vmatprep.subr.bf16.mxu0 0
    %473 = vmatpush1.bf16.msra.mxu0 0
    %474 = vmatprep.subr.bf16.mxu0 0
    %475 = vmatpush1.bf16.msra.mxu0 0
    %476 = vmatprep.subr.bf16.mxu0 0
    %477 = vmatpush1.bf16.msra.mxu0 0
    %478 = vmatprep.mubr.bf16.mxu0 0
    %479 = vmatmul.mubr.bf16.gmra.mrb[0].mxu0 %v336
    %v480 = vpop.f32.mrb[0].mxu0
    %v481 = vadd.f32 %v285, %v480
    %v482 = vpop.f32.mrb[0].mxu0
    %v483 = vadd.f32 %v289, %v482
    %v484 = vpop.f32.mrb[0].mxu0
    %v485 = vadd.f32 %v285, %v484
    %v486 = vpop.f32.mrb[0].mxu0
    %v487 = vadd.f32 %v289, %v486
    %488 = vmatprep.mubr.bf16.mxu0 0
    %489 = vmatmul.mubr.bf16.gmra.mrb[0].mxu0 %v339
    %v490 = vpop.f32.mrb[0].mxu0
    %v491 = vadd.f32 %v285, %v490
    %v492 = vpop.f32.mrb[0].mxu0
    %v493 = vadd.f32 %v289, %v492
    %v494 = vpop.f32.mrb[0].mxu0
    %v495 = vadd.f32 %v285, %v494
    %v496 = vpop.f32.mrb[0].mxu0
    %v497 = vadd.f32 %v289, %v496
    %498 = vmatprep.mubr.bf16.mxu0 0
    %499 = vmatmul.mubr.bf16.gmra.mrb[0].mxu0 %v342
    %v500 = vpop.f32.mrb[0].mxu0
    %v501 = vadd.f32 %v285, %v500
    %v502 = vpop.f32.mrb[0].mxu0
    %v503 = vadd.f32 %v289, %v502
    %v504 = vpop.f32.mrb[0].mxu0
    %v505 = vadd.f32 %v285, %v504
    %v506 = vpop.f32.mrb[0].mxu0
    %v507 = vadd.f32 %v289, %v506
    %508 = vmatprep.mubr.bf16.mxu0 0
    %509 = vmatmul.mubr.bf16.gmra.mrb[0].mxu0 %v345
    %v510 = vpop.f32.mrb[0].mxu0
    %v511 = vadd.f32 %v285, %v510
    %v512 = vpop.f32.mrb[0].mxu0
    %v513 = vadd.f32 %v289, %v512
    %v514 = vpop.f32.mrb[0].mxu0
    %v515 = vadd.f32 %v285, %v514
    %v516 = vpop.f32.mrb[0].mxu0
    %v517 = vadd.f32 %v289, %v516
    %518 = vmatprep.mubr.bf16.mxu0 0
    %519 = vmatmul.mubr.bf16.gmra.mrb[0].mxu0 %v348
    %v520 = vpop.f32.mrb[0].mxu0
    %v521 = vadd.f32 %v285, %v520
    %v522 = vpop.f32.mrb[0].mxu0
    %v523 = vadd.f32 %v289, %v522
    %v524 = vpop.f32.mrb[0].mxu0
    %v525 = vadd.f32 %v285, %v524
    %v526 = vpop.f32.mrb[0].mxu0
    %v527 = vadd.f32 %v289, %v526
    %528 = vmatprep.mubr.bf16.mxu0 0
    %529 = vmatmul.mubr.bf16.gmra.mrb[0].mxu0 %v351
    %v530 = vpop.f32.mrb[0].mxu0
    %v531 = vadd.f32 %v285, %v530
    %v532 = vpop.f32.mrb[0].mxu0
    %v533 = vadd.f32 %v289, %v532
    %v534 = vpop.f32.mrb[0].mxu0
    %v535 = vadd.f32 %v285, %v534
    %v536 = vpop.f32.mrb[0].mxu0
    %v537 = vadd.f32 %v289, %v536
    %538 = vdwg.mxu0
    %vm539 = vcmp.gt.s32.totalorder %v45, 0
    %v540 = vsel %vm539, 0.0, -1e+30
    %542 = vset.pattern.permute.xlu0 0
    %543 = vperm.xlu0 %542, %v540
    %v544 = vpop.permute.xlu0 %543
    %vm546 = vcmp.gt.s32.totalorder %v45, 1
    %v547 = vsel %vm546, 0.0, -1e+30
    %549 = vset.pattern.permute.xlu0 0
    %550 = vperm.xlu0 %549, %v547
    %v551 = vpop.permute.xlu0 %550
    %vm553 = vcmp.gt.s32.totalorder %v45, 2
    %v554 = vsel %vm553, 0.0, -1e+30
    %556 = vset.pattern.permute.xlu0 0
    %557 = vperm.xlu0 %556, %v554
    %v558 = vpop.permute.xlu0 %557
    %vm560 = vcmp.gt.s32.totalorder %v45, 3
    %v561 = vsel %vm560, 0.0, -1e+30
    %563 = vset.pattern.permute.xlu0 0
    %564 = vperm.xlu0 %563, %v561
    %v565 = vpop.permute.xlu0 %564
    %vm567 = vcmp.gt.s32.totalorder %v45, 4
    %v568 = vsel %vm567, 0.0, -1e+30
    %570 = vset.pattern.permute.xlu0 0
    %571 = vperm.xlu0 %570, %v568
    %v572 = vpop.permute.xlu0 %571
    %vm574 = vcmp.gt.s32.totalorder %v45, 5
    %v575 = vsel %vm574, 0.0, -1e+30
    %577 = vset.pattern.permute.xlu0 0
    %578 = vperm.xlu0 %577, %v575
    %v579 = vpop.permute.xlu0 %578
    %vm581 = vcmp.gt.s32.totalorder %v45, 6
    %v582 = vsel %vm581, 0.0, -1e+30
    %584 = vset.pattern.permute.xlu0 0
    %585 = vperm.xlu0 %584, %v582
    %v586 = vpop.permute.xlu0 %585
    %vm588 = vcmp.gt.s32.totalorder %v45, 7
    %v589 = vsel %vm588, 0.0, -1e+30
    %591 = vset.pattern.permute.xlu0 0
    %592 = vperm.xlu0 %591, %v589
    %v593 = vpop.permute.xlu0 %592
    %vm595 = vcmp.gt.s32.totalorder %v45, 8
    %v596 = vsel %vm595, 0.0, -1e+30
    %598 = vset.pattern.permute.xlu0 0
    %599 = vperm.xlu0 %598, %v596
    %v600 = vpop.permute.xlu0 %599
    %vm602 = vcmp.gt.s32.totalorder %v45, 9
    %v603 = vsel %vm602, 0.0, -1e+30
    %605 = vset.pattern.permute.xlu0 0
    %606 = vperm.xlu0 %605, %v603
    %v607 = vpop.permute.xlu0 %606
    %vm609 = vcmp.gt.s32.totalorder %v45, 10
    %v610 = vsel %vm609, 0.0, -1e+30
    %612 = vset.pattern.permute.xlu0 0
    %613 = vperm.xlu0 %612, %v610
    %v614 = vpop.permute.xlu0 %613
    %vm616 = vcmp.gt.s32.totalorder %v45, 11
    %v617 = vsel %vm616, 0.0, -1e+30
    %619 = vset.pattern.permute.xlu0 0
    %620 = vperm.xlu0 %619, %v617
    %v621 = vpop.permute.xlu0 %620
    %v623 = vld [vmem:[#allocation2] sm:$0xff]
    %v624 = vld [vmem:[#allocation2 + $0x8] sm:$0xff]
    %v625 = vld [vmem:[#allocation2 + $0x10] sm:$0xff]
    %v626 = vld [vmem:[#allocation2 + $0x18] sm:$0xff]
    %v627 = vld [vmem:[#allocation2 + $0x20] sm:$0xff]
    %v628 = vld [vmem:[#allocation2 + $0x28] sm:$0xff]
    %v629 = vld [vmem:[#allocation2 + $0x30] sm:$0xff]
    %v630 = vld [vmem:[#allocation2 + $0x38] sm:$0xff]
    %v631 = vld [vmem:[#allocation2 + $0x40] sm:$0xff]
    %v632 = vld [vmem:[#allocation2 + $0x48] sm:$0xff]
    %v633 = vld [vmem:[#allocation2 + $0x50] sm:$0xff]
    %v634 = vld [vmem:[#allocation2 + $0x58] sm:$0xff]
    %v635 = vld [vmem:[#allocation2 + $0x60] sm:$0xff]
    %v636 = vld [vmem:[#allocation2 + $0x68] sm:$0xff]
    %v637 = vld [vmem:[#allocation2 + $0x70] sm:$0xff]
    %v638 = vld [vmem:[#allocation2 + $0x78] sm:$0xff]
    %v639 = vld [vmem:[#allocation2 + $0x80] sm:$0xff]
    %v640 = vld [vmem:[#allocation2 + $0x88] sm:$0xff]
    %v641 = vld [vmem:[#allocation2 + $0x90] sm:$0xff]
    %v642 = vld [vmem:[#allocation2 + $0x98] sm:$0xff]
    %v643 = vld [vmem:[#allocation2 + $0xa0] sm:$0xff]
    %v644 = vld [vmem:[#allocation2 + $0xa8] sm:$0xff]
    %v645 = vld [vmem:[#allocation2 + $0xb0] sm:$0xff]
    %v646 = vld [vmem:[#allocation2 + $0xb8] sm:$0xff]
    %v647 = vld [vmem:[#allocation2 + $0xc0] sm:$0xff]
    %v648 = vld [vmem:[#allocation2 + $0xc8] sm:$0xff]
    %v649 = vld [vmem:[#allocation2 + $0xd0] sm:$0xff]
    %v650 = vld [vmem:[#allocation2 + $0xd8] sm:$0xff]
    %v651 = vld [vmem:[#allocation2 + $0xe0] sm:$0xff]
    %v652 = vld [vmem:[#allocation2 + $0xe8] sm:$0xff]
    %v653 = vld [vmem:[#allocation2 + $0xf0] sm:$0xff]
    %v654 = vld [vmem:[#allocation2 + $0xf8] sm:$0xff]
    %v687 = vunpack.c.l.b16 %v623
    %v688 = vunpack.c.h.b16 %v623
    %v689 = vunpack.c.l.b16 %v624
    %v690 = vunpack.c.h.b16 %v624
    %v691 = vunpack.c.l.b16 %v625
    %v692 = vunpack.c.h.b16 %v625
    %v693 = vunpack.c.l.b16 %v626
    %v694 = vunpack.c.h.b16 %v626
    %v695 = vunpack.c.l.b16 %v627
    %v696 = vunpack.c.h.b16 %v627
    %v697 = vunpack.c.l.b16 %v628
    %v698 = vunpack.c.h.b16 %v628
    %v699 = vunpack.c.l.b16 %v629
    %v700 = vunpack.c.h.b16 %v629
    %v701 = vunpack.c.l.b16 %v630
    %v702 = vunpack.c.h.b16 %v630
    %v703 = vunpack.c.l.b16 %v631
    %v704 = vunpack.c.h.b16 %v631
    %v705 = vunpack.c.l.b16 %v632
    %v706 = vunpack.c.h.b16 %v632
    %v707 = vunpack.c.l.b16 %v633
    %v708 = vunpack.c.h.b16 %v633
    %v709 = vunpack.c.l.b16 %v634
    %v710 = vunpack.c.h.b16 %v634
    %v711 = vunpack.c.l.b16 %v635
    %v712 = vunpack.c.h.b16 %v635
    %v713 = vunpack.c.l.b16 %v636
    %v714 = vunpack.c.h.b16 %v636
    %v715 = vunpack.c.l.b16 %v637
    %v716 = vunpack.c.h.b16 %v637
    %v717 = vunpack.c.l.b16 %v638
    %v718 = vunpack.c.h.b16 %v638
    %v719 = vunpack.c.l.b16 %v639
    %v720 = vunpack.c.h.b16 %v639
    %v721 = vunpack.c.l.b16 %v640
    %v722 = vunpack.c.h.b16 %v640
    %v723 = vunpack.c.l.b16 %v641
    %v724 = vunpack.c.h.b16 %v641
    %v725 = vunpack.c.l.b16 %v642
    %v726 = vunpack.c.h.b16 %v642
    %v727 = vunpack.c.l.b16 %v643
    %v728 = vunpack.c.h.b16 %v643
    %v729 = vunpack.c.l.b16 %v644
    %v730 = vunpack.c.h.b16 %v644
    %v731 = vunpack.c.l.b16 %v645
    %v732 = vunpack.c.h.b16 %v645
    %v733 = vunpack.c.l.b16 %v646
    %v734 = vunpack.c.h.b16 %v646
    %v735 = vunpack.c.l.b16 %v647
    %v736 = vunpack.c.h.b16 %v647
    %v737 = vunpack.c.l.b16 %v648
    %v738 = vunpack.c.h.b16 %v648
    %v739 = vunpack.c.l.b16 %v649
    %v740 = vunpack.c.h.b16 %v649
    %v741 = vunpack.c.l.b16 %v650
    %v742 = vunpack.c.h.b16 %v650
    %v743 = vunpack.c.l.b16 %v651
    %v744 = vunpack.c.h.b16 %v651
    %v745 = vunpack.c.l.b16 %v652
    %v746 = vunpack.c.h.b16 %v652
    %v747 = vunpack.c.l.b16 %v653
    %v748 = vunpack.c.h.b16 %v653
    %v749 = vunpack.c.l.b16 %v654
    %v750 = vunpack.c.h.b16 %v654
    %v751 = vpack.c.b16 %v691, %v687
    %v752 = vpack.c.b16 %v692, %v688
    %v753 = vpack.c.b16 %v693, %v689
    %v754 = vpack.c.b16 %v694, %v690
    %v755 = vpack.c.b16 %v699, %v695
    %v756 = vpack.c.b16 %v700, %v696
    %v757 = vpack.c.b16 %v701, %v697
    %v758 = vpack.c.b16 %v702, %v698
    %v759 = vpack.c.b16 %v707, %v703
    %v760 = vpack.c.b16 %v708, %v704
    %v761 = vpack.c.b16 %v709, %v705
    %v762 = vpack.c.b16 %v710, %v706
    %v763 = vpack.c.b16 %v715, %v711
    %v764 = vpack.c.b16 %v716, %v712
    %v765 = vpack.c.b16 %v717, %v713
    %v766 = vpack.c.b16 %v718, %v714
    %v767 = vpack.c.b16 %v723, %v719
    %v768 = vpack.c.b16 %v724, %v720
    %v769 = vpack.c.b16 %v725, %v721
    %v770 = vpack.c.b16 %v726, %v722
    %v771 = vpack.c.b16 %v731, %v727
    %v772 = vpack.c.b16 %v732, %v728
    %v773 = vpack.c.b16 %v733, %v729
    %v774 = vpack.c.b16 %v734, %v730
    %v775 = vpack.c.b16 %v739, %v735
    %v776 = vpack.c.b16 %v740, %v736
    %v777 = vpack.c.b16 %v741, %v737
    %v778 = vpack.c.b16 %v742, %v738
    %v779 = vpack.c.b16 %v747, %v743
    %v780 = vpack.c.b16 %v748, %v744
    %v781 = vpack.c.b16 %v749, %v745
    %v782 = vpack.c.b16 %v750, %v746
    %815 = vmatprep.subr.bf16.mxu0 %v752
    %816 = vmatpush1.bf16.msra.mxu0 %v751
    %817 = vmatprep.subr.bf16.mxu0 %v756
    %818 = vmatpush1.bf16.msra.mxu0 %v755
    %819 = vmatprep.subr.bf16.mxu0 %v760
    %820 = vmatpush1.bf16.msra.mxu0 %v759
    %821 = vmatprep.subr.bf16.mxu0 %v764
    %822 = vmatpush1.bf16.msra.mxu0 %v763
    %823 = vmatprep.subr.bf16.mxu0 %v768
    %824 = vmatpush1.bf16.msra.mxu0 %v767
    %825 = vmatprep.subr.bf16.mxu0 %v772
    %826 = vmatpush1.bf16.msra.mxu0 %v771
    %827 = vmatprep.subr.bf16.mxu0 %v776
    %828 = vmatpush1.bf16.msra.mxu0 %v775
    %829 = vmatprep.subr.bf16.mxu0 %v780
    %830 = vmatpush1.bf16.msra.mxu0 %v779
    %831 = vmatprep.subr.bf16.mxu0 0
    %832 = vmatpush1.bf16.msra.mxu0 0
    %833 = vmatprep.subr.bf16.mxu0 0
    %834 = vmatpush1.bf16.msra.mxu0 0
    %835 = vmatprep.subr.bf16.mxu0 0
    %836 = vmatpush1.bf16.msra.mxu0 0
    %837 = vmatprep.subr.bf16.mxu0 0
    %838 = vmatpush1.bf16.msra.mxu0 0
    %839 = vmatprep.subr.bf16.mxu0 0
    %840 = vmatpush1.bf16.msra.mxu0 0
    %841 = vmatprep.subr.bf16.mxu0 0
    %842 = vmatpush1.bf16.msra.mxu0 0
    %843 = vmatprep.subr.bf16.mxu0 0
    %844 = vmatpush1.bf16.msra.mxu0 0
    %845 = vmatprep.subr.bf16.mxu0 0
    %846 = vmatpush1.bf16.msra.mxu0 0
    %847 = vmatprep.mubr.bf16.mxu0 0
    %848 = vmatmul.mubr.bf16.gmra.mrb[0].mxu0 0
    %v849 = vpop.f32.mrb[0].mxu0
    %v850 = vadd.f32 0.0, %v849
    %v851 = vpop.f32.mrb[0].mxu0
    %v852 = vadd.f32 0.0, %v851
    %v853 = vpop.f32.mrb[0].mxu0
    %v854 = vpop.f32.mrb[0].mxu0
    %855 = vdwg.mxu0
    %856 = vmatprep.subr.bf16.mxu0 %v754
    %857 = vmatpush1.bf16.msra.mxu0 %v753
    %858 = vmatprep.subr.bf16.mxu0 %v758
    %859 = vmatpush1.bf16.msra.mxu0 %v757
    %860 = vmatprep.subr.bf16.mxu0 %v762
    %861 = vmatpush1.bf16.msra.mxu0 %v761
    %862 = vmatprep.subr.bf16.mxu0 %v766
    %863 = vmatpush1.bf16.msra.mxu0 %v765
    %864 = vmatprep.subr.bf16.mxu0 %v770
    %865 = vmatpush1.bf16.msra.mxu0 %v769
    %866 = vmatprep.subr.bf16.mxu0 %v774
    %867 = vmatpush1.bf16.msra.mxu0 %v773
    %868 = vmatprep.subr.bf16.mxu0 %v778
    %869 = vmatpush1.bf16.msra.mxu0 %v777
    %870 = vmatprep.subr.bf16.mxu0 %v782
    %871 = vmatpush1.bf16.msra.mxu0 %v781
    %872 = vmatprep.subr.bf16.mxu0 0
    %873 = vmatpush1.bf16.msra.mxu0 0
    %874 = vmatprep.subr.bf16.mxu0 0
    %875 = vmatpush1.bf16.msra.mxu0 0
    %876 = vmatprep.subr.bf16.mxu0 0
    %877 = vmatpush1.bf16.msra.mxu0 0
    %878 = vmatprep.subr.bf16.mxu0 0
    %879 = vmatpush1.bf16.msra.mxu0 0
    %880 = vmatprep.subr.bf16.mxu0 0
    %881 = vmatpush1.bf16.msra.mxu0 0
    %882 = vmatprep.subr.bf16.mxu0 0
    %883 = vmatpush1.bf16.msra.mxu0 0
    %884 = vmatprep.subr.bf16.mxu0 0
    %885 = vmatpush1.bf16.msra.mxu0 0
    %886 = vmatprep.subr.bf16.mxu0 0
    %887 = vmatpush1.bf16.msra.mxu0 0
    %888 = vmatprep.mubr.bf16.mxu0 0
    %889 = vmatmul.mubr.bf16.gmra.mrb[0].mxu0 0
    %v890 = vpop.f32.mrb[0].mxu0
    %v891 = vadd.f32 0.0, %v890
    %v892 = vpop.f32.mrb[0].mxu0
    %v893 = vadd.f32 0.0, %v892
    %v894 = vpop.f32.mrb[0].mxu0
    %v895 = vpop.f32.mrb[0].mxu0
    %896 = vdwg.mxu0
    %v897 = vadd.f32 %v388, %v850
    %v898 = vadd.f32 %v390, %v852
    %v899 = vadd.f32 %v481, %v891
    %v900 = vadd.f32 %v483, %v893
    %v901 = vxor.u32 %v897, 2147483648
    %v902 = vmul.f32 %v901, 1.442695
    %v903 = vpow.pop %v902
    %v904 = vadd.f32 %v903, 1.0
    %v905 = vrcp.pop %v904
    %v906 = vmul.f32 1.0, %v905
    %v907 = vxor.u32 %v898, 2147483648
    %v908 = vmul.f32 %v907, 1.442695
    %v909 = vpow.pop %v908
    %v910 = vadd.f32 %v909, 1.0
    %v911 = vrcp.pop %v910
    %v912 = vmul.f32 1.0, %v911
    %v913 = vtanh.pop %v899
    %v914 = vxor.u32 %v900, 2147483648
    %v915 = vmul.f32 %v914, 1.442695
    %v916 = vpow.pop %v915
    %v917 = vadd.f32 %v916, 1.0
    %v918 = vrcp.pop %v917
    %v919 = vmul.f32 1.0, %v918
    %v920 = vmul.f32 %v912, 0.0
    %v921 = vmul.f32 %v906, %v913
    %v922 = vadd.f32 %v920, %v921
    %v923 = vtanh.pop %v922
    %v924 = vmul.f32 %v919, %v923
    %v925 = vadd.f32 %v924, %v544
    %v926 = vmax.f32 %v925, -1e+30
    %v927 = vpack.c.bf16 %v924, %v924
    %928 = vmatprep.subr.bf16.mxu0 %v752
    %929 = vmatpush1.bf16.msra.mxu0 %v751
    %930 = vmatprep.subr.bf16.mxu0 %v756
    %931 = vmatpush1.bf16.msra.mxu0 %v755
    %932 = vmatprep.subr.bf16.mxu0 %v760
    %933 = vmatpush1.bf16.msra.mxu0 %v759
    %934 = vmatprep.subr.bf16.mxu0 %v764
    %935 = vmatpush1.bf16.msra.mxu0 %v763
    %936 = vmatprep.subr.bf16.mxu0 %v768
    %937 = vmatpush1.bf16.msra.mxu0 %v767
    %938 = vmatprep.subr.bf16.mxu0 %v772
    %939 = vmatpush1.bf16.msra.mxu0 %v771
    %940 = vmatprep.subr.bf16.mxu0 %v776
    %941 = vmatpush1.bf16.msra.mxu0 %v775
    %942 = vmatprep.subr.bf16.mxu0 %v780
    %943 = vmatpush1.bf16.msra.mxu0 %v779
    %944 = vmatprep.subr.bf16.mxu0 0
    %945 = vmatpush1.bf16.msra.mxu0 0
    %946 = vmatprep.subr.bf16.mxu0 0
    %947 = vmatpush1.bf16.msra.mxu0 0
    %948 = vmatprep.subr.bf16.mxu0 0
    %949 = vmatpush1.bf16.msra.mxu0 0
    %950 = vmatprep.subr.bf16.mxu0 0
    %951 = vmatpush1.bf16.msra.mxu0 0
    %952 = vmatprep.subr.bf16.mxu0 0
    %953 = vmatpush1.bf16.msra.mxu0 0
    %954 = vmatprep.subr.bf16.mxu0 0
    %955 = vmatpush1.bf16.msra.mxu0 0
    %956 = vmatprep.subr.bf16.mxu0 0
    %957 = vmatpush1.bf16.msra.mxu0 0
    %958 = vmatprep.subr.bf16.mxu0 0
    %959 = vmatpush1.bf16.msra.mxu0 0
    %960 = vmatprep.mubr.bf16.mxu0 0
    %961 = vmatmul.mubr.bf16.gmra.mrb[0].mxu0 %v927
    %v962 = vpop.f32.mrb[0].mxu0
    %v963 = vadd.f32 0.0, %v962
    %v964 = vpop.f32.mrb[0].mxu0
    %v965 = vadd.f32 0.0, %v964
    %v966 = vpop.f32.mrb[0].mxu0
    %v967 = vpop.f32.mrb[0].mxu0
    %968 = vdwg.mxu0
    %969 = vmatprep.subr.bf16.mxu0 %v754
    %970 = vmatpush1.bf16.msra.mxu0 %v753
    %971 = vmatprep.subr.bf16.mxu0 %v758
    %972 = vmatpush1.bf16.msra.mxu0 %v757
    %973 = vmatprep.subr.bf16.mxu0 %v762
    %974 = vmatpush1.bf16.msra.mxu0 %v761
    %975 = vmatprep.subr.bf16.mxu0 %v766
    %976 = vmatpush1.bf16.msra.mxu0 %v765
    %977 = vmatprep.subr.bf16.mxu0 %v770
    %978 = vmatpush1.bf16.msra.mxu0 %v769
    %979 = vmatprep.subr.bf16.mxu0 %v774
    %980 = vmatpush1.bf16.msra.mxu0 %v773
    %981 = vmatprep.subr.bf16.mxu0 %v778
    %982 = vmatpush1.bf16.msra.mxu0 %v777
    %983 = vmatprep.subr.bf16.mxu0 %v782
    %984 = vmatpush1.bf16.msra.mxu0 %v781
    %985 = vmatprep.subr.bf16.mxu0 0
    %986 = vmatpush1.bf16.msra.mxu0 0
    %987 = vmatprep.subr.bf16.mxu0 0
    %988 = vmatpush1.bf16.msra.mxu0 0
    %989 = vmatprep.subr.bf16.mxu0 0
    %990 = vmatpush1.bf16.msra.mxu0 0
    %991 = vmatprep.subr.bf16.mxu0 0
    %992 = vmatpush1.bf16.msra.mxu0 0
    %993 = vmatprep.subr.bf16.mxu0 0
    %994 = vmatpush1.bf16.msra.mxu0 0
    %995 = vmatprep.subr.bf16.mxu0 0
    %996 = vmatpush1.bf16.msra.mxu0 0
    %997 = vmatprep.subr.bf16.mxu0 0
    %998 = vmatpush1.bf16.msra.mxu0 0
    %999 = vmatprep.subr.bf16.mxu0 0
    %1000 = vmatpush1.bf16.msra.mxu0 0
    %1001 = vmatprep.mubr.bf16.mxu0 0
    %1002 = vmatmul.mubr.bf16.gmra.mrb[0].mxu0 %v927
    %v1003 = vpop.f32.mrb[0].mxu0
    %v1004 = vadd.f32 0.0, %v1003
    %v1005 = vpop.f32.mrb[0].mxu0
    %v1006 = vadd.f32 0.0, %v1005
    %v1007 = vpop.f32.mrb[0].mxu0
    %v1008 = vpop.f32.mrb[0].mxu0
    %1009 = vdwg.mxu0
    %v1010 = vadd.f32 %v392, %v963
    %v1011 = vadd.f32 %v394, %v965
    %v1012 = vadd.f32 %v485, %v1004
    %v1013 = vadd.f32 %v487, %v1006
    %v1014 = vxor.u32 %v1010, 2147483648
    %v1015 = vmul.f32 %v1014, 1.442695
    %v1016 = vpow.pop %v1015
    %v1017 = vadd.f32 %v1016, 1.0
    %v1018 = vrcp.pop %v1017
    %v1019 = vmul.f32 1.0, %v1018
    %v1020 = vxor.u32 %v1011, 2147483648
    %v1021 = vmul.f32 %v1020, 1.442695
    %v1022 = vpow.pop %v1021
    %v1023 = vadd.f32 %v1022, 1.0
    %v1024 = vrcp.pop %v1023
    %v1025 = vmul.f32 1.0, %v1024
    %v1026 = vtanh.pop %v1012
    %v1027 = vxor.u32 %v1013, 2147483648
    %v1028 = vmul.f32 %v1027, 1.442695
    %v1029 = vpow.pop %v1028
    %v1030 = vadd.f32 %v1029, 1.0
    %v1031 = vrcp.pop %v1030
    %v1032 = vmul.f32 1.0, %v1031
    %v1033 = vmul.f32 %v1025, %v922
    %v1034 = vmul.f32 %v1019, %v1026
    %v1035 = vadd.f32 %v1033, %v1034
    %v1036 = vtanh.pop %v1035
    %v1037 = vmul.f32 %v1032, %v1036
    %v1038 = vadd.f32 %v1037, %v551
    %v1039 = vmax.f32 %v926, %v1038
    %v1040 = vpack.c.bf16 %v1037, %v1037
    %1041 = vmatprep.subr.bf16.mxu0 %v752
    %1042 = vmatpush1.bf16.msra.mxu0 %v751
    %1043 = vmatprep.subr.bf16.mxu0 %v756
    %1044 = vmatpush1.bf16.msra.mxu0 %v755
    %1045 = vmatprep.subr.bf16.mxu0 %v760
    %1046 = vmatpush1.bf16.msra.mxu0 %v759
    %1047 = vmatprep.subr.bf16.mxu0 %v764
    %1048 = vmatpush1.bf16.msra.mxu0 %v763
    %1049 = vmatprep.subr.bf16.mxu0 %v768
    %1050 = vmatpush1.bf16.msra.mxu0 %v767
    %1051 = vmatprep.subr.bf16.mxu0 %v772
    %1052 = vmatpush1.bf16.msra.mxu0 %v771
    %1053 = vmatprep.subr.bf16.mxu0 %v776
    %1054 = vmatpush1.bf16.msra.mxu0 %v775
    %1055 = vmatprep.subr.bf16.mxu0 %v780
    %1056 = vmatpush1.bf16.msra.mxu0 %v779
    %1057 = vmatprep.subr.bf16.mxu0 0
    %1058 = vmatpush1.bf16.msra.mxu0 0
    %1059 = vmatprep.subr.bf16.mxu0 0
    %1060 = vmatpush1.bf16.msra.mxu0 0
    %1061 = vmatprep.subr.bf16.mxu0 0
    %1062 = vmatpush1.bf16.msra.mxu0 0
    %1063 = vmatprep.subr.bf16.mxu0 0
    %1064 = vmatpush1.bf16.msra.mxu0 0
    %1065 = vmatprep.subr.bf16.mxu0 0
    %1066 = vmatpush1.bf16.msra.mxu0 0
    %1067 = vmatprep.subr.bf16.mxu0 0
    %1068 = vmatpush1.bf16.msra.mxu0 0
    %1069 = vmatprep.subr.bf16.mxu0 0
    %1070 = vmatpush1.bf16.msra.mxu0 0
    %1071 = vmatprep.subr.bf16.mxu0 0
    %1072 = vmatpush1.bf16.msra.mxu0 0
    %1073 = vmatprep.mubr.bf16.mxu0 0
    %1074 = vmatmul.mubr.bf16.gmra.mrb[0].mxu0 %v1040
    %v1075 = vpop.f32.mrb[0].mxu0
    %v1076 = vadd.f32 0.0, %v1075
    %v1077 = vpop.f32.mrb[0].mxu0
    %v1078 = vadd.f32 0.0, %v1077
    %v1079 = vpop.f32.mrb[0].mxu0
    %v1080 = vpop.f32.mrb[0].mxu0
    %1081 = vdwg.mxu0
    %1082 = vmatprep.subr.bf16.mxu0 %v754
    %1083 = vmatpush1.bf16.msra.mxu0 %v753
    %1084 = vmatprep.subr.bf16.mxu0 %v758
    %1085 = vmatpush1.bf16.msra.mxu0 %v757
    %1086 = vmatprep.subr.bf16.mxu0 %v762
    %1087 = vmatpush1.bf16.msra.mxu0 %v761
    %1088 = vmatprep.subr.bf16.mxu0 %v766
    %1089 = vmatpush1.bf16.msra.mxu0 %v765
    %1090 = vmatprep.subr.bf16.mxu0 %v770
    %1091 = vmatpush1.bf16.msra.mxu0 %v769
    %1092 = vmatprep.subr.bf16.mxu0 %v774
    %1093 = vmatpush1.bf16.msra.mxu0 %v773
    %1094 = vmatprep.subr.bf16.mxu0 %v778
    %1095 = vmatpush1.bf16.msra.mxu0 %v777
    %1096 = vmatprep.subr.bf16.mxu0 %v782
    %1097 = vmatpush1.bf16.msra.mxu0 %v781
    %1098 = vmatprep.subr.bf16.mxu0 0
    %1099 = vmatpush1.bf16.msra.mxu0 0
    %1100 = vmatprep.subr.bf16.mxu0 0
    %1101 = vmatpush1.bf16.msra.mxu0 0
    %1102 = vmatprep.subr.bf16.mxu0 0
    %1103 = vmatpush1.bf16.msra.mxu0 0
    %1104 = vmatprep.subr.bf16.mxu0 0
    %1105 = vmatpush1.bf16.msra.mxu0 0
    %1106 = vmatprep.subr.bf16.mxu0 0
    %1107 = vmatpush1.bf16.msra.mxu0 0
    %1108 = vmatprep.subr.bf16.mxu0 0
    %1109 = vmatpush1.bf16.msra.mxu0 0
    %1110 = vmatprep.subr.bf16.mxu0 0
    %1111 = vmatpush1.bf16.msra.mxu0 0
    %1112 = vmatprep.subr.bf16.mxu0 0
    %1113 = vmatpush1.bf16.msra.mxu0 0
    %1114 = vmatprep.mubr.bf16.mxu0 0
    %1115 = vmatmul.mubr.bf16.gmra.mrb[0].mxu0 %v1040
    %v1116 = vpop.f32.mrb[0].mxu0
    %v1117 = vadd.f32 0.0, %v1116
    %v1118 = vpop.f32.mrb[0].mxu0
    %v1119 = vadd.f32 0.0, %v1118
    %v1120 = vpop.f32.mrb[0].mxu0
    %v1121 = vpop.f32.mrb[0].mxu0
    %1122 = vdwg.mxu0
    %v1123 = vadd.f32 %v398, %v1076
    %v1124 = vadd.f32 %v400, %v1078
    %v1125 = vadd.f32 %v491, %v1117
    %v1126 = vadd.f32 %v493, %v1119
    %v1127 = vxor.u32 %v1123, 2147483648
    %v1128 = vmul.f32 %v1127, 1.442695
    %v1129 = vpow.pop %v1128
    %v1130 = vadd.f32 %v1129, 1.0
    %v1131 = vrcp.pop %v1130
    %v1132 = vmul.f32 1.0, %v1131
    %v1133 = vxor.u32 %v1124, 2147483648
    %v1134 = vmul.f32 %v1133, 1.442695
    %v1135 = vpow.pop %v1134
    %v1136 = vadd.f32 %v1135, 1.0
    %v1137 = vrcp.pop %v1136
    %v1138 = vmul.f32 1.0, %v1137
    %v1139 = vtanh.pop %v1125
    %v1140 = vxor.u32 %v1126, 2147483648
    %v1141 = vmul.f32 %v1140, 1.442695
    %v1142 = vpow.pop %v1141
    %v1143 = vadd.f32 %v1142, 1.0
    %v1144 = vrcp.pop %v1143
    %v1145 = vmul.f32 1.0, %v1144
    %v1146 = vmul.f32 %v1138, %v1035
    %v1147 = vmul.f32 %v1132, %v1139
    %v1148 = vadd.f32 %v1146, %v1147
    %v1149 = vtanh.pop %v1148
    %v1150 = vmul.f32 %v1145, %v1149
    %v1151 = vadd.f32 %v1150, %v558
    %v1152 = vmax.f32 %v1039, %v1151
    %v1153 = vpack.c.bf16 %v1150, %v1150
    %1154 = vmatprep.subr.bf16.mxu0 %v752
    %1155 = vmatpush1.bf16.msra.mxu0 %v751
    %1156 = vmatprep.subr.bf16.mxu0 %v756
    %1157 = vmatpush1.bf16.msra.mxu0 %v755
    %1158 = vmatprep.subr.bf16.mxu0 %v760
    %1159 = vmatpush1.bf16.msra.mxu0 %v759
    %1160 = vmatprep.subr.bf16.mxu0 %v764
    %1161 = vmatpush1.bf16.msra.mxu0 %v763
    %1162 = vmatprep.subr.bf16.mxu0 %v768
    %1163 = vmatpush1.bf16.msra.mxu0 %v767
    %1164 = vmatprep.subr.bf16.mxu0 %v772
    %1165 = vmatpush1.bf16.msra.mxu0 %v771
    %1166 = vmatprep.subr.bf16.mxu0 %v776
    %1167 = vmatpush1.bf16.msra.mxu0 %v775
    %1168 = vmatprep.subr.bf16.mxu0 %v780
    %1169 = vmatpush1.bf16.msra.mxu0 %v779
    %1170 = vmatprep.subr.bf16.mxu0 0
    %1171 = vmatpush1.bf16.msra.mxu0 0
    %1172 = vmatprep.subr.bf16.mxu0 0
    %1173 = vmatpush1.bf16.msra.mxu0 0
    %1174 = vmatprep.subr.bf16.mxu0 0
    %1175 = vmatpush1.bf16.msra.mxu0 0
    %1176 = vmatprep.subr.bf16.mxu0 0
    %1177 = vmatpush1.bf16.msra.mxu0 0
    %1178 = vmatprep.subr.bf16.mxu0 0
    %1179 = vmatpush1.bf16.msra.mxu0 0
    %1180 = vmatprep.subr.bf16.mxu0 0
    %1181 = vmatpush1.bf16.msra.mxu0 0
    %1182 = vmatprep.subr.bf16.mxu0 0
    %1183 = vmatpush1.bf16.msra.mxu0 0
    %1184 = vmatprep.subr.bf16.mxu0 0
    %1185 = vmatpush1.bf16.msra.mxu0 0
    %1186 = vmatprep.mubr.bf16.mxu0 0
    %1187 = vmatmul.mubr.bf16.gmra.mrb[0].mxu0 %v1153
    %v1188 = vpop.f32.mrb[0].mxu0
    %v1189 = vadd.f32 0.0, %v1188
    %v1190 = vpop.f32.mrb[0].mxu0
    %v1191 = vadd.f32 0.0, %v1190
    %v1192 = vpop.f32.mrb[0].mxu0
    %v1193 = vpop.f32.mrb[0].mxu0
    %1194 = vdwg.mxu0
    %1195 = vmatprep.subr.bf16.mxu0 %v754
    %1196 = vmatpush1.bf16.msra.mxu0 %v753
    %1197 = vmatprep.subr.bf16.mxu0 %v758
    %1198 = vmatpush1.bf16.msra.mxu0 %v757
    %1199 = vmatprep.subr.bf16.mxu0 %v762
    %1200 = vmatpush1.bf16.msra.mxu0 %v761
    %1201 = vmatprep.subr.bf16.mxu0 %v766
    %1202 = vmatpush1.bf16.msra.mxu0 %v765
    %1203 = vmatprep.subr.bf16.mxu0 %v770
    %1204 = vmatpush1.bf16.msra.mxu0 %v769
    %1205 = vmatprep.subr.bf16.mxu0 %v774
    %1206 = vmatpush1.bf16.msra.mxu0 %v773
    %1207 = vmatprep.subr.bf16.mxu0 %v778
    %1208 = vmatpush1.bf16.msra.mxu0 %v777
    %1209 = vmatprep.subr.bf16.mxu0 %v782
    %1210 = vmatpush1.bf16.msra.mxu0 %v781
    %1211 = vmatprep.subr.bf16.mxu0 0
    %1212 = vmatpush1.bf16.msra.mxu0 0
    %1213 = vmatprep.subr.bf16.mxu0 0
    %1214 = vmatpush1.bf16.msra.mxu0 0
    %1215 = vmatprep.subr.bf16.mxu0 0
    %1216 = vmatpush1.bf16.msra.mxu0 0
    %1217 = vmatprep.subr.bf16.mxu0 0
    %1218 = vmatpush1.bf16.msra.mxu0 0
    %1219 = vmatprep.subr.bf16.mxu0 0
    %1220 = vmatpush1.bf16.msra.mxu0 0
    %1221 = vmatprep.subr.bf16.mxu0 0
    %1222 = vmatpush1.bf16.msra.mxu0 0
    %1223 = vmatprep.subr.bf16.mxu0 0
    %1224 = vmatpush1.bf16.msra.mxu0 0
    %1225 = vmatprep.subr.bf16.mxu0 0
    %1226 = vmatpush1.bf16.msra.mxu0 0
    %1227 = vmatprep.mubr.bf16.mxu0 0
    %1228 = vmatmul.mubr.bf16.gmra.mrb[0].mxu0 %v1153
    %v1229 = vpop.f32.mrb[0].mxu0
    %v1230 = vadd.f32 0.0, %v1229
    %v1231 = vpop.f32.mrb[0].mxu0
    %v1232 = vadd.f32 0.0, %v1231
    %v1233 = vpop.f32.mrb[0].mxu0
    %v1234 = vpop.f32.mrb[0].mxu0
    %1235 = vdwg.mxu0
    %v1236 = vadd.f32 %v402, %v1189
    %v1237 = vadd.f32 %v404, %v1191
    %v1238 = vadd.f32 %v495, %v1230
    %v1239 = vadd.f32 %v497, %v1232
    %v1240 = vxor.u32 %v1236, 2147483648
    %v1241 = vmul.f32 %v1240, 1.442695
    %v1242 = vpow.pop %v1241
    %v1243 = vadd.f32 %v1242, 1.0
    %v1244 = vrcp.pop %v1243
    %v1245 = vmul.f32 1.0, %v1244
    %v1246 = vxor.u32 %v1237, 2147483648
    %v1247 = vmul.f32 %v1246, 1.442695
    %v1248 = vpow.pop %v1247
    %v1249 = vadd.f32 %v1248, 1.0
    %v1250 = vrcp.pop %v1249
    %v1251 = vmul.f32 1.0, %v1250
    %v1252 = vtanh.pop %v1238
    %v1253 = vxor.u32 %v1239, 2147483648
    %v1254 = vmul.f32 %v1253, 1.442695
    %v1255 = vpow.pop %v1254
    %v1256 = vadd.f32 %v1255, 1.0
    %v1257 = vrcp.pop %v1256
    %v1258 = vmul.f32 1.0, %v1257
    %v1259 = vmul.f32 %v1251, %v1148
    %v1260 = vmul.f32 %v1245, %v1252
    %v1261 = vadd.f32 %v1259, %v1260
    %v1262 = vtanh.pop %v1261
    %v1263 = vmul.f32 %v1258, %v1262
    %v1264 = vadd.f32 %v1263, %v565
    %v1265 = vmax.f32 %v1152, %v1264
    %v1266 = vpack.c.bf16 %v1263, %v1263
    %1267 = vmatprep.subr.bf16.mxu0 %v752
    %1268 = vmatpush1.bf16.msra.mxu0 %v751
    %1269 = vmatprep.subr.bf16.mxu0 %v756
    %1270 = vmatpush1.bf16.msra.mxu0 %v755
    %1271 = vmatprep.subr.bf16.mxu0 %v760
    %1272 = vmatpush1.bf16.msra.mxu0 %v759
    %1273 = vmatprep.subr.bf16.mxu0 %v764
    %1274 = vmatpush1.bf16.msra.mxu0 %v763
    %1275 = vmatprep.subr.bf16.mxu0 %v768
    %1276 = vmatpush1.bf16.msra.mxu0 %v767
    %1277 = vmatprep.subr.bf16.mxu0 %v772
    %1278 = vmatpush1.bf16.msra.mxu0 %v771
    %1279 = vmatprep.subr.bf16.mxu0 %v776
    %1280 = vmatpush1.bf16.msra.mxu0 %v775
    %1281 = vmatprep.subr.bf16.mxu0 %v780
    %1282 = vmatpush1.bf16.msra.mxu0 %v779
    %1283 = vmatprep.subr.bf16.mxu0 0
    %1284 = vmatpush1.bf16.msra.mxu0 0
    %1285 = vmatprep.subr.bf16.mxu0 0
    %1286 = vmatpush1.bf16.msra.mxu0 0
    %1287 = vmatprep.subr.bf16.mxu0 0
    %1288 = vmatpush1.bf16.msra.mxu0 0
    %1289 = vmatprep.subr.bf16.mxu0 0
    %1290 = vmatpush1.bf16.msra.mxu0 0
    %1291 = vmatprep.subr.bf16.mxu0 0
    %1292 = vmatpush1.bf16.msra.mxu0 0
    %1293 = vmatprep.subr.bf16.mxu0 0
    %1294 = vmatpush1.bf16.msra.mxu0 0
    %1295 = vmatprep.subr.bf16.mxu0 0
    %1296 = vmatpush1.bf16.msra.mxu0 0
    %1297 = vmatprep.subr.bf16.mxu0 0
    %1298 = vmatpush1.bf16.msra.mxu0 0
    %1299 = vmatprep.mubr.bf16.mxu0 0
    %1300 = vmatmul.mubr.bf16.gmra.mrb[0].mxu0 %v1266
    %v1301 = vpop.f32.mrb[0].mxu0
    %v1302 = vadd.f32 0.0, %v1301
    %v1303 = vpop.f32.mrb[0].mxu0
    %v1304 = vadd.f32 0.0, %v1303
    %v1305 = vpop.f32.mrb[0].mxu0
    %v1306 = vpop.f32.mrb[0].mxu0
    %1307 = vdwg.mxu0
    %1308 = vmatprep.subr.bf16.mxu0 %v754
    %1309 = vmatpush1.bf16.msra.mxu0 %v753
    %1310 = vmatprep.subr.bf16.mxu0 %v758
    %1311 = vmatpush1.bf16.msra.mxu0 %v757
    %1312 = vmatprep.subr.bf16.mxu0 %v762
    %1313 = vmatpush1.bf16.msra.mxu0 %v761
    %1314 = vmatprep.subr.bf16.mxu0 %v766
    %1315 = vmatpush1.bf16.msra.mxu0 %v765
    %1316 = vmatprep.subr.bf16.mxu0 %v770
    %1317 = vmatpush1.bf16.msra.mxu0 %v769
    %1318 = vmatprep.subr.bf16.mxu0 %v774
    %1319 = vmatpush1.bf16.msra.mxu0 %v773
    %1320 = vmatprep.subr.bf16.mxu0 %v778
    %1321 = vmatpush1.bf16.msra.mxu0 %v777
    %1322 = vmatprep.subr.bf16.mxu0 %v782
    %1323 = vmatpush1.bf16.msra.mxu0 %v781
    %1324 = vmatprep.subr.bf16.mxu0 0
    %1325 = vmatpush1.bf16.msra.mxu0 0
    %1326 = vmatprep.subr.bf16.mxu0 0
    %1327 = vmatpush1.bf16.msra.mxu0 0
    %1328 = vmatprep.subr.bf16.mxu0 0
    %1329 = vmatpush1.bf16.msra.mxu0 0
    %1330 = vmatprep.subr.bf16.mxu0 0
    %1331 = vmatpush1.bf16.msra.mxu0 0
    %1332 = vmatprep.subr.bf16.mxu0 0
    %1333 = vmatpush1.bf16.msra.mxu0 0
    %1334 = vmatprep.subr.bf16.mxu0 0
    %1335 = vmatpush1.bf16.msra.mxu0 0
    %1336 = vmatprep.subr.bf16.mxu0 0
    %1337 = vmatpush1.bf16.msra.mxu0 0
    %1338 = vmatprep.subr.bf16.mxu0 0
    %1339 = vmatpush1.bf16.msra.mxu0 0
    %1340 = vmatprep.mubr.bf16.mxu0 0
    %1341 = vmatmul.mubr.bf16.gmra.mrb[0].mxu0 %v1266
    %v1342 = vpop.f32.mrb[0].mxu0
    %v1343 = vadd.f32 0.0, %v1342
    %v1344 = vpop.f32.mrb[0].mxu0
    %v1345 = vadd.f32 0.0, %v1344
    %v1346 = vpop.f32.mrb[0].mxu0
    %v1347 = vpop.f32.mrb[0].mxu0
    %1348 = vdwg.mxu0
    %v1349 = vadd.f32 %v408, %v1302
    %v1350 = vadd.f32 %v410, %v1304
    %v1351 = vadd.f32 %v501, %v1343
    %v1352 = vadd.f32 %v503, %v1345
    %v1353 = vxor.u32 %v1349, 2147483648
    %v1354 = vmul.f32 %v1353, 1.442695
    %v1355 = vpow.pop %v1354
    %v1356 = vadd.f32 %v1355, 1.0
    %v1357 = vrcp.pop %v1356
    %v1358 = vmul.f32 1.0, %v1357
    %v1359 = vxor.u32 %v1350, 2147483648
    %v1360 = vmul.f32 %v1359, 1.442695
    %v1361 = vpow.pop %v1360
    %v1362 = vadd.f32 %v1361, 1.0
    %v1363 = vrcp.pop %v1362
    %v1364 = vmul.f32 1.0, %v1363
    %v1365 = vtanh.pop %v1351
    %v1366 = vxor.u32 %v1352, 2147483648
    %v1367 = vmul.f32 %v1366, 1.442695
    %v1368 = vpow.pop %v1367
    %v1369 = vadd.f32 %v1368, 1.0
    %v1370 = vrcp.pop %v1369
    %v1371 = vmul.f32 1.0, %v1370
    %v1372 = vmul.f32 %v1364, %v1261
    %v1373 = vmul.f32 %v1358, %v1365
    %v1374 = vadd.f32 %v1372, %v1373
    %v1375 = vtanh.pop %v1374
    %v1376 = vmul.f32 %v1371, %v1375
    %v1377 = vadd.f32 %v1376, %v572
    %v1378 = vmax.f32 %v1265, %v1377
    %v1379 = vpack.c.bf16 %v1376, %v1376
    %1380 = vmatprep.subr.bf16.mxu0 %v752
    %1381 = vmatpush1.bf16.msra.mxu0 %v751
    %1382 = vmatprep.subr.bf16.mxu0 %v756
    %1383 = vmatpush1.bf16.msra.mxu0 %v755
    %1384 = vmatprep.subr.bf16.mxu0 %v760
    %1385 = vmatpush1.bf16.msra.mxu0 %v759
    %1386 = vmatprep.subr.bf16.mxu0 %v764
    %1387 = vmatpush1.bf16.msra.mxu0 %v763
    %1388 = vmatprep.subr.bf16.mxu0 %v768
    %1389 = vmatpush1.bf16.msra.mxu0 %v767
    %1390 = vmatprep.subr.bf16.mxu0 %v772
    %1391 = vmatpush1.bf16.msra.mxu0 %v771
    %1392 = vmatprep.subr.bf16.mxu0 %v776
    %1393 = vmatpush1.bf16.msra.mxu0 %v775
    %1394 = vmatprep.subr.bf16.mxu0 %v780
    %1395 = vmatpush1.bf16.msra.mxu0 %v779
    %1396 = vmatprep.subr.bf16.mxu0 0
    %1397 = vmatpush1.bf16.msra.mxu0 0
    %1398 = vmatprep.subr.bf16.mxu0 0
    %1399 = vmatpush1.bf16.msra.mxu0 0
    %1400 = vmatprep.subr.bf16.mxu0 0
    %1401 = vmatpush1.bf16.msra.mxu0 0
    %1402 = vmatprep.subr.bf16.mxu0 0
    %1403 = vmatpush1.bf16.msra.mxu0 0
    %1404 = vmatprep.subr.bf16.mxu0 0
    %1405 = vmatpush1.bf16.msra.mxu0 0
    %1406 = vmatprep.subr.bf16.mxu0 0
    %1407 = vmatpush1.bf16.msra.mxu0 0
    %1408 = vmatprep.subr.bf16.mxu0 0
    %1409 = vmatpush1.bf16.msra.mxu0 0
    %1410 = vmatprep.subr.bf16.mxu0 0
    %1411 = vmatpush1.bf16.msra.mxu0 0
    %1412 = vmatprep.mubr.bf16.mxu0 0
    %1413 = vmatmul.mubr.bf16.gmra.mrb[0].mxu0 %v1379
    %v1414 = vpop.f32.mrb[0].mxu0
    %v1415 = vadd.f32 0.0, %v1414
    %v1416 = vpop.f32.mrb[0].mxu0
    %v1417 = vadd.f32 0.0, %v1416
    %v1418 = vpop.f32.mrb[0].mxu0
    %v1419 = vpop.f32.mrb[0].mxu0
    %1420 = vdwg.mxu0
    %1421 = vmatprep.subr.bf16.mxu0 %v754
    %1422 = vmatpush1.bf16.msra.mxu0 %v753
    %1423 = vmatprep.subr.bf16.mxu0 %v758
    %1424 = vmatpush1.bf16.msra.mxu0 %v757
    %1425 = vmatprep.subr.bf16.mxu0 %v762
    %1426 = vmatpush1.bf16.msra.mxu0 %v761
    %1427 = vmatprep.subr.bf16.mxu0 %v766
    %1428 = vmatpush1.bf16.msra.mxu0 %v765
    %1429 = vmatprep.subr.bf16.mxu0 %v770
    %1430 = vmatpush1.bf16.msra.mxu0 %v769
    %1431 = vmatprep.subr.bf16.mxu0 %v774
    %1432 = vmatpush1.bf16.msra.mxu0 %v773
    %1433 = vmatprep.subr.bf16.mxu0 %v778
    %1434 = vmatpush1.bf16.msra.mxu0 %v777
    %1435 = vmatprep.subr.bf16.mxu0 %v782
    %1436 = vmatpush1.bf16.msra.mxu0 %v781
    %1437 = vmatprep.subr.bf16.mxu0 0
    %1438 = vmatpush1.bf16.msra.mxu0 0
    %1439 = vmatprep.subr.bf16.mxu0 0
    %1440 = vmatpush1.bf16.msra.mxu0 0
    %1441 = vmatprep.subr.bf16.mxu0 0
    %1442 = vmatpush1.bf16.msra.mxu0 0
    %1443 = vmatprep.subr.bf16.mxu0 0
    %1444 = vmatpush1.bf16.msra.mxu0 0
    %1445 = vmatprep.subr.bf16.mxu0 0
    %1446 = vmatpush1.bf16.msra.mxu0 0
    %1447 = vmatprep.subr.bf16.mxu0 0
    %1448 = vmatpush1.bf16.msra.mxu0 0
    %1449 = vmatprep.subr.bf16.mxu0 0
    %1450 = vmatpush1.bf16.msra.mxu0 0
    %1451 = vmatprep.subr.bf16.mxu0 0
    %1452 = vmatpush1.bf16.msra.mxu0 0
    %1453 = vmatprep.mubr.bf16.mxu0 0
    %1454 = vmatmul.mubr.bf16.gmra.mrb[0].mxu0 %v1379
    %v1455 = vpop.f32.mrb[0].mxu0
    %v1456 = vadd.f32 0.0, %v1455
    %v1457 = vpop.f32.mrb[0].mxu0
    %v1458 = vadd.f32 0.0, %v1457
    %v1459 = vpop.f32.mrb[0].mxu0
    %v1460 = vpop.f32.mrb[0].mxu0
    %1461 = vdwg.mxu0
    %v1462 = vadd.f32 %v412, %v1415
    %v1463 = vadd.f32 %v414, %v1417
    %v1464 = vadd.f32 %v505, %v1456
    %v1465 = vadd.f32 %v507, %v1458
    %v1466 = vxor.u32 %v1462, 2147483648
    %v1467 = vmul.f32 %v1466, 1.442695
    %v1468 = vpow.pop %v1467
    %v1469 = vadd.f32 %v1468, 1.0
    %v1470 = vrcp.pop %v1469
    %v1471 = vmul.f32 1.0, %v1470
    %v1472 = vxor.u32 %v1463, 2147483648
    %v1473 = vmul.f32 %v1472, 1.442695
    %v1474 = vpow.pop %v1473
    %v1475 = vadd.f32 %v1474, 1.0
    %v1476 = vrcp.pop %v1475
    %v1477 = vmul.f32 1.0, %v1476
    %v1478 = vtanh.pop %v1464
    %v1479 = vxor.u32 %v1465, 2147483648
    %v1480 = vmul.f32 %v1479, 1.442695
    %v1481 = vpow.pop %v1480
    %v1482 = vadd.f32 %v1481, 1.0
    %v1483 = vrcp.pop %v1482
    %v1484 = vmul.f32 1.0, %v1483
    %v1485 = vmul.f32 %v1477, %v1374
    %v1486 = vmul.f32 %v1471, %v1478
    %v1487 = vadd.f32 %v1485, %v1486
    %v1488 = vtanh.pop %v1487
    %v1489 = vmul.f32 %v1484, %v1488
    %v1490 = vadd.f32 %v1489, %v579
    %v1491 = vmax.f32 %v1378, %v1490
    %v1492 = vpack.c.bf16 %v1489, %v1489
    %1493 = vmatprep.subr.bf16.mxu0 %v752
    %1494 = vmatpush1.bf16.msra.mxu0 %v751
    %1495 = vmatprep.subr.bf16.mxu0 %v756
    %1496 = vmatpush1.bf16.msra.mxu0 %v755
    %1497 = vmatprep.subr.bf16.mxu0 %v760
    %1498 = vmatpush1.bf16.msra.mxu0 %v759
    %1499 = vmatprep.subr.bf16.mxu0 %v764
    %1500 = vmatpush1.bf16.msra.mxu0 %v763
    %1501 = vmatprep.subr.bf16.mxu0 %v768
    %1502 = vmatpush1.bf16.msra.mxu0 %v767
    %1503 = vmatprep.subr.bf16.mxu0 %v772
    %1504 = vmatpush1.bf16.msra.mxu0 %v771
    %1505 = vmatprep.subr.bf16.mxu0 %v776
    %1506 = vmatpush1.bf16.msra.mxu0 %v775
    %1507 = vmatprep.subr.bf16.mxu0 %v780
    %1508 = vmatpush1.bf16.msra.mxu0 %v779
    %1509 = vmatprep.subr.bf16.mxu0 0
    %1510 = vmatpush1.bf16.msra.mxu0 0
    %1511 = vmatprep.subr.bf16.mxu0 0
    %1512 = vmatpush1.bf16.msra.mxu0 0
    %1513 = vmatprep.subr.bf16.mxu0 0
    %1514 = vmatpush1.bf16.msra.mxu0 0
    %1515 = vmatprep.subr.bf16.mxu0 0
    %1516 = vmatpush1.bf16.msra.mxu0 0
    %1517 = vmatprep.subr.bf16.mxu0 0
    %1518 = vmatpush1.bf16.msra.mxu0 0
    %1519 = vmatprep.subr.bf16.mxu0 0
    %1520 = vmatpush1.bf16.msra.mxu0 0
    %1521 = vmatprep.subr.bf16.mxu0 0
    %1522 = vmatpush1.bf16.msra.mxu0 0
    %1523 = vmatprep.subr.bf16.mxu0 0
    %1524 = vmatpush1.bf16.msra.mxu0 0
    %1525 = vmatprep.mubr.bf16.mxu0 0
    %1526 = vmatmul.mubr.bf16.gmra.mrb[0].mxu0 %v1492
    %v1527 = vpop.f32.mrb[0].mxu0
    %v1528 = vadd.f32 0.0, %v1527
    %v1529 = vpop.f32.mrb[0].mxu0
    %v1530 = vadd.f32 0.0, %v1529
    %v1531 = vpop.f32.mrb[0].mxu0
    %v1532 = vpop.f32.mrb[0].mxu0
    %1533 = vdwg.mxu0
    %1534 = vmatprep.subr.bf16.mxu0 %v754
    %1535 = vmatpush1.bf16.msra.mxu0 %v753
    %1536 = vmatprep.subr.bf16.mxu0 %v758
    %1537 = vmatpush1.bf16.msra.mxu0 %v757
    %1538 = vmatprep.subr.bf16.mxu0 %v762
    %1539 = vmatpush1.bf16.msra.mxu0 %v761
    %1540 = vmatprep.subr.bf16.mxu0 %v766
    %1541 = vmatpush1.bf16.msra.mxu0 %v765
    %1542 = vmatprep.subr.bf16.mxu0 %v770
    %1543 = vmatpush1.bf16.msra.mxu0 %v769
    %1544 = vmatprep.subr.bf16.mxu0 %v774
    %1545 = vmatpush1.bf16.msra.mxu0 %v773
    %1546 = vmatprep.subr.bf16.mxu0 %v778
    %1547 = vmatpush1.bf16.msra.mxu0 %v777
    %1548 = vmatprep.subr.bf16.mxu0 %v782
    %1549 = vmatpush1.bf16.msra.mxu0 %v781
    %1550 = vmatprep.subr.bf16.mxu0 0
    %1551 = vmatpush1.bf16.msra.mxu0 0
    %1552 = vmatprep.subr.bf16.mxu0 0
    %1553 = vmatpush1.bf16.msra.mxu0 0
    %1554 = vmatprep.subr.bf16.mxu0 0
    %1555 = vmatpush1.bf16.msra.mxu0 0
    %1556 = vmatprep.subr.bf16.mxu0 0
    %1557 = vmatpush1.bf16.msra.mxu0 0
    %1558 = vmatprep.subr.bf16.mxu0 0
    %1559 = vmatpush1.bf16.msra.mxu0 0
    %1560 = vmatprep.subr.bf16.mxu0 0
    %1561 = vmatpush1.bf16.msra.mxu0 0
    %1562 = vmatprep.subr.bf16.mxu0 0
    %1563 = vmatpush1.bf16.msra.mxu0 0
    %1564 = vmatprep.subr.bf16.mxu0 0
    %1565 = vmatpush1.bf16.msra.mxu0 0
    %1566 = vmatprep.mubr.bf16.mxu0 0
    %1567 = vmatmul.mubr.bf16.gmra.mrb[0].mxu0 %v1492
    %v1568 = vpop.f32.mrb[0].mxu0
    %v1569 = vadd.f32 0.0, %v1568
    %v1570 = vpop.f32.mrb[0].mxu0
    %v1571 = vadd.f32 0.0, %v1570
    %v1572 = vpop.f32.mrb[0].mxu0
    %v1573 = vpop.f32.mrb[0].mxu0
    %1574 = vdwg.mxu0
    %v1575 = vadd.f32 %v418, %v1528
    %v1576 = vadd.f32 %v420, %v1530
    %v1577 = vadd.f32 %v511, %v1569
    %v1578 = vadd.f32 %v513, %v1571
    %v1579 = vxor.u32 %v1575, 2147483648
    %v1580 = vmul.f32 %v1579, 1.442695
    %v1581 = vpow.pop %v1580
    %v1582 = vadd.f32 %v1581, 1.0
    %v1583 = vrcp.pop %v1582
    %v1584 = vmul.f32 1.0, %v1583
    %v1585 = vxor.u32 %v1576, 2147483648
    %v1586 = vmul.f32 %v1585, 1.442695
    %v1587 = vpow.pop %v1586
    %v1588 = vadd.f32 %v1587, 1.0
    %v1589 = vrcp.pop %v1588
    %v1590 = vmul.f32 1.0, %v1589
    %v1591 = vtanh.pop %v1577
    %v1592 = vxor.u32 %v1578, 2147483648
    %v1593 = vmul.f32 %v1592, 1.442695
    %v1594 = vpow.pop %v1593
    %v1595 = vadd.f32 %v1594, 1.0
    %v1596 = vrcp.pop %v1595
    %v1597 = vmul.f32 1.0, %v1596
    %v1598 = vmul.f32 %v1590, %v1487
    %v1599 = vmul.f32 %v1584, %v1591
    %v1600 = vadd.f32 %v1598, %v1599
    %v1601 = vtanh.pop %v1600
    %v1602 = vmul.f32 %v1597, %v1601
    %v1603 = vadd.f32 %v1602, %v586
    %v1604 = vmax.f32 %v1491, %v1603
    %v1605 = vpack.c.bf16 %v1602, %v1602
    %1606 = vmatprep.subr.bf16.mxu0 %v752
    %1607 = vmatpush1.bf16.msra.mxu0 %v751
    %1608 = vmatprep.subr.bf16.mxu0 %v756
    %1609 = vmatpush1.bf16.msra.mxu0 %v755
    %1610 = vmatprep.subr.bf16.mxu0 %v760
    %1611 = vmatpush1.bf16.msra.mxu0 %v759
    %1612 = vmatprep.subr.bf16.mxu0 %v764
    %1613 = vmatpush1.bf16.msra.mxu0 %v763
    %1614 = vmatprep.subr.bf16.mxu0 %v768
    %1615 = vmatpush1.bf16.msra.mxu0 %v767
    %1616 = vmatprep.subr.bf16.mxu0 %v772
    %1617 = vmatpush1.bf16.msra.mxu0 %v771
    %1618 = vmatprep.subr.bf16.mxu0 %v776
    %1619 = vmatpush1.bf16.msra.mxu0 %v775
    %1620 = vmatprep.subr.bf16.mxu0 %v780
    %1621 = vmatpush1.bf16.msra.mxu0 %v779
    %1622 = vmatprep.subr.bf16.mxu0 0
    %1623 = vmatpush1.bf16.msra.mxu0 0
    %1624 = vmatprep.subr.bf16.mxu0 0
    %1625 = vmatpush1.bf16.msra.mxu0 0
    %1626 = vmatprep.subr.bf16.mxu0 0
    %1627 = vmatpush1.bf16.msra.mxu0 0
    %1628 = vmatprep.subr.bf16.mxu0 0
    %1629 = vmatpush1.bf16.msra.mxu0 0
    %1630 = vmatprep.subr.bf16.mxu0 0
    %1631 = vmatpush1.bf16.msra.mxu0 0
    %1632 = vmatprep.subr.bf16.mxu0 0
    %1633 = vmatpush1.bf16.msra.mxu0 0
    %1634 = vmatprep.subr.bf16.mxu0 0
    %1635 = vmatpush1.bf16.msra.mxu0 0
    %1636 = vmatprep.subr.bf16.mxu0 0
    %1637 = vmatpush1.bf16.msra.mxu0 0
    %1638 = vmatprep.mubr.bf16.mxu0 0
    %1639 = vmatmul.mubr.bf16.gmra.mrb[0].mxu0 %v1605
    %v1640 = vpop.f32.mrb[0].mxu0
    %v1641 = vadd.f32 0.0, %v1640
    %v1642 = vpop.f32.mrb[0].mxu0
    %v1643 = vadd.f32 0.0, %v1642
    %v1644 = vpop.f32.mrb[0].mxu0
    %v1645 = vpop.f32.mrb[0].mxu0
    %1646 = vdwg.mxu0
    %1647 = vmatprep.subr.bf16.mxu0 %v754
    %1648 = vmatpush1.bf16.msra.mxu0 %v753
    %1649 = vmatprep.subr.bf16.mxu0 %v758
    %1650 = vmatpush1.bf16.msra.mxu0 %v757
    %1651 = vmatprep.subr.bf16.mxu0 %v762
    %1652 = vmatpush1.bf16.msra.mxu0 %v761
    %1653 = vmatprep.subr.bf16.mxu0 %v766
    %1654 = vmatpush1.bf16.msra.mxu0 %v765
    %1655 = vmatprep.subr.bf16.mxu0 %v770
    %1656 = vmatpush1.bf16.msra.mxu0 %v769
    %1657 = vmatprep.subr.bf16.mxu0 %v774
    %1658 = vmatpush1.bf16.msra.mxu0 %v773
    %1659 = vmatprep.subr.bf16.mxu0 %v778
    %1660 = vmatpush1.bf16.msra.mxu0 %v777
    %1661 = vmatprep.subr.bf16.mxu0 %v782
    %1662 = vmatpush1.bf16.msra.mxu0 %v781
    %1663 = vmatprep.subr.bf16.mxu0 0
    %1664 = vmatpush1.bf16.msra.mxu0 0
    %1665 = vmatprep.subr.bf16.mxu0 0
    %1666 = vmatpush1.bf16.msra.mxu0 0
    %1667 = vmatprep.subr.bf16.mxu0 0
    %1668 = vmatpush1.bf16.msra.mxu0 0
    %1669 = vmatprep.subr.bf16.mxu0 0
    %1670 = vmatpush1.bf16.msra.mxu0 0
    %1671 = vmatprep.subr.bf16.mxu0 0
    %1672 = vmatpush1.bf16.msra.mxu0 0
    %1673 = vmatprep.subr.bf16.mxu0 0
    %1674 = vmatpush1.bf16.msra.mxu0 0
    %1675 = vmatprep.subr.bf16.mxu0 0
    %1676 = vmatpush1.bf16.msra.mxu0 0
    %1677 = vmatprep.subr.bf16.mxu0 0
    %1678 = vmatpush1.bf16.msra.mxu0 0
    %1679 = vmatprep.mubr.bf16.mxu0 0
    %1680 = vmatmul.mubr.bf16.gmra.mrb[0].mxu0 %v1605
    %v1681 = vpop.f32.mrb[0].mxu0
    %v1682 = vadd.f32 0.0, %v1681
    %v1683 = vpop.f32.mrb[0].mxu0
    %v1684 = vadd.f32 0.0, %v1683
    %v1685 = vpop.f32.mrb[0].mxu0
    %v1686 = vpop.f32.mrb[0].mxu0
    %1687 = vdwg.mxu0
    %v1688 = vadd.f32 %v422, %v1641
    %v1689 = vadd.f32 %v424, %v1643
    %v1690 = vadd.f32 %v515, %v1682
    %v1691 = vadd.f32 %v517, %v1684
    %v1692 = vxor.u32 %v1688, 2147483648
    %v1693 = vmul.f32 %v1692, 1.442695
    %v1694 = vpow.pop %v1693
    %v1695 = vadd.f32 %v1694, 1.0
    %v1696 = vrcp.pop %v1695
    %v1697 = vmul.f32 1.0, %v1696
    %v1698 = vxor.u32 %v1689, 2147483648
    %v1699 = vmul.f32 %v1698, 1.442695
    %v1700 = vpow.pop %v1699
    %v1701 = vadd.f32 %v1700, 1.0
    %v1702 = vrcp.pop %v1701
    %v1703 = vmul.f32 1.0, %v1702
    %v1704 = vtanh.pop %v1690
    %v1705 = vxor.u32 %v1691, 2147483648
    %v1706 = vmul.f32 %v1705, 1.442695
    %v1707 = vpow.pop %v1706
    %v1708 = vadd.f32 %v1707, 1.0
    %v1709 = vrcp.pop %v1708
    %v1710 = vmul.f32 1.0, %v1709
    %v1711 = vmul.f32 %v1703, %v1600
    %v1712 = vmul.f32 %v1697, %v1704
    %v1713 = vadd.f32 %v1711, %v1712
    %v1714 = vtanh.pop %v1713
    %v1715 = vmul.f32 %v1710, %v1714
    %v1716 = vadd.f32 %v1715, %v593
    %v1717 = vmax.f32 %v1604, %v1716
    %v1718 = vpack.c.bf16 %v1715, %v1715
    %1719 = vmatprep.subr.bf16.mxu0 %v752
    %1720 = vmatpush1.bf16.msra.mxu0 %v751
    %1721 = vmatprep.subr.bf16.mxu0 %v756
    %1722 = vmatpush1.bf16.msra.mxu0 %v755
    %1723 = vmatprep.subr.bf16.mxu0 %v760
    %1724 = vmatpush1.bf16.msra.mxu0 %v759
    %1725 = vmatprep.subr.bf16.mxu0 %v764
    %1726 = vmatpush1.bf16.msra.mxu0 %v763
    %1727 = vmatprep.subr.bf16.mxu0 %v768
    %1728 = vmatpush1.bf16.msra.mxu0 %v767
    %1729 = vmatprep.subr.bf16.mxu0 %v772
    %1730 = vmatpush1.bf16.msra.mxu0 %v771
    %1731 = vmatprep.subr.bf16.mxu0 %v776
    %1732 = vmatpush1.bf16.msra.mxu0 %v775
    %1733 = vmatprep.subr.bf16.mxu0 %v780
    %1734 = vmatpush1.bf16.msra.mxu0 %v779
    %1735 = vmatprep.subr.bf16.mxu0 0
    %1736 = vmatpush1.bf16.msra.mxu0 0
    %1737 = vmatprep.subr.bf16.mxu0 0
    %1738 = vmatpush1.bf16.msra.mxu0 0
    %1739 = vmatprep.subr.bf16.mxu0 0
    %1740 = vmatpush1.bf16.msra.mxu0 0
    %1741 = vmatprep.subr.bf16.mxu0 0
    %1742 = vmatpush1.bf16.msra.mxu0 0
    %1743 = vmatprep.subr.bf16.mxu0 0
    %1744 = vmatpush1.bf16.msra.mxu0 0
    %1745 = vmatprep.subr.bf16.mxu0 0
    %1746 = vmatpush1.bf16.msra.mxu0 0
    %1747 = vmatprep.subr.bf16.mxu0 0
    %1748 = vmatpush1.bf16.msra.mxu0 0
    %1749 = vmatprep.subr.bf16.mxu0 0
    %1750 = vmatpush1.bf16.msra.mxu0 0
    %1751 = vmatprep.mubr.bf16.mxu0 0
    %1752 = vmatmul.mubr.bf16.gmra.mrb[0].mxu0 %v1718
    %v1753 = vpop.f32.mrb[0].mxu0
    %v1754 = vadd.f32 0.0, %v1753
    %v1755 = vpop.f32.mrb[0].mxu0
    %v1756 = vadd.f32 0.0, %v1755
    %v1757 = vpop.f32.mrb[0].mxu0
    %v1758 = vpop.f32.mrb[0].mxu0
    %1759 = vdwg.mxu0
    %1760 = vmatprep.subr.bf16.mxu0 %v754
    %1761 = vmatpush1.bf16.msra.mxu0 %v753
    %1762 = vmatprep.subr.bf16.mxu0 %v758
    %1763 = vmatpush1.bf16.msra.mxu0 %v757
    %1764 = vmatprep.subr.bf16.mxu0 %v762
    %1765 = vmatpush1.bf16.msra.mxu0 %v761
    %1766 = vmatprep.subr.bf16.mxu0 %v766
    %1767 = vmatpush1.bf16.msra.mxu0 %v765
    %1768 = vmatprep.subr.bf16.mxu0 %v770
    %1769 = vmatpush1.bf16.msra.mxu0 %v769
    %1770 = vmatprep.subr.bf16.mxu0 %v774
    %1771 = vmatpush1.bf16.msra.mxu0 %v773
    %1772 = vmatprep.subr.bf16.mxu0 %v778
    %1773 = vmatpush1.bf16.msra.mxu0 %v777
    %1774 = vmatprep.subr.bf16.mxu0 %v782
    %1775 = vmatpush1.bf16.msra.mxu0 %v781
    %1776 = vmatprep.subr.bf16.mxu0 0
    %1777 = vmatpush1.bf16.msra.mxu0 0
    %1778 = vmatprep.subr.bf16.mxu0 0
    %1779 = vmatpush1.bf16.msra.mxu0 0
    %1780 = vmatprep.subr.bf16.mxu0 0
    %1781 = vmatpush1.bf16.msra.mxu0 0
    %1782 = vmatprep.subr.bf16.mxu0 0
    %1783 = vmatpush1.bf16.msra.mxu0 0
    %1784 = vmatprep.subr.bf16.mxu0 0
    %1785 = vmatpush1.bf16.msra.mxu0 0
    %1786 = vmatprep.subr.bf16.mxu0 0
    %1787 = vmatpush1.bf16.msra.mxu0 0
    %1788 = vmatprep.subr.bf16.mxu0 0
    %1789 = vmatpush1.bf16.msra.mxu0 0
    %1790 = vmatprep.subr.bf16.mxu0 0
    %1791 = vmatpush1.bf16.msra.mxu0 0
    %1792 = vmatprep.mubr.bf16.mxu0 0
    %1793 = vmatmul.mubr.bf16.gmra.mrb[0].mxu0 %v1718
    %v1794 = vpop.f32.mrb[0].mxu0
    %v1795 = vadd.f32 0.0, %v1794
    %v1796 = vpop.f32.mrb[0].mxu0
    %v1797 = vadd.f32 0.0, %v1796
    %v1798 = vpop.f32.mrb[0].mxu0
    %v1799 = vpop.f32.mrb[0].mxu0
    %1800 = vdwg.mxu0
    %v1801 = vadd.f32 %v428, %v1754
    %v1802 = vadd.f32 %v430, %v1756
    %v1803 = vadd.f32 %v521, %v1795
    %v1804 = vadd.f32 %v523, %v1797
    %v1805 = vxor.u32 %v1801, 2147483648
    %v1806 = vmul.f32 %v1805, 1.442695
    %v1807 = vpow.pop %v1806
    %v1808 = vadd.f32 %v1807, 1.0
    %v1809 = vrcp.pop %v1808
    %v1810 = vmul.f32 1.0, %v1809
    %v1811 = vxor.u32 %v1802, 2147483648
    %v1812 = vmul.f32 %v1811, 1.442695
    %v1813 = vpow.pop %v1812
    %v1814 = vadd.f32 %v1813, 1.0
    %v1815 = vrcp.pop %v1814
    %v1816 = vmul.f32 1.0, %v1815
    %v1817 = vtanh.pop %v1803
    %v1818 = vxor.u32 %v1804, 2147483648
    %v1819 = vmul.f32 %v1818, 1.442695
    %v1820 = vpow.pop %v1819
    %v1821 = vadd.f32 %v1820, 1.0
    %v1822 = vrcp.pop %v1821
    %v1823 = vmul.f32 1.0, %v1822
    %v1824 = vmul.f32 %v1816, %v1713
    %v1825 = vmul.f32 %v1810, %v1817
    %v1826 = vadd.f32 %v1824, %v1825
    %v1827 = vtanh.pop %v1826
    %v1828 = vmul.f32 %v1823, %v1827
    %v1829 = vadd.f32 %v1828, %v600
    %v1830 = vmax.f32 %v1717, %v1829
    %v1831 = vpack.c.bf16 %v1828, %v1828
    %1832 = vmatprep.subr.bf16.mxu0 %v752
    %1833 = vmatpush1.bf16.msra.mxu0 %v751
    %1834 = vmatprep.subr.bf16.mxu0 %v756
    %1835 = vmatpush1.bf16.msra.mxu0 %v755
    %1836 = vmatprep.subr.bf16.mxu0 %v760
    %1837 = vmatpush1.bf16.msra.mxu0 %v759
    %1838 = vmatprep.subr.bf16.mxu0 %v764
    %1839 = vmatpush1.bf16.msra.mxu0 %v763
    %1840 = vmatprep.subr.bf16.mxu0 %v768
    %1841 = vmatpush1.bf16.msra.mxu0 %v767
    %1842 = vmatprep.subr.bf16.mxu0 %v772
    %1843 = vmatpush1.bf16.msra.mxu0 %v771
    %1844 = vmatprep.subr.bf16.mxu0 %v776
    %1845 = vmatpush1.bf16.msra.mxu0 %v775
    %1846 = vmatprep.subr.bf16.mxu0 %v780
    %1847 = vmatpush1.bf16.msra.mxu0 %v779
    %1848 = vmatprep.subr.bf16.mxu0 0
    %1849 = vmatpush1.bf16.msra.mxu0 0
    %1850 = vmatprep.subr.bf16.mxu0 0
    %1851 = vmatpush1.bf16.msra.mxu0 0
    %1852 = vmatprep.subr.bf16.mxu0 0
    %1853 = vmatpush1.bf16.msra.mxu0 0
    %1854 = vmatprep.subr.bf16.mxu0 0
    %1855 = vmatpush1.bf16.msra.mxu0 0
    %1856 = vmatprep.subr.bf16.mxu0 0
    %1857 = vmatpush1.bf16.msra.mxu0 0
    %1858 = vmatprep.subr.bf16.mxu0 0
    %1859 = vmatpush1.bf16.msra.mxu0 0
    %1860 = vmatprep.subr.bf16.mxu0 0
    %1861 = vmatpush1.bf16.msra.mxu0 0
    %1862 = vmatprep.subr.bf16.mxu0 0
    %1863 = vmatpush1.bf16.msra.mxu0 0
    %1864 = vmatprep.mubr.bf16.mxu0 0
    %1865 = vmatmul.mubr.bf16.gmra.mrb[0].mxu0 %v1831
    %v1866 = vpop.f32.mrb[0].mxu0
    %v1867 = vadd.f32 0.0, %v1866
    %v1868 = vpop.f32.mrb[0].mxu0
    %v1869 = vadd.f32 0.0, %v1868
    %v1870 = vpop.f32.mrb[0].mxu0
    %v1871 = vpop.f32.mrb[0].mxu0
    %1872 = vdwg.mxu0
    %1873 = vmatprep.subr.bf16.mxu0 %v754
    %1874 = vmatpush1.bf16.msra.mxu0 %v753
    %1875 = vmatprep.subr.bf16.mxu0 %v758
    %1876 = vmatpush1.bf16.msra.mxu0 %v757
    %1877 = vmatprep.subr.bf16.mxu0 %v762
    %1878 = vmatpush1.bf16.msra.mxu0 %v761
    %1879 = vmatprep.subr.bf16.mxu0 %v766
    %1880 = vmatpush1.bf16.msra.mxu0 %v765
    %1881 = vmatprep.subr.bf16.mxu0 %v770
    %1882 = vmatpush1.bf16.msra.mxu0 %v769
    %1883 = vmatprep.subr.bf16.mxu0 %v774
    %1884 = vmatpush1.bf16.msra.mxu0 %v773
    %1885 = vmatprep.subr.bf16.mxu0 %v778
    %1886 = vmatpush1.bf16.msra.mxu0 %v777
    %1887 = vmatprep.subr.bf16.mxu0 %v782
    %1888 = vmatpush1.bf16.msra.mxu0 %v781
    %1889 = vmatprep.subr.bf16.mxu0 0
    %1890 = vmatpush1.bf16.msra.mxu0 0
    %1891 = vmatprep.subr.bf16.mxu0 0
    %1892 = vmatpush1.bf16.msra.mxu0 0
    %1893 = vmatprep.subr.bf16.mxu0 0
    %1894 = vmatpush1.bf16.msra.mxu0 0
    %1895 = vmatprep.subr.bf16.mxu0 0
    %1896 = vmatpush1.bf16.msra.mxu0 0
    %1897 = vmatprep.subr.bf16.mxu0 0
    %1898 = vmatpush1.bf16.msra.mxu0 0
    %1899 = vmatprep.subr.bf16.mxu0 0
    %1900 = vmatpush1.bf16.msra.mxu0 0
    %1901 = vmatprep.subr.bf16.mxu0 0
    %1902 = vmatpush1.bf16.msra.mxu0 0
    %1903 = vmatprep.subr.bf16.mxu0 0
    %1904 = vmatpush1.bf16.msra.mxu0 0
    %1905 = vmatprep.mubr.bf16.mxu0 0
    %1906 = vmatmul.mubr.bf16.gmra.mrb[0].mxu0 %v1831
    %v1907 = vpop.f32.mrb[0].mxu0
    %v1908 = vadd.f32 0.0, %v1907
    %v1909 = vpop.f32.mrb[0].mxu0
    %v1910 = vadd.f32 0.0, %v1909
    %v1911 = vpop.f32.mrb[0].mxu0
    %v1912 = vpop.f32.mrb[0].mxu0
    %1913 = vdwg.mxu0
    %v1914 = vadd.f32 %v432, %v1867
    %v1915 = vadd.f32 %v434, %v1869
    %v1916 = vadd.f32 %v525, %v1908
    %v1917 = vadd.f32 %v527, %v1910
    %v1918 = vxor.u32 %v1914, 2147483648
    %v1919 = vmul.f32 %v1918, 1.442695
    %v1920 = vpow.pop %v1919
    %v1921 = vadd.f32 %v1920, 1.0
    %v1922 = vrcp.pop %v1921
    %v1923 = vmul.f32 1.0, %v1922
    %v1924 = vxor.u32 %v1915, 2147483648
    %v1925 = vmul.f32 %v1924, 1.442695
    %v1926 = vpow.pop %v1925
    %v1927 = vadd.f32 %v1926, 1.0
    %v1928 = vrcp.pop %v1927
    %v1929 = vmul.f32 1.0, %v1928
    %v1930 = vtanh.pop %v1916
    %v1931 = vxor.u32 %v1917, 2147483648
    %v1932 = vmul.f32 %v1931, 1.442695
    %v1933 = vpow.pop %v1932
    %v1934 = vadd.f32 %v1933, 1.0
    %v1935 = vrcp.pop %v1934
    %v1936 = vmul.f32 1.0, %v1935
    %v1937 = vmul.f32 %v1929, %v1826
    %v1938 = vmul.f32 %v1923, %v1930
    %v1939 = vadd.f32 %v1937, %v1938
    %v1940 = vtanh.pop %v1939
    %v1941 = vmul.f32 %v1936, %v1940
    %v1942 = vadd.f32 %v1941, %v607
    %v1943 = vmax.f32 %v1830, %v1942
    %v1944 = vpack.c.bf16 %v1941, %v1941
    %1945 = vmatprep.subr.bf16.mxu0 %v752
    %1946 = vmatpush1.bf16.msra.mxu0 %v751
    %1947 = vmatprep.subr.bf16.mxu0 %v756
    %1948 = vmatpush1.bf16.msra.mxu0 %v755
    %1949 = vmatprep.subr.bf16.mxu0 %v760
    %1950 = vmatpush1.bf16.msra.mxu0 %v759
    %1951 = vmatprep.subr.bf16.mxu0 %v764
    %1952 = vmatpush1.bf16.msra.mxu0 %v763
    %1953 = vmatprep.subr.bf16.mxu0 %v768
    %1954 = vmatpush1.bf16.msra.mxu0 %v767
    %1955 = vmatprep.subr.bf16.mxu0 %v772
    %1956 = vmatpush1.bf16.msra.mxu0 %v771
    %1957 = vmatprep.subr.bf16.mxu0 %v776
    %1958 = vmatpush1.bf16.msra.mxu0 %v775
    %1959 = vmatprep.subr.bf16.mxu0 %v780
    %1960 = vmatpush1.bf16.msra.mxu0 %v779
    %1961 = vmatprep.subr.bf16.mxu0 0
    %1962 = vmatpush1.bf16.msra.mxu0 0
    %1963 = vmatprep.subr.bf16.mxu0 0
    %1964 = vmatpush1.bf16.msra.mxu0 0
    %1965 = vmatprep.subr.bf16.mxu0 0
    %1966 = vmatpush1.bf16.msra.mxu0 0
    %1967 = vmatprep.subr.bf16.mxu0 0
    %1968 = vmatpush1.bf16.msra.mxu0 0
    %1969 = vmatprep.subr.bf16.mxu0 0
    %1970 = vmatpush1.bf16.msra.mxu0 0
    %1971 = vmatprep.subr.bf16.mxu0 0
    %1972 = vmatpush1.bf16.msra.mxu0 0
    %1973 = vmatprep.subr.bf16.mxu0 0
    %1974 = vmatpush1.bf16.msra.mxu0 0
    %1975 = vmatprep.subr.bf16.mxu0 0
    %1976 = vmatpush1.bf16.msra.mxu0 0
    %1977 = vmatprep.mubr.bf16.mxu0 0
    %1978 = vmatmul.mubr.bf16.gmra.mrb[0].mxu0 %v1944
    %v1979 = vpop.f32.mrb[0].mxu0
    %v1980 = vadd.f32 0.0, %v1979
    %v1981 = vpop.f32.mrb[0].mxu0
    %v1982 = vadd.f32 0.0, %v1981
    %v1983 = vpop.f32.mrb[0].mxu0
    %v1984 = vpop.f32.mrb[0].mxu0
    %1985 = vdwg.mxu0
    %1986 = vmatprep.subr.bf16.mxu0 %v754
    %1987 = vmatpush1.bf16.msra.mxu0 %v753
    %1988 = vmatprep.subr.bf16.mxu0 %v758
    %1989 = vmatpush1.bf16.msra.mxu0 %v757
    %1990 = vmatprep.subr.bf16.mxu0 %v762
    %1991 = vmatpush1.bf16.msra.mxu0 %v761
    %1992 = vmatprep.subr.bf16.mxu0 %v766
    %1993 = vmatpush1.bf16.msra.mxu0 %v765
    %1994 = vmatprep.subr.bf16.mxu0 %v770
    %1995 = vmatpush1.bf16.msra.mxu0 %v769
    %1996 = vmatprep.subr.bf16.mxu0 %v774
    %1997 = vmatpush1.bf16.msra.mxu0 %v773
    %1998 = vmatprep.subr.bf16.mxu0 %v778
    %1999 = vmatpush1.bf16.msra.mxu0 %v777
    %2000 = vmatprep.subr.bf16.mxu0 %v782
    %2001 = vmatpush1.bf16.msra.mxu0 %v781
    %2002 = vmatprep.subr.bf16.mxu0 0
    %2003 = vmatpush1.bf16.msra.mxu0 0
    %2004 = vmatprep.subr.bf16.mxu0 0
    %2005 = vmatpush1.bf16.msra.mxu0 0
    %2006 = vmatprep.subr.bf16.mxu0 0
    %2007 = vmatpush1.bf16.msra.mxu0 0
    %2008 = vmatprep.subr.bf16.mxu0 0
    %2009 = vmatpush1.bf16.msra.mxu0 0
    %2010 = vmatprep.subr.bf16.mxu0 0
    %2011 = vmatpush1.bf16.msra.mxu0 0
    %2012 = vmatprep.subr.bf16.mxu0 0
    %2013 = vmatpush1.bf16.msra.mxu0 0
    %2014 = vmatprep.subr.bf16.mxu0 0
    %2015 = vmatpush1.bf16.msra.mxu0 0
    %2016 = vmatprep.subr.bf16.mxu0 0
    %2017 = vmatpush1.bf16.msra.mxu0 0
    %2018 = vmatprep.mubr.bf16.mxu0 0
    %2019 = vmatmul.mubr.bf16.gmra.mrb[0].mxu0 %v1944
    %v2020 = vpop.f32.mrb[0].mxu0
    %v2021 = vadd.f32 0.0, %v2020
    %v2022 = vpop.f32.mrb[0].mxu0
    %v2023 = vadd.f32 0.0, %v2022
    %v2024 = vpop.f32.mrb[0].mxu0
    %v2025 = vpop.f32.mrb[0].mxu0
    %2026 = vdwg.mxu0
    %v2027 = vadd.f32 %v438, %v1980
    %v2028 = vadd.f32 %v440, %v1982
    %v2029 = vadd.f32 %v531, %v2021
    %v2030 = vadd.f32 %v533, %v2023
    %v2031 = vxor.u32 %v2027, 2147483648
    %v2032 = vmul.f32 %v2031, 1.442695
    %v2033 = vpow.pop %v2032
    %v2034 = vadd.f32 %v2033, 1.0
    %v2035 = vrcp.pop %v2034
    %v2036 = vmul.f32 1.0, %v2035
    %v2037 = vxor.u32 %v2028, 2147483648
    %v2038 = vmul.f32 %v2037, 1.442695
    %v2039 = vpow.pop %v2038
    %v2040 = vadd.f32 %v2039, 1.0
    %v2041 = vrcp.pop %v2040
    %v2042 = vmul.f32 1.0, %v2041
    %v2043 = vtanh.pop %v2029
    %v2044 = vxor.u32 %v2030, 2147483648
    %v2045 = vmul.f32 %v2044, 1.442695
    %v2046 = vpow.pop %v2045
    %v2047 = vadd.f32 %v2046, 1.0
    %v2048 = vrcp.pop %v2047
    %v2049 = vmul.f32 1.0, %v2048
    %v2050 = vmul.f32 %v2042, %v1939
    %v2051 = vmul.f32 %v2036, %v2043
    %v2052 = vadd.f32 %v2050, %v2051
    %v2053 = vtanh.pop %v2052
    %v2054 = vmul.f32 %v2049, %v2053
    %v2055 = vadd.f32 %v2054, %v614
    %v2056 = vmax.f32 %v1943, %v2055
    %v2057 = vpack.c.bf16 %v2054, %v2054
    %2058 = vmatprep.subr.bf16.mxu0 %v752
    %2059 = vmatpush1.bf16.msra.mxu0 %v751
    %2060 = vmatprep.subr.bf16.mxu0 %v756
    %2061 = vmatpush1.bf16.msra.mxu0 %v755
    %2062 = vmatprep.subr.bf16.mxu0 %v760
    %2063 = vmatpush1.bf16.msra.mxu0 %v759
    %2064 = vmatprep.subr.bf16.mxu0 %v764
    %2065 = vmatpush1.bf16.msra.mxu0 %v763
    %2066 = vmatprep.subr.bf16.mxu0 %v768
    %2067 = vmatpush1.bf16.msra.mxu0 %v767
    %2068 = vmatprep.subr.bf16.mxu0 %v772
    %2069 = vmatpush1.bf16.msra.mxu0 %v771
    %2070 = vmatprep.subr.bf16.mxu0 %v776
    %2071 = vmatpush1.bf16.msra.mxu0 %v775
    %2072 = vmatprep.subr.bf16.mxu0 %v780
    %2073 = vmatpush1.bf16.msra.mxu0 %v779
    %2074 = vmatprep.subr.bf16.mxu0 0
    %2075 = vmatpush1.bf16.msra.mxu0 0
    %2076 = vmatprep.subr.bf16.mxu0 0
    %2077 = vmatpush1.bf16.msra.mxu0 0
    %2078 = vmatprep.subr.bf16.mxu0 0
    %2079 = vmatpush1.bf16.msra.mxu0 0
    %2080 = vmatprep.subr.bf16.mxu0 0
    %2081 = vmatpush1.bf16.msra.mxu0 0
    %2082 = vmatprep.subr.bf16.mxu0 0
    %2083 = vmatpush1.bf16.msra.mxu0 0
    %2084 = vmatprep.subr.bf16.mxu0 0
    %2085 = vmatpush1.bf16.msra.mxu0 0
    %2086 = vmatprep.subr.bf16.mxu0 0
    %2087 = vmatpush1.bf16.msra.mxu0 0
    %2088 = vmatprep.subr.bf16.mxu0 0
    %2089 = vmatpush1.bf16.msra.mxu0 0
    %2090 = vmatprep.mubr.bf16.mxu0 0
    %2091 = vmatmul.mubr.bf16.gmra.mrb[0].mxu0 %v2057
    %v2092 = vpop.f32.mrb[0].mxu0
    %v2093 = vadd.f32 0.0, %v2092
    %v2094 = vpop.f32.mrb[0].mxu0
    %v2095 = vadd.f32 0.0, %v2094
    %v2096 = vpop.f32.mrb[0].mxu0
    %v2097 = vpop.f32.mrb[0].mxu0
    %2098 = vdwg.mxu0
    %2099 = vmatprep.subr.bf16.mxu0 %v754
    %2100 = vmatpush1.bf16.msra.mxu0 %v753
    %2101 = vmatprep.subr.bf16.mxu0 %v758
    %2102 = vmatpush1.bf16.msra.mxu0 %v757
    %2103 = vmatprep.subr.bf16.mxu0 %v762
    %2104 = vmatpush1.bf16.msra.mxu0 %v761
    %2105 = vmatprep.subr.bf16.mxu0 %v766
    %2106 = vmatpush1.bf16.msra.mxu0 %v765
    %2107 = vmatprep.subr.bf16.mxu0 %v770
    %2108 = vmatpush1.bf16.msra.mxu0 %v769
    %2109 = vmatprep.subr.bf16.mxu0 %v774
    %2110 = vmatpush1.bf16.msra.mxu0 %v773
    %2111 = vmatprep.subr.bf16.mxu0 %v778
    %2112 = vmatpush1.bf16.msra.mxu0 %v777
    %2113 = vmatprep.subr.bf16.mxu0 %v782
    %2114 = vmatpush1.bf16.msra.mxu0 %v781
    %2115 = vmatprep.subr.bf16.mxu0 0
    %2116 = vmatpush1.bf16.msra.mxu0 0
    %2117 = vmatprep.subr.bf16.mxu0 0
    %2118 = vmatpush1.bf16.msra.mxu0 0
    %2119 = vmatprep.subr.bf16.mxu0 0
    %2120 = vmatpush1.bf16.msra.mxu0 0
    %2121 = vmatprep.subr.bf16.mxu0 0
    %2122 = vmatpush1.bf16.msra.mxu0 0
    %2123 = vmatprep.subr.bf16.mxu0 0
    %2124 = vmatpush1.bf16.msra.mxu0 0
    %2125 = vmatprep.subr.bf16.mxu0 0
    %2126 = vmatpush1.bf16.msra.mxu0 0
    %2127 = vmatprep.subr.bf16.mxu0 0
    %2128 = vmatpush1.bf16.msra.mxu0 0
    %2129 = vmatprep.subr.bf16.mxu0 0
    %2130 = vmatpush1.bf16.msra.mxu0 0
    %2131 = vmatprep.mubr.bf16.mxu0 0
    %2132 = vmatmul.mubr.bf16.gmra.mrb[0].mxu0 %v2057
    %v2133 = vpop.f32.mrb[0].mxu0
    %v2134 = vadd.f32 0.0, %v2133
    %v2135 = vpop.f32.mrb[0].mxu0
    %v2136 = vadd.f32 0.0, %v2135
    %v2137 = vpop.f32.mrb[0].mxu0
    %v2138 = vpop.f32.mrb[0].mxu0
    %2139 = vdwg.mxu0
    %v2140 = vadd.f32 %v442, %v2093
    %v2141 = vadd.f32 %v444, %v2095
    %v2142 = vadd.f32 %v535, %v2134
    %v2143 = vadd.f32 %v537, %v2136
    %v2144 = vxor.u32 %v2140, 2147483648
    %v2145 = vmul.f32 %v2144, 1.442695
    %v2146 = vpow.pop %v2145
    %v2147 = vadd.f32 %v2146, 1.0
    %v2148 = vrcp.pop %v2147
    %v2149 = vmul.f32 1.0, %v2148
    %v2150 = vxor.u32 %v2141, 2147483648
    %v2151 = vmul.f32 %v2150, 1.442695
    %v2152 = vpow.pop %v2151
    %v2153 = vadd.f32 %v2152, 1.0
    %v2154 = vrcp.pop %v2153
    %v2155 = vmul.f32 1.0, %v2154
    %v2156 = vtanh.pop %v2142
    %v2157 = vxor.u32 %v2143, 2147483648
    %v2158 = vmul.f32 %v2157, 1.442695
    %v2159 = vpow.pop %v2158
    %v2160 = vadd.f32 %v2159, 1.0
    %v2161 = vrcp.pop %v2160
    %v2162 = vmul.f32 1.0, %v2161
    %v2163 = vmul.f32 %v2155, %v2052
    %v2164 = vmul.f32 %v2149, %v2156
    %v2165 = vadd.f32 %v2163, %v2164
    %v2166 = vtanh.pop %v2165
    %v2167 = vmul.f32 %v2162, %v2166
    %v2168 = vadd.f32 %v2167, %v621
    %v2169 = vmax.f32 %v2056, %v2168
    %vm2170 = vcmask 7168
    %v2171 = vsel %vm2170, %v45, 2147483648
    %v2172 = vrot.slane %v2171, 4
    %vm2173 = vcmp.gt.s32.totalorder %v2171, %v2172
    %v2174 = vsel %vm2173, %v2171, %v2172
    %v2175 = vrot.slane %v2174, 2
    %vm2176 = vcmp.gt.s32.totalorder %v2174, %v2175
    %v2177 = vsel %vm2176, %v2174, %v2175
    %v2178 = vrot.slane %v2177, 1
    %vm2179 = vcmp.gt.s32.totalorder %v2177, %v2178
    %v2180 = vsel %vm2179, %v2177, %v2178
    %vm2181 = vcmp.lt.s32.totalorder %v45, %v2180
    %v2182 = vsel %vm2181, 0.0, -1e+30
    %2184 = vset.pattern.permute.xlu0 0
    %2185 = vperm.xlu0 %2184, %v2182
    %v2186 = vpop.permute.xlu0 %2185
    %v2188 = vmax.f32 %v2169, %v2186
    %v2189 = vld [vmem:[%s6] sm:$0xff]
    %v2190 = vld [vmem:[%s6 + $0x8] sm:$0xff]
    %v2191 = vld [vmem:[%s6 + $0x10] sm:$0xff]
    %v2192 = vld [vmem:[%s6 + $0x18] sm:$0xff]
    %v2193 = vld [vmem:[%s6 + $0x20] sm:$0xff]
    %v2194 = vld [vmem:[%s6 + $0x28] sm:$0xff]
    %v2195 = vld [vmem:[%s6 + $0x30] sm:$0xff]
    %v2196 = vld [vmem:[%s6 + $0x38] sm:$0xff]
    %v2197 = vld [vmem:[%s6 + $0x40] sm:$0xff]
    %v2198 = vld [vmem:[%s6 + $0x48] sm:$0xff]
    %v2199 = vld [vmem:[%s6 + $0x50] sm:$0xff]
    %v2200 = vld [vmem:[%s6 + $0x58] sm:$0xff]
    %v2201 = vld [vmem:[%s6 + $0x60] sm:$0xff]
    %v2202 = vld [vmem:[%s6 + $0x68] sm:$0xff]
    %v2203 = vld [vmem:[%s6 + $0x70] sm:$0xff]
    %v2204 = vld [vmem:[%s6 + $0x78] sm:$0xff]
    %v2205 = vld [vmem:[%s7] sm:$0x1]
    %v2207 = vlaneseq
    %v2208 = vshrl.u32 %v2207, 7
    %v2209 = vsub.s32 0, %v2208
    %v2210 = vrot.slane %v2205, %v2209
    %2212 = vmatprep.subr.mxu0 0.0
    %2213 = vmatpush1.msra.mxu0 %v2189
    %2214 = vmatprep.subr.mxu0 0.0
    %2215 = vmatpush1.msra.mxu0 %v2190
    %2216 = vmatprep.subr.mxu0 0.0
    %2217 = vmatpush1.msra.mxu0 %v2191
    %2218 = vmatprep.subr.mxu0 0.0
    %2219 = vmatpush1.msra.mxu0 %v2192
    %2220 = vmatprep.subr.mxu0 0.0
    %2221 = vmatpush1.msra.mxu0 %v2193
    %2222 = vmatprep.subr.mxu0 0.0
    %2223 = vmatpush1.msra.mxu0 %v2194
    %2224 = vmatprep.subr.mxu0 0.0
    %2225 = vmatpush1.msra.mxu0 %v2195
    %2226 = vmatprep.subr.mxu0 0.0
    %2227 = vmatpush1.msra.mxu0 %v2196
    %2228 = vmatprep.subr.mxu0 0.0
    %2229 = vmatpush1.msra.mxu0 %v2197
    %2230 = vmatprep.subr.mxu0 0.0
    %2231 = vmatpush1.msra.mxu0 %v2198
    %2232 = vmatprep.subr.mxu0 0.0
    %2233 = vmatpush1.msra.mxu0 %v2199
    %2234 = vmatprep.subr.mxu0 0.0
    %2235 = vmatpush1.msra.mxu0 %v2200
    %2236 = vmatprep.subr.mxu0 0.0
    %2237 = vmatpush1.msra.mxu0 %v2201
    %2238 = vmatprep.subr.mxu0 0.0
    %2239 = vmatpush1.msra.mxu0 %v2202
    %2240 = vmatprep.subr.mxu0 0.0
    %2241 = vmatpush1.msra.mxu0 %v2203
    %2242 = vmatprep.subr.mxu0 0.0
    %2243 = vmatpush1.msra.mxu0 %v2204
    %2244 = vmatprep.subr.mxu0 0.0
    %2245 = vmatpush1.msra.mxu0 0.0
    %2246 = vmatprep.subr.mxu0 0.0
    %2247 = vmatpush1.msra.mxu0 0.0
    %2248 = vmatprep.subr.mxu0 0.0
    %2249 = vmatpush1.msra.mxu0 0.0
    %2250 = vmatprep.subr.mxu0 0.0
    %2251 = vmatpush1.msra.mxu0 0.0
    %2252 = vmatprep.subr.mxu0 0.0
    %2253 = vmatpush1.msra.mxu0 0.0
    %2254 = vmatprep.subr.mxu0 0.0
    %2255 = vmatpush1.msra.mxu0 0.0
    %2256 = vmatprep.subr.mxu0 0.0
    %2257 = vmatpush1.msra.mxu0 0.0
    %2258 = vmatprep.subr.mxu0 0.0
    %2259 = vmatpush1.msra.mxu0 0.0
    %2260 = vmatprep.subr.mxu0 0.0
    %2261 = vmatpush1.msra.mxu0 0.0
    %2262 = vmatprep.subr.mxu0 0.0
    %2263 = vmatpush1.msra.mxu0 0.0
    %2264 = vmatprep.subr.mxu0 0.0
    %2265 = vmatpush1.msra.mxu0 0.0
    %2266 = vmatprep.subr.mxu0 0.0
    %2267 = vmatpush1.msra.mxu0 0.0
    %2268 = vmatprep.subr.mxu0 0.0
    %2269 = vmatpush1.msra.mxu0 0.0
    %2270 = vmatprep.subr.mxu0 0.0
    %2271 = vmatpush1.msra.mxu0 0.0
    %2272 = vmatprep.subr.mxu0 0.0
    %2273 = vmatpush1.msra.mxu0 0.0
    %2274 = vmatprep.subr.mxu0 0.0
    %2275 = vmatpush1.msra.mxu0 0.0
    %2276 = vmatprep.mubr.f32.mxu0 0.0
    %2277 = vmatmul.mubr.f32.gmra.mrb[0].mxu0 %v2188
    %v2278 = vpop.f32.mrb[0].mxu0
    %v2279 = vadd.f32 %v2210, %v2278
    %v2280 = vpop.f32.mrb[0].mxu0
    %2281 = vdwg.mxu0
    %v2282 = vxor.u32 %v2279, 2147483648
    %v2283 = vmul.f32 %v2282, 1.442695
    %v2284 = vpow.pop %v2283
    %v2285 = vadd.f32 %v2284, 1.0
    %v2286 = vrcp.pop %v2285
    %v2287 = vmul.f32 1.0, %v2286
    %vm2288 = vcmask 31744
    %2289 = vst.msk [vmem:[%s8] sm:$0xff] %vm2288, %v2287
    // Predicated region
    $region38: #{rnn_forward.1} parent=1 // pred_check
      _
    $region39: #{rnn_forward.1} parent=1 // pred_check_branch
      %2291 = sbr.rel (0) target = $region41
    $region40: #{rnn_forward.1} parent=1 // pred_region
      _
    $region41: #{rnn_forward.1} parent=1 // pred_fallthru
      _
    // Predicated region
    $region42: #{rnn_forward.1} parent=1 // pred_check
      _
    $region43: #{rnn_forward.1} parent=1 // pred_check_branch
      %2293 = sbr.rel (0) target = $region45
    $region44: #{rnn_forward.1} parent=1 // pred_region
      _
    $region45: #{rnn_forward.1} parent=1 // pred_fallthru
      _
    %2294 = vsyncpa [#allocation3], 1

</llo_original>
